<compile_context>
chip_gen: v7x
topology: tpu7x:2x2x1
jax: 0.10.0
libtpu: 0.0.40
codegen_flags: <defaults>
</compile_context>

<pallas_src>
import functools

import jax
import jax.numpy as jnp
from jax import lax
from jax.experimental import pallas as pl
from jax.experimental.pallas import tpu as pltpu


# Per row/col output phase r in {0,1}: the 3 contributing
# (pixel offset d, sub-pixel index p, 3x3 kernel index k) taps.
_TAPS = (
    ((0, 1, 0), (1, 0, 1), (1, 1, 2)),   # r = 0
    ((0, 0, 0), (0, 1, 1), (1, 0, 2)),   # r = 1
)


# ----------------------------------------------------------------------------
# Pallas kernel: one grid step == (one batch element, one row strip).
#   gp_ref   : (1, ch)               per-batch global-average-pooled high feats
#   high_ref : (sh+2, w+2, ch)       bf16 NHWC strip of padded high (1-row halo)
#   low_ref  : (sh+2, w+2, 4*cl)     bf16 space-to-depth strip of padded low
#   w1_ref   : (ch, cl)              bf16 1x1 conv weight, BN-high scale folded
#   wlow_ref : (4, 9*cl, cl)         bf16 per-phase dense 9-tap 3x3 weights
#   wup_ref  : (4, 4*ch, cl)         bf16 per-phase 2x2-tap convT weights
#   brow_ref : (3, cl)               f32 rows: [bn_high_b, bn_low_b, bn_up_b]
#   out_ref  : (4, sh*w, cl)         f32, phase-major, (HW, C) per phase
#   plow_ref : (2, sh*w, 9*cl)       bf16 im2col scratch (double-buffered)
#   pup_ref  : (2, sh*w, 4*ch)       bf16 im2col scratch (double-buffered)
# ----------------------------------------------------------------------------
def _gau_kernel(gp_ref, high_ref, low_ref, w1_ref, wlow_ref, wup_ref,
                brow_ref, out_ref, plow_ref, pup_ref):
  sh = high_ref.shape[0] - 2
  w = high_ref.shape[1] - 2
  ch = high_ref.shape[2]
  cl = out_ref.shape[2]
  shw = sh * w

  # channel attention: precomputed GAP -> 1x1 conv (+folded BN) -> ReLU.
  att = jnp.dot(gp_ref[...].astype(jnp.bfloat16), w1_ref[...],
                preferred_element_type=jnp.float32)              # (1, cl)
  att = jnp.maximum(att + brow_ref[0:1, :], 0.0)
  # fold the remaining biases into a single phase-invariant row.
  c0 = brow_ref[2:3, :] + att * brow_ref[1:2, :]                 # (1, cl)

  # 4 sub-pixel phases: fused (3x3 conv + BN)*att + convT(4,2,1) + BN + ReLU.
  for p in range(4):
    ry, rx = p // 2, p % 2
    slot = p & 1     # double-buffered im2col so stores overlap previous GEMMs

    # im2col, low path: only the 9 contributing (dy,py)x(dx,px) taps.
    t = 0
    for dy, py, _ in _TAPS[ry]:
      a = ry + dy
      for dx, px, _ in _TAPS[rx]:
        c = rx + dx
        cs = (2 * py + px) * cl
        plow_ref[slot, :, t * cl:(t + 1) * cl] = (
            low_ref[a:a + sh, c:c + w, cs:cs + cl].reshape(shw, cl))
        t += 1

    # im2col, up path: the 2x2 effective taps of ConvTranspose2d(4, 2, 1).
    for t2, (dy, dx) in enumerate(((0, 0), (0, 1), (1, 0), (1, 1))):
      a, c = ry + dy, rx + dx
      pup_ref[slot, :, t2 * ch:(t2 + 1) * ch] = (
          high_ref[a:a + sh, c:c + w, :].reshape(shw, ch))

    low_out = jnp.dot(plow_ref[slot], wlow_ref[p],
                      preferred_element_type=jnp.float32)        # (shw, cl)
    up_out = jnp.dot(pup_ref[slot], wup_ref[p],
                     preferred_element_type=jnp.float32)         # (shw, cl)

    # lane-dense (shw, cl) store, no transposes.
    out_ref[p] = jnp.maximum(up_out + low_out * att + c0,
                             0.0).astype(out_ref.dtype)


# ----------------------------------------------------------------------------
# Wrapper: layout plumbing (NCHW <-> phase / space-to-depth / row strips).
# ----------------------------------------------------------------------------
def _vmem_limit_bytes():
  # Generation-aware budget: leave headroom for compiler scratch on v7x
  # (64 MiB physical), use most of VMEM on v5e/v6e (128 MiB physical).
  try:
    cap = pltpu.get_tpu_info().vmem_capacity_bytes
  except Exception:  # pragma: no cover - conservative fallback
    cap = 64 * 1024 * 1024
  return int(min(cap - 12 * 1024 * 1024, 112 * 1024 * 1024))


def _pick_strip_h(h, w):
  # Largest divisor of h with strip_h * w <= 1024 output rows per strip, so
  # the double-buffered blocks + im2col scratch fit v7x's 64 MiB VMEM at
  # production channel counts (cl~256, ch~512).
  cap = max(1, 1024 // max(w, 1))
  sh = 1
  for d in range(1, h + 1):
    if h % d == 0 and d <= cap:
      sh = d
  return sh


@functools.partial(jax.jit, static_argnames=("strip_h",))
def gau_forward(fms_high, fms_low, params, strip_h=None):
  b, ch, h, w = fms_high.shape
  cl = fms_low.shape[1]
  assert fms_low.shape[2:] == (2 * h, 2 * w), "upsample=True expects low = 2x high"
  sh = _pick_strip_h(h, w) if strip_h is None else strip_h
  assert h % sh == 0, "strip_h must divide the high-res height"
  ns = h // sh
  shw = sh * w
  f32, bf16 = jnp.float32, jnp.bfloat16

  # Global average pool is a cross-strip global reduction -> computed here
  # (fuses with the NHWC transpose read); 1x1 conv + BN + ReLU stay in-kernel.
  gp = jnp.mean(fms_high, axis=(2, 3)).reshape(b, 1, ch).astype(f32)

  # high: NCHW -> NHWC bf16, zero-pad spatial by 1.
  high = jnp.transpose(fms_high, (0, 2, 3, 1)).astype(bf16)
  high_pad = jnp.pad(high, ((0, 0), (1, 1), (1, 1), (0, 0)))        # (b,h+2,w+2,ch)
  # low: NCHW -> space-to-depth NHWC bf16 (channel = (py, px, c)), pad by 1.
  low = fms_low.reshape(b, cl, h, 2, w, 2)
  low = jnp.transpose(low, (0, 2, 4, 3, 5, 1)).reshape(b, h, w, 4 * cl)
  low_pad = jnp.pad(low.astype(bf16), ((0, 0), (1, 1), (1, 1), (0, 0)))

  # Overlapping (sh+2)-row haloed strips, materialized so BlockSpecs stay
  # plain Blocked dims (no Element offsets / manual DMA needed).
  row_idx = (jnp.arange(ns) * sh)[:, None] + jnp.arange(sh + 2)[None, :]
  high_strips = jnp.take(high_pad, row_idx, axis=1)   # (b, ns, sh+2, w+2, ch)
  low_strips = jnp.take(low_pad, row_idx, axis=1)     # (b, ns, sh+2, w+2, 4cl)

  bnh_s, bnh_b = params["bnh_scale"], params["bnh_bias"]
  bnl_s, bnl_b = params["bnl_scale"], params["bnl_bias"]
  bnu_s, bnu_b = params["bnu_scale"], params["bnu_bias"]

  # 1x1 conv weight -> (ch, cl), BN-high scale folded.
  w1 = (params["w1x1"][:, :, 0, 0] * bnh_s[:, None]).T.astype(bf16)

  # 3x3 conv -> per-phase dense 9-tap packing over s2d channels: (4, 9*cl, cl).
  w3 = params["w3x3"]                                               # (co,ci,ky,kx)
  lblocks = []
  for ry in range(2):
    for rx in range(2):
      kb = [w3[:, :, ky, kx].T
            for _, _, ky in _TAPS[ry] for _, _, kx in _TAPS[rx]]
      lblocks.append(jnp.concatenate(kb, axis=0))                   # (9*cl, cl)
  wlow = (jnp.stack(lblocks, axis=0) * bnl_s[None, None, :]).astype(bf16)

  # ConvTranspose2d(k=4,s=2,p=1) -> per-phase 2x2-tap packing: (4, 4*ch, cl).
  wu = params["w_up"]                                               # (ci,co,ky,kx)
  ublocks = []
  for ry in range(2):
    for rx in range(2):
      kb = [wu[:, :, 3 - ry - 2 * dy, 3 - rx - 2 * dx]
            for dy in range(2) for dx in range(2)]
      ublocks.append(jnp.concatenate(kb, axis=0))                   # (4*ch, cl)
  wup = (jnp.stack(ublocks, axis=0) * bnu_s[None, None, :]).astype(bf16)

  brow = jnp.stack([bnh_b, bnl_b, bnu_b], axis=0).astype(f32)       # (3, cl)

  out = pl.pallas_call(
      _gau_kernel,
      out_shape=jax.ShapeDtypeStruct((b, ns, 4, shw, cl), f32),
      grid_spec=pltpu.PrefetchScalarGridSpec(
          num_scalar_prefetch=0,
          grid=(b, ns),
          in_specs=[
              pl.BlockSpec((None, 1, ch), lambda i, s: (i, 0, 0)),
              pl.BlockSpec((None, None, sh + 2, w + 2, ch),
                           lambda i, s: (i, s, 0, 0, 0)),
              pl.BlockSpec((None, None, sh + 2, w + 2, 4 * cl),
                           lambda i, s: (i, s, 0, 0, 0)),
              pl.BlockSpec((ch, cl), lambda i, s: (0, 0)),
              pl.BlockSpec((4, 9 * cl, cl), lambda i, s: (0, 0, 0)),
              pl.BlockSpec((4, 4 * ch, cl), lambda i, s: (0, 0, 0)),
              pl.BlockSpec((3, cl), lambda i, s: (0, 0)),
          ],
          out_specs=pl.BlockSpec((None, None, 4, shw, cl),
                                 lambda i, s: (i, s, 0, 0, 0)),
          scratch_shapes=[
              pltpu.VMEM((2, shw, 9 * cl), bf16),
              pltpu.VMEM((2, shw, 4 * ch), bf16),
          ],
      ),
      compiler_params=pltpu.CompilerParams(
          dimension_semantics=("parallel", "parallel"),
          vmem_limit_bytes=_vmem_limit_bytes()),
  )(gp, high_strips, low_strips, w1, wlow, wup, brow)

  # (b, strip, phase=(ry,rx), sh*w, cl) -> NCHW (b, cl, 2h, 2w)
  out = out.reshape(b, ns, 2, 2, sh, w, cl)
  out = jnp.transpose(out, (0, 6, 1, 4, 2, 5, 3))   # (b, c, strip, y, ry, x, rx)
  return out.reshape(b, cl, 2 * h, 2 * w)


# ----------------------------------------------------------------------------
# Pure-JAX reference (lax convolutions) for validation.
# ----------------------------------------------------------------------------
def gau_reference(fms_high, fms_low, params):
  cl = fms_low.shape[1]
  dn = ("NCHW", "OIHW", "NCHW")

  def affine(x, s, bv):
    return x * s.reshape(1, cl, 1, 1) + bv.reshape(1, cl, 1, 1)

  gp = jnp.mean(fms_high, axis=(2, 3), keepdims=True)
  gp = lax.conv_general_dilated(gp, params["w1x1"], (1, 1), [(0, 0), (0, 0)],
                                dimension_numbers=dn)
  gp = jnp.maximum(affine(gp, params["bnh_scale"], params["bnh_bias"]), 0.0)

  low_mask = lax.conv_general_dilated(fms_low, params["w3x3"], (1, 1),
                                      [(1, 1), (1, 1)], dimension_numbers=dn)
  fms_att = affine(low_mask, params["bnl_scale"], params["bnl_bias"]) * gp

  # ConvTranspose2d(k=4, s=2, p=1) via lhs-dilated conv with flipped kernel.
  w_conv = jnp.flip(params["w_up"], axis=(2, 3)).transpose(1, 0, 2, 3)
  up = lax.conv_general_dilated(fms_high, w_conv, (1, 1), [(2, 2), (2, 2)],
                                lhs_dilation=(2, 2), dimension_numbers=dn)
  up = affine(up, params["bnu_scale"], params["bnu_bias"])
  return jnp.maximum(up + fms_att, 0.0)


# ----------------------------------------------------------------------------
def _fold_bn(gamma, beta, mean, var, eps=1e-5):
  scale = gamma / jnp.sqrt(var + eps)
  return scale, beta - mean * scale


def make_params(key, channels_high, channels_low):
  ks = jax.random.split(key, 16)
  cl, ch = channels_low, channels_high

  def bn_stats(k0, k1, k2, k3):
    gamma = 1.0 + 0.1 * jax.random.normal(k0, (cl,), jnp.float32)
    beta = 0.1 * jax.random.normal(k1, (cl,), jnp.float32)
    mean = 0.1 * jax.random.normal(k2, (cl,), jnp.float32)
    var = 0.5 + jnp.abs(jax.random.normal(k3, (cl,), jnp.float32))
    return _fold_bn(gamma, beta, mean, var)

  bnh_s, bnh_b = bn_stats(ks[3], ks[4], ks[5], ks[6])
  bnl_s, bnl_b = bn_stats(ks[7], ks[8], ks[9], ks[10])
  bnu_s, bnu_b = bn_stats(ks[11], ks[12], ks[13], ks[14])

  return {
      # PyTorch layouts: Conv2d (out,in,kh,kw); ConvTranspose2d (in,out,kh,kw)
      "w1x1": 0.1 * jax.random.normal(ks[0], (cl, ch, 1, 1), jnp.float32),
      "w3x3": 0.1 * jax.random.normal(ks[1], (cl, cl, 3, 3), jnp.float32),
      "w_up": 0.1 * jax.random.normal(ks[2], (ch, cl, 4, 4), jnp.float32),
      "bnh_scale": bnh_s, "bnh_bias": bnh_b,
      "bnl_scale": bnl_s, "bnl_bias": bnl_b,
      "bnu_scale": bnu_s, "bnu_bias": bnu_b,
  }


if __name__ == "__main__":
  key = jax.random.PRNGKey(0)

  # Config 1: tiny smoke test.  Config 2: cl=128 / w=16 so the GEMM N axis and
  # output stores are lane-dense and the bf16 sublane packing is exercised.
  configs = (
      dict(B=2, CH=16, CL=8, h=8, w=8, strip_h=4),
      dict(B=2, CH=32, CL=128, h=16, w=16, strip_h=8),
  )
  for i, cfg in enumerate(configs):
    k_hi, k_lo, k_par = jax.random.split(jax.random.fold_in(key, i), 3)
    fms_high = jax.random.normal(
        k_hi, (cfg["B"], cfg["CH"], cfg["h"], cfg["w"]), jnp.float32)
    fms_low = jax.random.normal(
        k_lo, (cfg["B"], cfg["CL"], 2 * cfg["h"], 2 * cfg["w"]), jnp.float32)
    params = make_params(k_par, cfg["CH"], cfg["CL"])

    out = jax.block_until_ready(
        gau_forward(fms_high, fms_low, params, strip_h=cfg["strip_h"]))
    ref = jax.block_until_ready(gau_reference(fms_high, fms_low, params))

    assert out.shape == ref.shape, (out.shape, ref.shape)
    # bf16 MXU operands with f32 accumulation -> loosened tolerance vs f32 ref.
    max_err = float(jnp.max(jnp.abs(out - ref)))
    assert jnp.allclose(out, ref, atol=3e-2, rtol=3e-2), max_err

  print("KERNEL_OK")
</pallas_src>

<mosaic_0001>
module attributes {stable_mosaic.version = 11 : i64} {
  func.func @_gau_kernel(%arg0: i32, %arg1: i32, %arg2: memref<1x1x16xf32, #tpu.memory_space<vmem>>, %arg3: memref<1x1x6x10x16xbf16, #tpu.memory_space<vmem>>, %arg4: memref<1x1x6x10x32xbf16, #tpu.memory_space<vmem>>, %arg5: memref<16x8xbf16, #tpu.memory_space<vmem>>, %arg6: memref<4x72x8xbf16, #tpu.memory_space<vmem>>, %arg7: memref<4x64x8xbf16, #tpu.memory_space<vmem>>, %arg8: memref<3x8xf32, #tpu.memory_space<vmem>>, %arg9: memref<1x1x4x32x8xf32, #tpu.memory_space<vmem>>, %arg10: memref<2x32x72xbf16, #tpu.memory_space<vmem>>, %arg11: memref<2x32x64xbf16, #tpu.memory_space<vmem>>) attributes {dimension_semantics = [#tpu.dimension_semantics<parallel>, #tpu.dimension_semantics<parallel>], iteration_bounds = array<i64: 2, 2>, scalar_prefetch = 0 : i64, scratch_operands = 2 : i64, tpu.core_type = #tpu.core_type<tc>, window_params = [{transform_indices = @transform_0, window_bounds = array<i64: 1, 1, 16>}, {transform_indices = @transform_1, window_bounds = array<i64: 1, 1, 6, 10, 16>}, {transform_indices = @transform_2, window_bounds = array<i64: 1, 1, 6, 10, 32>}, {pipeline_mode = #tpu.pipeline_mode<synchronous>, transform_indices = @transform_3, window_bounds = array<i64: 16, 8>}, {pipeline_mode = #tpu.pipeline_mode<synchronous>, transform_indices = @transform_4, window_bounds = array<i64: 4, 72, 8>}, {pipeline_mode = #tpu.pipeline_mode<synchronous>, transform_indices = @transform_5, window_bounds = array<i64: 4, 64, 8>}, {pipeline_mode = #tpu.pipeline_mode<synchronous>, transform_indices = @transform_6, window_bounds = array<i64: 3, 8>}, {transform_indices = @transform_7, window_bounds = array<i64: 1, 1, 4, 32, 8>}]} {
    %c0 = arith.constant 0 : index
    %c0_0 = arith.constant 0 : index
    %c0_1 = arith.constant 0 : index
    %0 = vector.load %arg2[%c0, %c0_0, %c0_1] : memref<1x1x16xf32, #tpu.memory_space<vmem>>, vector<1x1x16xf32>
    %1 = vector.shape_cast %0 : vector<1x1x16xf32> to vector<1x16xf32>
    %2 = arith.truncf %1 : vector<1x16xf32> to vector<1x16xbf16>
    %c0_2 = arith.constant 0 : index
    %c0_3 = arith.constant 0 : index
    %3 = vector.load %arg5[%c0_2, %c0_3] : memref<16x8xbf16, #tpu.memory_space<vmem>>, vector<16x8xbf16>
    %cst = arith.constant dense<0.000000e+00> : vector<1x8xf32>
    %4 = tpu.matmul %2, %3, %cst {dimension_numbers = #tpu.dot_dimension_numbers<[1], [0], [0], [1], [0, 0, 1, 1], [], []>} : vector<1x16xbf16>, vector<16x8xbf16>, vector<1x8xf32> -> vector<1x8xf32>
    %c0_4 = arith.constant 0 : index
    %c0_5 = arith.constant 0 : index
    %5 = vector.load %arg8[%c0_4, %c0_5] : memref<3x8xf32, #tpu.memory_space<vmem>>, vector<1x8xf32>
    %6 = arith.addf %4, %5 : vector<1x8xf32>
    %cst_6 = arith.constant 0.000000e+00 : f32
    %7 = vector.broadcast %cst_6 : f32 to vector<1x8xf32>
    %8 = arith.maximumf %6, %7 : vector<1x8xf32>
    %c2 = arith.constant 2 : index
    %c0_7 = arith.constant 0 : index
    %9 = vector.load %arg8[%c2, %c0_7] : memref<3x8xf32, #tpu.memory_space<vmem>>, vector<1x8xf32>
    %c1 = arith.constant 1 : index
    %c0_8 = arith.constant 0 : index
    %10 = vector.load %arg8[%c1, %c0_8] : memref<3x8xf32, #tpu.memory_space<vmem>>, vector<1x8xf32>
    %11 = arith.mulf %8, %10 : vector<1x8xf32>
    %12 = arith.addf %9, %11 : vector<1x8xf32>
    %c0_9 = arith.constant 0 : index
    %c0_10 = arith.constant 0 : index
    %c0_11 = arith.constant 0 : index
    %c0_12 = arith.constant 0 : index
    %c24 = arith.constant 24 : index
    %13 = vector.load %arg4[%c0_9, %c0_10, %c0_11, %c0_12, %c24] : memref<1x1x6x10x32xbf16, #tpu.memory_space<vmem>>, vector<1x1x4x8x8xbf16>
    %14 = vector.shape_cast %13 : vector<1x1x4x8x8xbf16> to vector<4x8x8xbf16>
    %15 = vector.shape_cast %14 : vector<4x8x8xbf16> to vector<32x8xbf16>
    %c0_13 = arith.constant 0 : index
    %c0_14 = arith.constant 0 : index
    %c0_15 = arith.constant 0 : index
    %16 = vector.load %arg10[%c0_13, %c0_14, %c0_15] : memref<2x32x72xbf16, #tpu.memory_space<vmem>>, vector<1x32x8xbf16>
    %17 = vector.shape_cast %16 : vector<1x32x8xbf16> to vector<32x8xbf16>
    %18 = vector.shape_cast %15 : vector<32x8xbf16> to vector<1x32x8xbf16>
    tpu.vector_store %arg10[%c0_13, %c0_14, %c0_15], %18 {strides = array<i32>} : memref<2x32x72xbf16, #tpu.memory_space<vmem>>, vector<1x32x8xbf16>,
    %c0_16 = arith.constant 0 : index
    %c0_17 = arith.constant 0 : index
    %c0_18 = arith.constant 0 : index
    %c1_19 = arith.constant 1 : index
    %c16 = arith.constant 16 : index
    %19 = vector.load %arg4[%c0_16, %c0_17, %c0_18, %c1_19, %c16] : memref<1x1x6x10x32xbf16, #tpu.memory_space<vmem>>, vector<1x1x4x8x8xbf16>
    %20 = vector.shape_cast %19 : vector<1x1x4x8x8xbf16> to vector<4x8x8xbf16>
    %21 = vector.shape_cast %20 : vector<4x8x8xbf16> to vector<32x8xbf16>
    %c0_20 = arith.constant 0 : index
    %c0_21 = arith.constant 0 : index
    %c8 = arith.constant 8 : index
    %22 = vector.load %arg10[%c0_20, %c0_21, %c8] : memref<2x32x72xbf16, #tpu.memory_space<vmem>>, vector<1x32x8xbf16>
    %23 = vector.shape_cast %22 : vector<1x32x8xbf16> to vector<32x8xbf16>
    %24 = vector.shape_cast %21 : vector<32x8xbf16> to vector<1x32x8xbf16>
    tpu.vector_store %arg10[%c0_20, %c0_21, %c8], %24 {strides = array<i32>} : memref<2x32x72xbf16, #tpu.memory_space<vmem>>, vector<1x32x8xbf16>,
    %c0_22 = arith.constant 0 : index
    %c0_23 = arith.constant 0 : index
    %c0_24 = arith.constant 0 : index
    %c1_25 = arith.constant 1 : index
    %c24_26 = arith.constant 24 : index
    %25 = vector.load %arg4[%c0_22, %c0_23, %c0_24, %c1_25, %c24_26] : memref<1x1x6x10x32xbf16, #tpu.memory_space<vmem>>, vector<1x1x4x8x8xbf16>
    %26 = vector.shape_cast %25 : vector<1x1x4x8x8xbf16> to vector<4x8x8xbf16>
    %27 = vector.shape_cast %26 : vector<4x8x8xbf16> to vector<32x8xbf16>
    %c0_27 = arith.constant 0 : index
    %c0_28 = arith.constant 0 : index
    %c16_29 = arith.constant 16 : index
    %28 = vector.load %arg10[%c0_27, %c0_28, %c16_29] : memref<2x32x72xbf16, #tpu.memory_space<vmem>>, vector<1x32x8xbf16>
    %29 = vector.shape_cast %28 : vector<1x32x8xbf16> to vector<32x8xbf16>
    %30 = vector.shape_cast %27 : vector<32x8xbf16> to vector<1x32x8xbf16>
    tpu.vector_store %arg10[%c0_27, %c0_28, %c16_29], %30 {strides = array<i32>} : memref<2x32x72xbf16, #tpu.memory_space<vmem>>, vector<1x32x8xbf16>,
    %c0_30 = arith.constant 0 : index
    %c0_31 = arith.constant 0 : index
    %c1_32 = arith.constant 1 : index
    %c0_33 = arith.constant 0 : index
    %c8_34 = arith.constant 8 : index
    %31 = vector.load %arg4[%c0_30, %c0_31, %c1_32, %c0_33, %c8_34] : memref<1x1x6x10x32xbf16, #tpu.memory_space<vmem>>, vector<1x1x4x8x8xbf16>
    %32 = vector.shape_cast %31 : vector<1x1x4x8x8xbf16> to vector<4x8x8xbf16>
    %33 = vector.shape_cast %32 : vector<4x8x8xbf16> to vector<32x8xbf16>
    %c0_35 = arith.constant 0 : index
    %c0_36 = arith.constant 0 : index
    %c24_37 = arith.constant 24 : index
    %34 = vector.load %arg10[%c0_35, %c0_36, %c24_37] : memref<2x32x72xbf16, #tpu.memory_space<vmem>>, vector<1x32x8xbf16>
    %35 = vector.shape_cast %34 : vector<1x32x8xbf16> to vector<32x8xbf16>
    %36 = vector.shape_cast %33 : vector<32x8xbf16> to vector<1x32x8xbf16>
    tpu.vector_store %arg10[%c0_35, %c0_36, %c24_37], %36 {strides = array<i32>} : memref<2x32x72xbf16, #tpu.memory_space<vmem>>, vector<1x32x8xbf16>,
    %c0_38 = arith.constant 0 : index
    %c0_39 = arith.constant 0 : index
    %c1_40 = arith.constant 1 : index
    %c1_41 = arith.constant 1 : index
    %c0_42 = arith.constant 0 : index
    %37 = vector.load %arg4[%c0_38, %c0_39, %c1_40, %c1_41, %c0_42] : memref<1x1x6x10x32xbf16, #tpu.memory_space<vmem>>, vector<1x1x4x8x8xbf16>
    %38 = vector.shape_cast %37 : vector<1x1x4x8x8xbf16> to vector<4x8x8xbf16>
    %39 = vector.shape_cast %38 : vector<4x8x8xbf16> to vector<32x8xbf16>
    %c0_43 = arith.constant 0 : index
    %c0_44 = arith.constant 0 : index
    %c32 = arith.constant 32 : index
    %40 = vector.load %arg10[%c0_43, %c0_44, %c32] : memref<2x32x72xbf16, #tpu.memory_space<vmem>>, vector<1x32x8xbf16>
    %41 = vector.shape_cast %40 : vector<1x32x8xbf16> to vector<32x8xbf16>
    %42 = vector.shape_cast %39 : vector<32x8xbf16> to vector<1x32x8xbf16>
    tpu.vector_store %arg10[%c0_43, %c0_44, %c32], %42 {strides = array<i32>} : memref<2x32x72xbf16, #tpu.memory_space<vmem>>, vector<1x32x8xbf16>,
    %c0_45 = arith.constant 0 : index
    %c0_46 = arith.constant 0 : index
    %c1_47 = arith.constant 1 : index
    %c1_48 = arith.constant 1 : index
    %c8_49 = arith.constant 8 : index
    %43 = vector.load %arg4[%c0_45, %c0_46, %c1_47, %c1_48, %c8_49] : memref<1x1x6x10x32xbf16, #tpu.memory_space<vmem>>, vector<1x1x4x8x8xbf16>
    %44 = vector.shape_cast %43 : vector<1x1x4x8x8xbf16> to vector<4x8x8xbf16>
    %45 = vector.shape_cast %44 : vector<4x8x8xbf16> to vector<32x8xbf16>
    %c0_50 = arith.constant 0 : index
    %c0_51 = arith.constant 0 : index
    %c40 = arith.constant 40 : index
    %46 = vector.load %arg10[%c0_50, %c0_51, %c40] : memref<2x32x72xbf16, #tpu.memory_space<vmem>>, vector<1x32x8xbf16>
    %47 = vector.shape_cast %46 : vector<1x32x8xbf16> to vector<32x8xbf16>
    %48 = vector.shape_cast %45 : vector<32x8xbf16> to vector<1x32x8xbf16>
    tpu.vector_store %arg10[%c0_50, %c0_51, %c40], %48 {strides = array<i32>} : memref<2x32x72xbf16, #tpu.memory_space<vmem>>, vector<1x32x8xbf16>,
    %c0_52 = arith.constant 0 : index
    %c0_53 = arith.constant 0 : index
    %c1_54 = arith.constant 1 : index
    %c0_55 = arith.constant 0 : index
    %c24_56 = arith.constant 24 : index
    %49 = vector.load %arg4[%c0_52, %c0_53, %c1_54, %c0_55, %c24_56] : memref<1x1x6x10x32xbf16, #tpu.memory_space<vmem>>, vector<1x1x4x8x8xbf16>
    %50 = vector.shape_cast %49 : vector<1x1x4x8x8xbf16> to vector<4x8x8xbf16>
    %51 = vector.shape_cast %50 : vector<4x8x8xbf16> to vector<32x8xbf16>
    %c0_57 = arith.constant 0 : index
    %c0_58 = arith.constant 0 : index
    %c48 = arith.constant 48 : index
    %52 = vector.load %arg10[%c0_57, %c0_58, %c48] : memref<2x32x72xbf16, #tpu.memory_space<vmem>>, vector<1x32x8xbf16>
    %53 = vector.shape_cast %52 : vector<1x32x8xbf16> to vector<32x8xbf16>
    %54 = vector.shape_cast %51 : vector<32x8xbf16> to vector<1x32x8xbf16>
    tpu.vector_store %arg10[%c0_57, %c0_58, %c48], %54 {strides = array<i32>} : memref<2x32x72xbf16, #tpu.memory_space<vmem>>, vector<1x32x8xbf16>,
    %c0_59 = arith.constant 0 : index
    %c0_60 = arith.constant 0 : index
    %c1_61 = arith.constant 1 : index
    %c1_62 = arith.constant 1 : index
    %c16_63 = arith.constant 16 : index
    %55 = vector.load %arg4[%c0_59, %c0_60, %c1_61, %c1_62, %c16_63] : memref<1x1x6x10x32xbf16, #tpu.memory_space<vmem>>, vector<1x1x4x8x8xbf16>
    %56 = vector.shape_cast %55 : vector<1x1x4x8x8xbf16> to vector<4x8x8xbf16>
    %57 = vector.shape_cast %56 : vector<4x8x8xbf16> to vector<32x8xbf16>
    %c0_64 = arith.constant 0 : index
    %c0_65 = arith.constant 0 : index
    %c56 = arith.constant 56 : index
    %58 = vector.load %arg10[%c0_64, %c0_65, %c56] : memref<2x32x72xbf16, #tpu.memory_space<vmem>>, vector<1x32x8xbf16>
    %59 = vector.shape_cast %58 : vector<1x32x8xbf16> to vector<32x8xbf16>
    %60 = vector.shape_cast %57 : vector<32x8xbf16> to vector<1x32x8xbf16>
    tpu.vector_store %arg10[%c0_64, %c0_65, %c56], %60 {strides = array<i32>} : memref<2x32x72xbf16, #tpu.memory_space<vmem>>, vector<1x32x8xbf16>,
    %c0_66 = arith.constant 0 : index
    %c0_67 = arith.constant 0 : index
    %c1_68 = arith.constant 1 : index
    %c1_69 = arith.constant 1 : index
    %c24_70 = arith.constant 24 : index
    %61 = vector.load %arg4[%c0_66, %c0_67, %c1_68, %c1_69, %c24_70] : memref<1x1x6x10x32xbf16, #tpu.memory_space<vmem>>, vector<1x1x4x8x8xbf16>
    %62 = vector.shape_cast %61 : vector<1x1x4x8x8xbf16> to vector<4x8x8xbf16>
    %63 = vector.shape_cast %62 : vector<4x8x8xbf16> to vector<32x8xbf16>
    %c0_71 = arith.constant 0 : index
    %c0_72 = arith.constant 0 : index
    %c64 = arith.constant 64 : index
    %64 = vector.load %arg10[%c0_71, %c0_72, %c64] : memref<2x32x72xbf16, #tpu.memory_space<vmem>>, vector<1x32x8xbf16>
    %65 = vector.shape_cast %64 : vector<1x32x8xbf16> to vector<32x8xbf16>
    %66 = vector.shape_cast %63 : vector<32x8xbf16> to vector<1x32x8xbf16>
    tpu.vector_store %arg10[%c0_71, %c0_72, %c64], %66 {strides = array<i32>} : memref<2x32x72xbf16, #tpu.memory_space<vmem>>, vector<1x32x8xbf16>,
    %c0_73 = arith.constant 0 : index
    %c0_74 = arith.constant 0 : index
    %c0_75 = arith.constant 0 : index
    %c0_76 = arith.constant 0 : index
    %c0_77 = arith.constant 0 : index
    %67 = vector.load %arg3[%c0_73, %c0_74, %c0_75, %c0_76, %c0_77] : memref<1x1x6x10x16xbf16, #tpu.memory_space<vmem>>, vector<1x1x4x8x16xbf16>
    %68 = vector.shape_cast %67 : vector<1x1x4x8x16xbf16> to vector<4x8x16xbf16>
    %69 = vector.shape_cast %68 : vector<4x8x16xbf16> to vector<32x16xbf16>
    %c0_78 = arith.constant 0 : index
    %c0_79 = arith.constant 0 : index
    %c0_80 = arith.constant 0 : index
    %70 = vector.load %arg11[%c0_78, %c0_79, %c0_80] : memref<2x32x64xbf16, #tpu.memory_space<vmem>>, vector<1x32x16xbf16>
    %71 = vector.shape_cast %70 : vector<1x32x16xbf16> to vector<32x16xbf16>
    %72 = vector.shape_cast %69 : vector<32x16xbf16> to vector<1x32x16xbf16>
    tpu.vector_store %arg11[%c0_78, %c0_79, %c0_80], %72 {strides = array<i32>} : memref<2x32x64xbf16, #tpu.memory_space<vmem>>, vector<1x32x16xbf16>,
    %c0_81 = arith.constant 0 : index
    %c0_82 = arith.constant 0 : index
    %c0_83 = arith.constant 0 : index
    %c1_84 = arith.constant 1 : index
    %c0_85 = arith.constant 0 : index
    %73 = vector.load %arg3[%c0_81, %c0_82, %c0_83, %c1_84, %c0_85] : memref<1x1x6x10x16xbf16, #tpu.memory_space<vmem>>, vector<1x1x4x8x16xbf16>
    %74 = vector.shape_cast %73 : vector<1x1x4x8x16xbf16> to vector<4x8x16xbf16>
    %75 = vector.shape_cast %74 : vector<4x8x16xbf16> to vector<32x16xbf16>
    %c0_86 = arith.constant 0 : index
    %c0_87 = arith.constant 0 : index
    %c16_88 = arith.constant 16 : index
    %76 = vector.load %arg11[%c0_86, %c0_87, %c16_88] : memref<2x32x64xbf16, #tpu.memory_space<vmem>>, vector<1x32x16xbf16>
    %77 = vector.shape_cast %76 : vector<1x32x16xbf16> to vector<32x16xbf16>
    %78 = vector.shape_cast %75 : vector<32x16xbf16> to vector<1x32x16xbf16>
    tpu.vector_store %arg11[%c0_86, %c0_87, %c16_88], %78 {strides = array<i32>} : memref<2x32x64xbf16, #tpu.memory_space<vmem>>, vector<1x32x16xbf16>,
    %c0_89 = arith.constant 0 : index
    %c0_90 = arith.constant 0 : index
    %c1_91 = arith.constant 1 : index
    %c0_92 = arith.constant 0 : index
    %c0_93 = arith.constant 0 : index
    %79 = vector.load %arg3[%c0_89, %c0_90, %c1_91, %c0_92, %c0_93] : memref<1x1x6x10x16xbf16, #tpu.memory_space<vmem>>, vector<1x1x4x8x16xbf16>
    %80 = vector.shape_cast %79 : vector<1x1x4x8x16xbf16> to vector<4x8x16xbf16>
    %81 = vector.shape_cast %80 : vector<4x8x16xbf16> to vector<32x16xbf16>
    %c0_94 = arith.constant 0 : index
    %c0_95 = arith.constant 0 : index
    %c32_96 = arith.constant 32 : index
    %82 = vector.load %arg11[%c0_94, %c0_95, %c32_96] : memref<2x32x64xbf16, #tpu.memory_space<vmem>>, vector<1x32x16xbf16>
    %83 = vector.shape_cast %82 : vector<1x32x16xbf16> to vector<32x16xbf16>
    %84 = vector.shape_cast %81 : vector<32x16xbf16> to vector<1x32x16xbf16>
    tpu.vector_store %arg11[%c0_94, %c0_95, %c32_96], %84 {strides = array<i32>} : memref<2x32x64xbf16, #tpu.memory_space<vmem>>, vector<1x32x16xbf16>,
    %c0_97 = arith.constant 0 : index
    %c0_98 = arith.constant 0 : index
    %c1_99 = arith.constant 1 : index
    %c1_100 = arith.constant 1 : index
    %c0_101 = arith.constant 0 : index
    %85 = vector.load %arg3[%c0_97, %c0_98, %c1_99, %c1_100, %c0_101] : memref<1x1x6x10x16xbf16, #tpu.memory_space<vmem>>, vector<1x1x4x8x16xbf16>
    %86 = vector.shape_cast %85 : vector<1x1x4x8x16xbf16> to vector<4x8x16xbf16>
    %87 = vector.shape_cast %86 : vector<4x8x16xbf16> to vector<32x16xbf16>
    %c0_102 = arith.constant 0 : index
    %c0_103 = arith.constant 0 : index
    %c48_104 = arith.constant 48 : index
    %88 = vector.load %arg11[%c0_102, %c0_103, %c48_104] : memref<2x32x64xbf16, #tpu.memory_space<vmem>>, vector<1x32x16xbf16>
    %89 = vector.shape_cast %88 : vector<1x32x16xbf16> to vector<32x16xbf16>
    %90 = vector.shape_cast %87 : vector<32x16xbf16> to vector<1x32x16xbf16>
    tpu.vector_store %arg11[%c0_102, %c0_103, %c48_104], %90 {strides = array<i32>} : memref<2x32x64xbf16, #tpu.memory_space<vmem>>, vector<1x32x16xbf16>,
    %c0_105 = arith.constant 0 : index
    %c0_106 = arith.constant 0 : index
    %c0_107 = arith.constant 0 : index
    %91 = vector.load %arg10[%c0_105, %c0_106, %c0_107] : memref<2x32x72xbf16, #tpu.memory_space<vmem>>, vector<1x32x72xbf16>
    %92 = vector.shape_cast %91 : vector<1x32x72xbf16> to vector<32x72xbf16>
    %c0_108 = arith.constant 0 : index
    %c0_109 = arith.constant 0 : index
    %c0_110 = arith.constant 0 : index
    %93 = vector.load %arg6[%c0_108, %c0_109, %c0_110] : memref<4x72x8xbf16, #tpu.memory_space<vmem>>, vector<1x72x8xbf16>
    %94 = vector.shape_cast %93 : vector<1x72x8xbf16> to vector<72x8xbf16>
    %cst_111 = arith.constant dense<0.000000e+00> : vector<32x8xf32>
    %95 = tpu.matmul %92, %94, %cst_111 {dimension_numbers = #tpu.dot_dimension_numbers<[1], [0], [0], [1], [0, 0, 1, 1], [], []>} : vector<32x72xbf16>, vector<72x8xbf16>, vector<32x8xf32> -> vector<32x8xf32>
    %c0_112 = arith.constant 0 : index
    %c0_113 = arith.constant 0 : index
    %c0_114 = arith.constant 0 : index
    %96 = vector.load %arg11[%c0_112, %c0_113, %c0_114] : memref<2x32x64xbf16, #tpu.memory_space<vmem>>, vector<1x32x64xbf16>
    %97 = vector.shape_cast %96 : vector<1x32x64xbf16> to vector<32x64xbf16>
    %c0_115 = arith.constant 0 : index
    %c0_116 = arith.constant 0 : index
    %c0_117 = arith.constant 0 : index
    %98 = vector.load %arg7[%c0_115, %c0_116, %c0_117] : memref<4x64x8xbf16, #tpu.memory_space<vmem>>, vector<1x64x8xbf16>
    %99 = vector.shape_cast %98 : vector<1x64x8xbf16> to vector<64x8xbf16>
    %cst_118 = arith.constant dense<0.000000e+00> : vector<32x8xf32>
    %100 = tpu.matmul %97, %99, %cst_118 {dimension_numbers = #tpu.dot_dimension_numbers<[1], [0], [0], [1], [0, 0, 1, 1], [], []>} : vector<32x64xbf16>, vector<64x8xbf16>, vector<32x8xf32> -> vector<32x8xf32>
    %101 = vector.broadcast %8 : vector<1x8xf32> to vector<32x8xf32>
    %102 = arith.mulf %95, %101 : vector<32x8xf32>
    %103 = arith.addf %100, %102 : vector<32x8xf32>
    %104 = vector.broadcast %12 : vector<1x8xf32> to vector<32x8xf32>
    %105 = arith.addf %103, %104 : vector<32x8xf32>
    %cst_119 = arith.constant 0.000000e+00 : f32
    %106 = vector.broadcast %cst_119 : f32 to vector<32x8xf32>
    %107 = arith.maximumf %105, %106 : vector<32x8xf32>
    %c0_120 = arith.constant 0 : index
    %c0_121 = arith.constant 0 : index
    %c0_122 = arith.constant 0 : index
    %c0_123 = arith.constant 0 : index
    %c0_124 = arith.constant 0 : index
    %108 = vector.load %arg9[%c0_120, %c0_121, %c0_122, %c0_123, %c0_124] : memref<1x1x4x32x8xf32, #tpu.memory_space<vmem>>, vector<1x1x1x32x8xf32>
    %109 = vector.shape_cast %108 : vector<1x1x1x32x8xf32> to vector<32x8xf32>
    %110 = vector.shape_cast %107 : vector<32x8xf32> to vector<1x1x1x32x8xf32>
    tpu.vector_store %arg9[%c0_120, %c0_121, %c0_122, %c0_123, %c0_124], %110 {strides = array<i32>} : memref<1x1x4x32x8xf32, #tpu.memory_space<vmem>>, vector<1x1x1x32x8xf32>,
    %c0_125 = arith.constant 0 : index
    %c0_126 = arith.constant 0 : index
    %c0_127 = arith.constant 0 : index
    %c1_128 = arith.constant 1 : index
    %c16_129 = arith.constant 16 : index
    %111 = vector.load %arg4[%c0_125, %c0_126, %c0_127, %c1_128, %c16_129] : memref<1x1x6x10x32xbf16, #tpu.memory_space<vmem>>, vector<1x1x4x8x8xbf16>
    %112 = vector.shape_cast %111 : vector<1x1x4x8x8xbf16> to vector<4x8x8xbf16>
    %113 = vector.shape_cast %112 : vector<4x8x8xbf16> to vector<32x8xbf16>
    %c1_130 = arith.constant 1 : index
    %c0_131 = arith.constant 0 : index
    %c0_132 = arith.constant 0 : index
    %114 = vector.load %arg10[%c1_130, %c0_131, %c0_132] : memref<2x32x72xbf16, #tpu.memory_space<vmem>>, vector<1x32x8xbf16>
    %115 = vector.shape_cast %114 : vector<1x32x8xbf16> to vector<32x8xbf16>
    %116 = vector.shape_cast %113 : vector<32x8xbf16> to vector<1x32x8xbf16>
    tpu.vector_store %arg10[%c1_130, %c0_131, %c0_132], %116 {strides = array<i32>} : memref<2x32x72xbf16, #tpu.memory_space<vmem>>, vector<1x32x8xbf16>,
    %c0_133 = arith.constant 0 : index
    %c0_134 = arith.constant 0 : index
    %c0_135 = arith.constant 0 : index
    %c1_136 = arith.constant 1 : index
    %c24_137 = arith.constant 24 : index
    %117 = vector.load %arg4[%c0_133, %c0_134, %c0_135, %c1_136, %c24_137] : memref<1x1x6x10x32xbf16, #tpu.memory_space<vmem>>, vector<1x1x4x8x8xbf16>
    %118 = vector.shape_cast %117 : vector<1x1x4x8x8xbf16> to vector<4x8x8xbf16>
    %119 = vector.shape_cast %118 : vector<4x8x8xbf16> to vector<32x8xbf16>
    %c1_138 = arith.constant 1 : index
    %c0_139 = arith.constant 0 : index
    %c8_140 = arith.constant 8 : index
    %120 = vector.load %arg10[%c1_138, %c0_139, %c8_140] : memref<2x32x72xbf16, #tpu.memory_space<vmem>>, vector<1x32x8xbf16>
    %121 = vector.shape_cast %120 : vector<1x32x8xbf16> to vector<32x8xbf16>
    %122 = vector.shape_cast %119 : vector<32x8xbf16> to vector<1x32x8xbf16>
    tpu.vector_store %arg10[%c1_138, %c0_139, %c8_140], %122 {strides = array<i32>} : memref<2x32x72xbf16, #tpu.memory_space<vmem>>, vector<1x32x8xbf16>,
    %c0_141 = arith.constant 0 : index
    %c0_142 = arith.constant 0 : index
    %c0_143 = arith.constant 0 : index
    %c2_144 = arith.constant 2 : index
    %c16_145 = arith.constant 16 : index
    %123 = vector.load %arg4[%c0_141, %c0_142, %c0_143, %c2_144, %c16_145] : memref<1x1x6x10x32xbf16, #tpu.memory_space<vmem>>, vector<1x1x4x8x8xbf16>
    %124 = vector.shape_cast %123 : vector<1x1x4x8x8xbf16> to vector<4x8x8xbf16>
    %125 = vector.shape_cast %124 : vector<4x8x8xbf16> to vector<32x8xbf16>
    %c1_146 = arith.constant 1 : index
    %c0_147 = arith.constant 0 : index
    %c16_148 = arith.constant 16 : index
    %126 = vector.load %arg10[%c1_146, %c0_147, %c16_148] : memref<2x32x72xbf16, #tpu.memory_space<vmem>>, vector<1x32x8xbf16>
    %127 = vector.shape_cast %126 : vector<1x32x8xbf16> to vector<32x8xbf16>
    %128 = vector.shape_cast %125 : vector<32x8xbf16> to vector<1x32x8xbf16>
    tpu.vector_store %arg10[%c1_146, %c0_147, %c16_148], %128 {strides = array<i32>} : memref<2x32x72xbf16, #tpu.memory_space<vmem>>, vector<1x32x8xbf16>,
    %c0_149 = arith.constant 0 : index
    %c0_150 = arith.constant 0 : index
    %c1_151 = arith.constant 1 : index
    %c1_152 = arith.constant 1 : index
    %c0_153 = arith.constant 0 : index
    %129 = vector.load %arg4[%c0_149, %c0_150, %c1_151, %c1_152, %c0_153] : memref<1x1x6x10x32xbf16, #tpu.memory_space<vmem>>, vector<1x1x4x8x8xbf16>
    %130 = vector.shape_cast %129 : vector<1x1x4x8x8xbf16> to vector<4x8x8xbf16>
    %131 = vector.shape_cast %130 : vector<4x8x8xbf16> to vector<32x8xbf16>
    %c1_154 = arith.constant 1 : index
    %c0_155 = arith.constant 0 : index
    %c24_156 = arith.constant 24 : index
    %132 = vector.load %arg10[%c1_154, %c0_155, %c24_156] : memref<2x32x72xbf16, #tpu.memory_space<vmem>>, vector<1x32x8xbf16>
    %133 = vector.shape_cast %132 : vector<1x32x8xbf16> to vector<32x8xbf16>
    %134 = vector.shape_cast %131 : vector<32x8xbf16> to vector<1x32x8xbf16>
    tpu.vector_store %arg10[%c1_154, %c0_155, %c24_156], %134 {strides = array<i32>} : memref<2x32x72xbf16, #tpu.memory_space<vmem>>, vector<1x32x8xbf16>,
    %c0_157 = arith.constant 0 : index
    %c0_158 = arith.constant 0 : index
    %c1_159 = arith.constant 1 : index
    %c1_160 = arith.constant 1 : index
    %c8_161 = arith.constant 8 : index
    %135 = vector.load %arg4[%c0_157, %c0_158, %c1_159, %c1_160, %c8_161] : memref<1x1x6x10x32xbf16, #tpu.memory_space<vmem>>, vector<1x1x4x8x8xbf16>
    %136 = vector.shape_cast %135 : vector<1x1x4x8x8xbf16> to vector<4x8x8xbf16>
    %137 = vector.shape_cast %136 : vector<4x8x8xbf16> to vector<32x8xbf16>
    %c1_162 = arith.constant 1 : index
    %c0_163 = arith.constant 0 : index
    %c32_164 = arith.constant 32 : index
    %138 = vector.load %arg10[%c1_162, %c0_163, %c32_164] : memref<2x32x72xbf16, #tpu.memory_space<vmem>>, vector<1x32x8xbf16>
    %139 = vector.shape_cast %138 : vector<1x32x8xbf16> to vector<32x8xbf16>
    %140 = vector.shape_cast %137 : vector<32x8xbf16> to vector<1x32x8xbf16>
    tpu.vector_store %arg10[%c1_162, %c0_163, %c32_164], %140 {strides = array<i32>} : memref<2x32x72xbf16, #tpu.memory_space<vmem>>, vector<1x32x8xbf16>,
    %c0_165 = arith.constant 0 : index
    %c0_166 = arith.constant 0 : index
    %c1_167 = arith.constant 1 : index
    %c2_168 = arith.constant 2 : index
    %c0_169 = arith.constant 0 : index
    %141 = vector.load %arg4[%c0_165, %c0_166, %c1_167, %c2_168, %c0_169] : memref<1x1x6x10x32xbf16, #tpu.memory_space<vmem>>, vector<1x1x4x8x8xbf16>
    %142 = vector.shape_cast %141 : vector<1x1x4x8x8xbf16> to vector<4x8x8xbf16>
    %143 = vector.shape_cast %142 : vector<4x8x8xbf16> to vector<32x8xbf16>
    %c1_170 = arith.constant 1 : index
    %c0_171 = arith.constant 0 : index
    %c40_172 = arith.constant 40 : index
    %144 = vector.load %arg10[%c1_170, %c0_171, %c40_172] : memref<2x32x72xbf16, #tpu.memory_space<vmem>>, vector<1x32x8xbf16>
    %145 = vector.shape_cast %144 : vector<1x32x8xbf16> to vector<32x8xbf16>
    %146 = vector.shape_cast %143 : vector<32x8xbf16> to vector<1x32x8xbf16>
    tpu.vector_store %arg10[%c1_170, %c0_171, %c40_172], %146 {strides = array<i32>} : memref<2x32x72xbf16, #tpu.memory_space<vmem>>, vector<1x32x8xbf16>,
    %c0_173 = arith.constant 0 : index
    %c0_174 = arith.constant 0 : index
    %c1_175 = arith.constant 1 : index
    %c1_176 = arith.constant 1 : index
    %c16_177 = arith.constant 16 : index
    %147 = vector.load %arg4[%c0_173, %c0_174, %c1_175, %c1_176, %c16_177] : memref<1x1x6x10x32xbf16, #tpu.memory_space<vmem>>, vector<1x1x4x8x8xbf16>
    %148 = vector.shape_cast %147 : vector<1x1x4x8x8xbf16> to vector<4x8x8xbf16>
    %149 = vector.shape_cast %148 : vector<4x8x8xbf16> to vector<32x8xbf16>
    %c1_178 = arith.constant 1 : index
    %c0_179 = arith.constant 0 : index
    %c48_180 = arith.constant 48 : index
    %150 = vector.load %arg10[%c1_178, %c0_179, %c48_180] : memref<2x32x72xbf16, #tpu.memory_space<vmem>>, vector<1x32x8xbf16>
    %151 = vector.shape_cast %150 : vector<1x32x8xbf16> to vector<32x8xbf16>
    %152 = vector.shape_cast %149 : vector<32x8xbf16> to vector<1x32x8xbf16>
    tpu.vector_store %arg10[%c1_178, %c0_179, %c48_180], %152 {strides = array<i32>} : memref<2x32x72xbf16, #tpu.memory_space<vmem>>, vector<1x32x8xbf16>,
    %c0_181 = arith.constant 0 : index
    %c0_182 = arith.constant 0 : index
    %c1_183 = arith.constant 1 : index
    %c1_184 = arith.constant 1 : index
    %c24_185 = arith.constant 24 : index
    %153 = vector.load %arg4[%c0_181, %c0_182, %c1_183, %c1_184, %c24_185] : memref<1x1x6x10x32xbf16, #tpu.memory_space<vmem>>, vector<1x1x4x8x8xbf16>
    %154 = vector.shape_cast %153 : vector<1x1x4x8x8xbf16> to vector<4x8x8xbf16>
    %155 = vector.shape_cast %154 : vector<4x8x8xbf16> to vector<32x8xbf16>
    %c1_186 = arith.constant 1 : index
    %c0_187 = arith.constant 0 : index
    %c56_188 = arith.constant 56 : index
    %156 = vector.load %arg10[%c1_186, %c0_187, %c56_188] : memref<2x32x72xbf16, #tpu.memory_space<vmem>>, vector<1x32x8xbf16>
    %157 = vector.shape_cast %156 : vector<1x32x8xbf16> to vector<32x8xbf16>
    %158 = vector.shape_cast %155 : vector<32x8xbf16> to vector<1x32x8xbf16>
    tpu.vector_store %arg10[%c1_186, %c0_187, %c56_188], %158 {strides = array<i32>} : memref<2x32x72xbf16, #tpu.memory_space<vmem>>, vector<1x32x8xbf16>,
    %c0_189 = arith.constant 0 : index
    %c0_190 = arith.constant 0 : index
    %c1_191 = arith.constant 1 : index
    %c2_192 = arith.constant 2 : index
    %c16_193 = arith.constant 16 : index
    %159 = vector.load %arg4[%c0_189, %c0_190, %c1_191, %c2_192, %c16_193] : memref<1x1x6x10x32xbf16, #tpu.memory_space<vmem>>, vector<1x1x4x8x8xbf16>
    %160 = vector.shape_cast %159 : vector<1x1x4x8x8xbf16> to vector<4x8x8xbf16>
    %161 = vector.shape_cast %160 : vector<4x8x8xbf16> to vector<32x8xbf16>
    %c1_194 = arith.constant 1 : index
    %c0_195 = arith.constant 0 : index
    %c64_196 = arith.constant 64 : index
    %162 = vector.load %arg10[%c1_194, %c0_195, %c64_196] : memref<2x32x72xbf16, #tpu.memory_space<vmem>>, vector<1x32x8xbf16>
    %163 = vector.shape_cast %162 : vector<1x32x8xbf16> to vector<32x8xbf16>
    %164 = vector.shape_cast %161 : vector<32x8xbf16> to vector<1x32x8xbf16>
    tpu.vector_store %arg10[%c1_194, %c0_195, %c64_196], %164 {strides = array<i32>} : memref<2x32x72xbf16, #tpu.memory_space<vmem>>, vector<1x32x8xbf16>,
    %c0_197 = arith.constant 0 : index
    %c0_198 = arith.constant 0 : index
    %c0_199 = arith.constant 0 : index
    %c1_200 = arith.constant 1 : index
    %c0_201 = arith.constant 0 : index
    %165 = vector.load %arg3[%c0_197, %c0_198, %c0_199, %c1_200, %c0_201] : memref<1x1x6x10x16xbf16, #tpu.memory_space<vmem>>, vector<1x1x4x8x16xbf16>
    %166 = vector.shape_cast %165 : vector<1x1x4x8x16xbf16> to vector<4x8x16xbf16>
    %167 = vector.shape_cast %166 : vector<4x8x16xbf16> to vector<32x16xbf16>
    %c1_202 = arith.constant 1 : index
    %c0_203 = arith.constant 0 : index
    %c0_204 = arith.constant 0 : index
    %168 = vector.load %arg11[%c1_202, %c0_203, %c0_204] : memref<2x32x64xbf16, #tpu.memory_space<vmem>>, vector<1x32x16xbf16>
    %169 = vector.shape_cast %168 : vector<1x32x16xbf16> to vector<32x16xbf16>
    %170 = vector.shape_cast %167 : vector<32x16xbf16> to vector<1x32x16xbf16>
    tpu.vector_store %arg11[%c1_202, %c0_203, %c0_204], %170 {strides = array<i32>} : memref<2x32x64xbf16, #tpu.memory_space<vmem>>, vector<1x32x16xbf16>,
    %c0_205 = arith.constant 0 : index
    %c0_206 = arith.constant 0 : index
    %c0_207 = arith.constant 0 : index
    %c2_208 = arith.constant 2 : index
    %c0_209 = arith.constant 0 : index
    %171 = vector.load %arg3[%c0_205, %c0_206, %c0_207, %c2_208, %c0_209] : memref<1x1x6x10x16xbf16, #tpu.memory_space<vmem>>, vector<1x1x4x8x16xbf16>
    %172 = vector.shape_cast %171 : vector<1x1x4x8x16xbf16> to vector<4x8x16xbf16>
    %173 = vector.shape_cast %172 : vector<4x8x16xbf16> to vector<32x16xbf16>
    %c1_210 = arith.constant 1 : index
    %c0_211 = arith.constant 0 : index
    %c16_212 = arith.constant 16 : index
    %174 = vector.load %arg11[%c1_210, %c0_211, %c16_212] : memref<2x32x64xbf16, #tpu.memory_space<vmem>>, vector<1x32x16xbf16>
    %175 = vector.shape_cast %174 : vector<1x32x16xbf16> to vector<32x16xbf16>
    %176 = vector.shape_cast %173 : vector<32x16xbf16> to vector<1x32x16xbf16>
    tpu.vector_store %arg11[%c1_210, %c0_211, %c16_212], %176 {strides = array<i32>} : memref<2x32x64xbf16, #tpu.memory_space<vmem>>, vector<1x32x16xbf16>,
    %c0_213 = arith.constant 0 : index
    %c0_214 = arith.constant 0 : index
    %c1_215 = arith.constant 1 : index
    %c1_216 = arith.constant 1 : index
    %c0_217 = arith.constant 0 : index
    %177 = vector.load %arg3[%c0_213, %c0_214, %c1_215, %c1_216, %c0_217] : memref<1x1x6x10x16xbf16, #tpu.memory_space<vmem>>, vector<1x1x4x8x16xbf16>
    %178 = vector.shape_cast %177 : vector<1x1x4x8x16xbf16> to vector<4x8x16xbf16>
    %179 = vector.shape_cast %178 : vector<4x8x16xbf16> to vector<32x16xbf16>
    %c1_218 = arith.constant 1 : index
    %c0_219 = arith.constant 0 : index
    %c32_220 = arith.constant 32 : index
    %180 = vector.load %arg11[%c1_218, %c0_219, %c32_220] : memref<2x32x64xbf16, #tpu.memory_space<vmem>>, vector<1x32x16xbf16>
    %181 = vector.shape_cast %180 : vector<1x32x16xbf16> to vector<32x16xbf16>
    %182 = vector.shape_cast %179 : vector<32x16xbf16> to vector<1x32x16xbf16>
    tpu.vector_store %arg11[%c1_218, %c0_219, %c32_220], %182 {strides = array<i32>} : memref<2x32x64xbf16, #tpu.memory_space<vmem>>, vector<1x32x16xbf16>,
    %c0_221 = arith.constant 0 : index
    %c0_222 = arith.constant 0 : index
    %c1_223 = arith.constant 1 : index
    %c2_224 = arith.constant 2 : index
    %c0_225 = arith.constant 0 : index
    %183 = vector.load %arg3[%c0_221, %c0_222, %c1_223, %c2_224, %c0_225] : memref<1x1x6x10x16xbf16, #tpu.memory_space<vmem>>, vector<1x1x4x8x16xbf16>
    %184 = vector.shape_cast %183 : vector<1x1x4x8x16xbf16> to vector<4x8x16xbf16>
    %185 = vector.shape_cast %184 : vector<4x8x16xbf16> to vector<32x16xbf16>
    %c1_226 = arith.constant 1 : index
    %c0_227 = arith.constant 0 : index
    %c48_228 = arith.constant 48 : index
    %186 = vector.load %arg11[%c1_226, %c0_227, %c48_228] : memref<2x32x64xbf16, #tpu.memory_space<vmem>>, vector<1x32x16xbf16>
    %187 = vector.shape_cast %186 : vector<1x32x16xbf16> to vector<32x16xbf16>
    %188 = vector.shape_cast %185 : vector<32x16xbf16> to vector<1x32x16xbf16>
    tpu.vector_store %arg11[%c1_226, %c0_227, %c48_228], %188 {strides = array<i32>} : memref<2x32x64xbf16, #tpu.memory_space<vmem>>, vector<1x32x16xbf16>,
    %c1_229 = arith.constant 1 : index
    %c0_230 = arith.constant 0 : index
    %c0_231 = arith.constant 0 : index
    %189 = vector.load %arg10[%c1_229, %c0_230, %c0_231] : memref<2x32x72xbf16, #tpu.memory_space<vmem>>, vector<1x32x72xbf16>
    %190 = vector.shape_cast %189 : vector<1x32x72xbf16> to vector<32x72xbf16>
    %c1_232 = arith.constant 1 : index
    %c0_233 = arith.constant 0 : index
    %c0_234 = arith.constant 0 : index
    %191 = vector.load %arg6[%c1_232, %c0_233, %c0_234] : memref<4x72x8xbf16, #tpu.memory_space<vmem>>, vector<1x72x8xbf16>
    %192 = vector.shape_cast %191 : vector<1x72x8xbf16> to vector<72x8xbf16>
    %cst_235 = arith.constant dense<0.000000e+00> : vector<32x8xf32>
    %193 = tpu.matmul %190, %192, %cst_235 {dimension_numbers = #tpu.dot_dimension_numbers<[1], [0], [0], [1], [0, 0, 1, 1], [], []>} : vector<32x72xbf16>, vector<72x8xbf16>, vector<32x8xf32> -> vector<32x8xf32>
    %c1_236 = arith.constant 1 : index
    %c0_237 = arith.constant 0 : index
    %c0_238 = arith.constant 0 : index
    %194 = vector.load %arg11[%c1_236, %c0_237, %c0_238] : memref<2x32x64xbf16, #tpu.memory_space<vmem>>, vector<1x32x64xbf16>
    %195 = vector.shape_cast %194 : vector<1x32x64xbf16> to vector<32x64xbf16>
    %c1_239 = arith.constant 1 : index
    %c0_240 = arith.constant 0 : index
    %c0_241 = arith.constant 0 : index
    %196 = vector.load %arg7[%c1_239, %c0_240, %c0_241] : memref<4x64x8xbf16, #tpu.memory_space<vmem>>, vector<1x64x8xbf16>
    %197 = vector.shape_cast %196 : vector<1x64x8xbf16> to vector<64x8xbf16>
    %cst_242 = arith.constant dense<0.000000e+00> : vector<32x8xf32>
    %198 = tpu.matmul %195, %197, %cst_242 {dimension_numbers = #tpu.dot_dimension_numbers<[1], [0], [0], [1], [0, 0, 1, 1], [], []>} : vector<32x64xbf16>, vector<64x8xbf16>, vector<32x8xf32> -> vector<32x8xf32>
    %199 = vector.broadcast %8 : vector<1x8xf32> to vector<32x8xf32>
    %200 = arith.mulf %193, %199 : vector<32x8xf32>
    %201 = arith.addf %198, %200 : vector<32x8xf32>
    %202 = vector.broadcast %12 : vector<1x8xf32> to vector<32x8xf32>
    %203 = arith.addf %201, %202 : vector<32x8xf32>
    %cst_243 = arith.constant 0.000000e+00 : f32
    %204 = vector.broadcast %cst_243 : f32 to vector<32x8xf32>
    %205 = arith.maximumf %203, %204 : vector<32x8xf32>
    %c0_244 = arith.constant 0 : index
    %c0_245 = arith.constant 0 : index
    %c1_246 = arith.constant 1 : index
    %c0_247 = arith.constant 0 : index
    %c0_248 = arith.constant 0 : index
    %206 = vector.load %arg9[%c0_244, %c0_245, %c1_246, %c0_247, %c0_248] : memref<1x1x4x32x8xf32, #tpu.memory_space<vmem>>, vector<1x1x1x32x8xf32>
    %207 = vector.shape_cast %206 : vector<1x1x1x32x8xf32> to vector<32x8xf32>
    %208 = vector.shape_cast %205 : vector<32x8xf32> to vector<1x1x1x32x8xf32>
    tpu.vector_store %arg9[%c0_244, %c0_245, %c1_246, %c0_247, %c0_248], %208 {strides = array<i32>} : memref<1x1x4x32x8xf32, #tpu.memory_space<vmem>>, vector<1x1x1x32x8xf32>,
    %c0_249 = arith.constant 0 : index
    %c0_250 = arith.constant 0 : index
    %c1_251 = arith.constant 1 : index
    %c0_252 = arith.constant 0 : index
    %c8_253 = arith.constant 8 : index
    %209 = vector.load %arg4[%c0_249, %c0_250, %c1_251, %c0_252, %c8_253] : memref<1x1x6x10x32xbf16, #tpu.memory_space<vmem>>, vector<1x1x4x8x8xbf16>
    %210 = vector.shape_cast %209 : vector<1x1x4x8x8xbf16> to vector<4x8x8xbf16>
    %211 = vector.shape_cast %210 : vector<4x8x8xbf16> to vector<32x8xbf16>
    %c0_254 = arith.constant 0 : index
    %c0_255 = arith.constant 0 : index
    %c0_256 = arith.constant 0 : index
    %212 = vector.load %arg10[%c0_254, %c0_255, %c0_256] : memref<2x32x72xbf16, #tpu.memory_space<vmem>>, vector<1x32x8xbf16>
    %213 = vector.shape_cast %212 : vector<1x32x8xbf16> to vector<32x8xbf16>
    %214 = vector.shape_cast %211 : vector<32x8xbf16> to vector<1x32x8xbf16>
    tpu.vector_store %arg10[%c0_254, %c0_255, %c0_256], %214 {strides = array<i32>} : memref<2x32x72xbf16, #tpu.memory_space<vmem>>, vector<1x32x8xbf16>,
    %c0_257 = arith.constant 0 : index
    %c0_258 = arith.constant 0 : index
    %c1_259 = arith.constant 1 : index
    %c1_260 = arith.constant 1 : index
    %c0_261 = arith.constant 0 : index
    %215 = vector.load %arg4[%c0_257, %c0_258, %c1_259, %c1_260, %c0_261] : memref<1x1x6x10x32xbf16, #tpu.memory_space<vmem>>, vector<1x1x4x8x8xbf16>
    %216 = vector.shape_cast %215 : vector<1x1x4x8x8xbf16> to vector<4x8x8xbf16>
    %217 = vector.shape_cast %216 : vector<4x8x8xbf16> to vector<32x8xbf16>
    %c0_262 = arith.constant 0 : index
    %c0_263 = arith.constant 0 : index
    %c8_264 = arith.constant 8 : index
    %218 = vector.load %arg10[%c0_262, %c0_263, %c8_264] : memref<2x32x72xbf16, #tpu.memory_space<vmem>>, vector<1x32x8xbf16>
    %219 = vector.shape_cast %218 : vector<1x32x8xbf16> to vector<32x8xbf16>
    %220 = vector.shape_cast %217 : vector<32x8xbf16> to vector<1x32x8xbf16>
    tpu.vector_store %arg10[%c0_262, %c0_263, %c8_264], %220 {strides = array<i32>} : memref<2x32x72xbf16, #tpu.memory_space<vmem>>, vector<1x32x8xbf16>,
    %c0_265 = arith.constant 0 : index
    %c0_266 = arith.constant 0 : index
    %c1_267 = arith.constant 1 : index
    %c1_268 = arith.constant 1 : index
    %c8_269 = arith.constant 8 : index
    %221 = vector.load %arg4[%c0_265, %c0_266, %c1_267, %c1_268, %c8_269] : memref<1x1x6x10x32xbf16, #tpu.memory_space<vmem>>, vector<1x1x4x8x8xbf16>
    %222 = vector.shape_cast %221 : vector<1x1x4x8x8xbf16> to vector<4x8x8xbf16>
    %223 = vector.shape_cast %222 : vector<4x8x8xbf16> to vector<32x8xbf16>
    %c0_270 = arith.constant 0 : index
    %c0_271 = arith.constant 0 : index
    %c16_272 = arith.constant 16 : index
    %224 = vector.load %arg10[%c0_270, %c0_271, %c16_272] : memref<2x32x72xbf16, #tpu.memory_space<vmem>>, vector<1x32x8xbf16>
    %225 = vector.shape_cast %224 : vector<1x32x8xbf16> to vector<32x8xbf16>
    %226 = vector.shape_cast %223 : vector<32x8xbf16> to vector<1x32x8xbf16>
    tpu.vector_store %arg10[%c0_270, %c0_271, %c16_272], %226 {strides = array<i32>} : memref<2x32x72xbf16, #tpu.memory_space<vmem>>, vector<1x32x8xbf16>,
    %c0_273 = arith.constant 0 : index
    %c0_274 = arith.constant 0 : index
    %c1_275 = arith.constant 1 : index
    %c0_276 = arith.constant 0 : index
    %c24_277 = arith.constant 24 : index
    %227 = vector.load %arg4[%c0_273, %c0_274, %c1_275, %c0_276, %c24_277] : memref<1x1x6x10x32xbf16, #tpu.memory_space<vmem>>, vector<1x1x4x8x8xbf16>
    %228 = vector.shape_cast %227 : vector<1x1x4x8x8xbf16> to vector<4x8x8xbf16>
    %229 = vector.shape_cast %228 : vector<4x8x8xbf16> to vector<32x8xbf16>
    %c0_278 = arith.constant 0 : index
    %c0_279 = arith.constant 0 : index
    %c24_280 = arith.constant 24 : index
    %230 = vector.load %arg10[%c0_278, %c0_279, %c24_280] : memref<2x32x72xbf16, #tpu.memory_space<vmem>>, vector<1x32x8xbf16>
    %231 = vector.shape_cast %230 : vector<1x32x8xbf16> to vector<32x8xbf16>
    %232 = vector.shape_cast %229 : vector<32x8xbf16> to vector<1x32x8xbf16>
    tpu.vector_store %arg10[%c0_278, %c0_279, %c24_280], %232 {strides = array<i32>} : memref<2x32x72xbf16, #tpu.memory_space<vmem>>, vector<1x32x8xbf16>,
    %c0_281 = arith.constant 0 : index
    %c0_282 = arith.constant 0 : index
    %c1_283 = arith.constant 1 : index
    %c1_284 = arith.constant 1 : index
    %c16_285 = arith.constant 16 : index
    %233 = vector.load %arg4[%c0_281, %c0_282, %c1_283, %c1_284, %c16_285] : memref<1x1x6x10x32xbf16, #tpu.memory_space<vmem>>, vector<1x1x4x8x8xbf16>
    %234 = vector.shape_cast %233 : vector<1x1x4x8x8xbf16> to vector<4x8x8xbf16>
    %235 = vector.shape_cast %234 : vector<4x8x8xbf16> to vector<32x8xbf16>
    %c0_286 = arith.constant 0 : index
    %c0_287 = arith.constant 0 : index
    %c32_288 = arith.constant 32 : index
    %236 = vector.load %arg10[%c0_286, %c0_287, %c32_288] : memref<2x32x72xbf16, #tpu.memory_space<vmem>>, vector<1x32x8xbf16>
    %237 = vector.shape_cast %236 : vector<1x32x8xbf16> to vector<32x8xbf16>
    %238 = vector.shape_cast %235 : vector<32x8xbf16> to vector<1x32x8xbf16>
    tpu.vector_store %arg10[%c0_286, %c0_287, %c32_288], %238 {strides = array<i32>} : memref<2x32x72xbf16, #tpu.memory_space<vmem>>, vector<1x32x8xbf16>,
    %c0_289 = arith.constant 0 : index
    %c0_290 = arith.constant 0 : index
    %c1_291 = arith.constant 1 : index
    %c1_292 = arith.constant 1 : index
    %c24_293 = arith.constant 24 : index
    %239 = vector.load %arg4[%c0_289, %c0_290, %c1_291, %c1_292, %c24_293] : memref<1x1x6x10x32xbf16, #tpu.memory_space<vmem>>, vector<1x1x4x8x8xbf16>
    %240 = vector.shape_cast %239 : vector<1x1x4x8x8xbf16> to vector<4x8x8xbf16>
    %241 = vector.shape_cast %240 : vector<4x8x8xbf16> to vector<32x8xbf16>
    %c0_294 = arith.constant 0 : index
    %c0_295 = arith.constant 0 : index
    %c40_296 = arith.constant 40 : index
    %242 = vector.load %arg10[%c0_294, %c0_295, %c40_296] : memref<2x32x72xbf16, #tpu.memory_space<vmem>>, vector<1x32x8xbf16>
    %243 = vector.shape_cast %242 : vector<1x32x8xbf16> to vector<32x8xbf16>
    %244 = vector.shape_cast %241 : vector<32x8xbf16> to vector<1x32x8xbf16>
    tpu.vector_store %arg10[%c0_294, %c0_295, %c40_296], %244 {strides = array<i32>} : memref<2x32x72xbf16, #tpu.memory_space<vmem>>, vector<1x32x8xbf16>,
    %c0_297 = arith.constant 0 : index
    %c0_298 = arith.constant 0 : index
    %c2_299 = arith.constant 2 : index
    %c0_300 = arith.constant 0 : index
    %c8_301 = arith.constant 8 : index
    %245 = vector.load %arg4[%c0_297, %c0_298, %c2_299, %c0_300, %c8_301] : memref<1x1x6x10x32xbf16, #tpu.memory_space<vmem>>, vector<1x1x4x8x8xbf16>
    %246 = vector.shape_cast %245 : vector<1x1x4x8x8xbf16> to vector<4x8x8xbf16>
    %247 = vector.shape_cast %246 : vector<4x8x8xbf16> to vector<32x8xbf16>
    %c0_302 = arith.constant 0 : index
    %c0_303 = arith.constant 0 : index
    %c48_304 = arith.constant 48 : index
    %248 = vector.load %arg10[%c0_302, %c0_303, %c48_304] : memref<2x32x72xbf16, #tpu.memory_space<vmem>>, vector<1x32x8xbf16>
    %249 = vector.shape_cast %248 : vector<1x32x8xbf16> to vector<32x8xbf16>
    %250 = vector.shape_cast %247 : vector<32x8xbf16> to vector<1x32x8xbf16>
    tpu.vector_store %arg10[%c0_302, %c0_303, %c48_304], %250 {strides = array<i32>} : memref<2x32x72xbf16, #tpu.memory_space<vmem>>, vector<1x32x8xbf16>,
    %c0_305 = arith.constant 0 : index
    %c0_306 = arith.constant 0 : index
    %c2_307 = arith.constant 2 : index
    %c1_308 = arith.constant 1 : index
    %c0_309 = arith.constant 0 : index
    %251 = vector.load %arg4[%c0_305, %c0_306, %c2_307, %c1_308, %c0_309] : memref<1x1x6x10x32xbf16, #tpu.memory_space<vmem>>, vector<1x1x4x8x8xbf16>
    %252 = vector.shape_cast %251 : vector<1x1x4x8x8xbf16> to vector<4x8x8xbf16>
    %253 = vector.shape_cast %252 : vector<4x8x8xbf16> to vector<32x8xbf16>
    %c0_310 = arith.constant 0 : index
    %c0_311 = arith.constant 0 : index
    %c56_312 = arith.constant 56 : index
    %254 = vector.load %arg10[%c0_310, %c0_311, %c56_312] : memref<2x32x72xbf16, #tpu.memory_space<vmem>>, vector<1x32x8xbf16>
    %255 = vector.shape_cast %254 : vector<1x32x8xbf16> to vector<32x8xbf16>
    %256 = vector.shape_cast %253 : vector<32x8xbf16> to vector<1x32x8xbf16>
    tpu.vector_store %arg10[%c0_310, %c0_311, %c56_312], %256 {strides = array<i32>} : memref<2x32x72xbf16, #tpu.memory_space<vmem>>, vector<1x32x8xbf16>,
    %c0_313 = arith.constant 0 : index
    %c0_314 = arith.constant 0 : index
    %c2_315 = arith.constant 2 : index
    %c1_316 = arith.constant 1 : index
    %c8_317 = arith.constant 8 : index
    %257 = vector.load %arg4[%c0_313, %c0_314, %c2_315, %c1_316, %c8_317] : memref<1x1x6x10x32xbf16, #tpu.memory_space<vmem>>, vector<1x1x4x8x8xbf16>
    %258 = vector.shape_cast %257 : vector<1x1x4x8x8xbf16> to vector<4x8x8xbf16>
    %259 = vector.shape_cast %258 : vector<4x8x8xbf16> to vector<32x8xbf16>
    %c0_318 = arith.constant 0 : index
    %c0_319 = arith.constant 0 : index
    %c64_320 = arith.constant 64 : index
    %260 = vector.load %arg10[%c0_318, %c0_319, %c64_320] : memref<2x32x72xbf16, #tpu.memory_space<vmem>>, vector<1x32x8xbf16>
    %261 = vector.shape_cast %260 : vector<1x32x8xbf16> to vector<32x8xbf16>
    %262 = vector.shape_cast %259 : vector<32x8xbf16> to vector<1x32x8xbf16>
    tpu.vector_store %arg10[%c0_318, %c0_319, %c64_320], %262 {strides = array<i32>} : memref<2x32x72xbf16, #tpu.memory_space<vmem>>, vector<1x32x8xbf16>,
    %c0_321 = arith.constant 0 : index
    %c0_322 = arith.constant 0 : index
    %c1_323 = arith.constant 1 : index
    %c0_324 = arith.constant 0 : index
    %c0_325 = arith.constant 0 : index
    %263 = vector.load %arg3[%c0_321, %c0_322, %c1_323, %c0_324, %c0_325] : memref<1x1x6x10x16xbf16, #tpu.memory_space<vmem>>, vector<1x1x4x8x16xbf16>
    %264 = vector.shape_cast %263 : vector<1x1x4x8x16xbf16> to vector<4x8x16xbf16>
    %265 = vector.shape_cast %264 : vector<4x8x16xbf16> to vector<32x16xbf16>
    %c0_326 = arith.constant 0 : index
    %c0_327 = arith.constant 0 : index
    %c0_328 = arith.constant 0 : index
    %266 = vector.load %arg11[%c0_326, %c0_327, %c0_328] : memref<2x32x64xbf16, #tpu.memory_space<vmem>>, vector<1x32x16xbf16>
    %267 = vector.shape_cast %266 : vector<1x32x16xbf16> to vector<32x16xbf16>
    %268 = vector.shape_cast %265 : vector<32x16xbf16> to vector<1x32x16xbf16>
    tpu.vector_store %arg11[%c0_326, %c0_327, %c0_328], %268 {strides = array<i32>} : memref<2x32x64xbf16, #tpu.memory_space<vmem>>, vector<1x32x16xbf16>,
    %c0_329 = arith.constant 0 : index
    %c0_330 = arith.constant 0 : index
    %c1_331 = arith.constant 1 : index
    %c1_332 = arith.constant 1 : index
    %c0_333 = arith.constant 0 : index
    %269 = vector.load %arg3[%c0_329, %c0_330, %c1_331, %c1_332, %c0_333] : memref<1x1x6x10x16xbf16, #tpu.memory_space<vmem>>, vector<1x1x4x8x16xbf16>
    %270 = vector.shape_cast %269 : vector<1x1x4x8x16xbf16> to vector<4x8x16xbf16>
    %271 = vector.shape_cast %270 : vector<4x8x16xbf16> to vector<32x16xbf16>
    %c0_334 = arith.constant 0 : index
    %c0_335 = arith.constant 0 : index
    %c16_336 = arith.constant 16 : index
    %272 = vector.load %arg11[%c0_334, %c0_335, %c16_336] : memref<2x32x64xbf16, #tpu.memory_space<vmem>>, vector<1x32x16xbf16>
    %273 = vector.shape_cast %272 : vector<1x32x16xbf16> to vector<32x16xbf16>
    %274 = vector.shape_cast %271 : vector<32x16xbf16> to vector<1x32x16xbf16>
    tpu.vector_store %arg11[%c0_334, %c0_335, %c16_336], %274 {strides = array<i32>} : memref<2x32x64xbf16, #tpu.memory_space<vmem>>, vector<1x32x16xbf16>,
    %c0_337 = arith.constant 0 : index
    %c0_338 = arith.constant 0 : index
    %c2_339 = arith.constant 2 : index
    %c0_340 = arith.constant 0 : index
    %c0_341 = arith.constant 0 : index
    %275 = vector.load %arg3[%c0_337, %c0_338, %c2_339, %c0_340, %c0_341] : memref<1x1x6x10x16xbf16, #tpu.memory_space<vmem>>, vector<1x1x4x8x16xbf16>
    %276 = vector.shape_cast %275 : vector<1x1x4x8x16xbf16> to vector<4x8x16xbf16>
    %277 = vector.shape_cast %276 : vector<4x8x16xbf16> to vector<32x16xbf16>
    %c0_342 = arith.constant 0 : index
    %c0_343 = arith.constant 0 : index
    %c32_344 = arith.constant 32 : index
    %278 = vector.load %arg11[%c0_342, %c0_343, %c32_344] : memref<2x32x64xbf16, #tpu.memory_space<vmem>>, vector<1x32x16xbf16>
    %279 = vector.shape_cast %278 : vector<1x32x16xbf16> to vector<32x16xbf16>
    %280 = vector.shape_cast %277 : vector<32x16xbf16> to vector<1x32x16xbf16>
    tpu.vector_store %arg11[%c0_342, %c0_343, %c32_344], %280 {strides = array<i32>} : memref<2x32x64xbf16, #tpu.memory_space<vmem>>, vector<1x32x16xbf16>,
    %c0_345 = arith.constant 0 : index
    %c0_346 = arith.constant 0 : index
    %c2_347 = arith.constant 2 : index
    %c1_348 = arith.constant 1 : index
    %c0_349 = arith.constant 0 : index
    %281 = vector.load %arg3[%c0_345, %c0_346, %c2_347, %c1_348, %c0_349] : memref<1x1x6x10x16xbf16, #tpu.memory_space<vmem>>, vector<1x1x4x8x16xbf16>
    %282 = vector.shape_cast %281 : vector<1x1x4x8x16xbf16> to vector<4x8x16xbf16>
    %283 = vector.shape_cast %282 : vector<4x8x16xbf16> to vector<32x16xbf16>
    %c0_350 = arith.constant 0 : index
    %c0_351 = arith.constant 0 : index
    %c48_352 = arith.constant 48 : index
    %284 = vector.load %arg11[%c0_350, %c0_351, %c48_352] : memref<2x32x64xbf16, #tpu.memory_space<vmem>>, vector<1x32x16xbf16>
    %285 = vector.shape_cast %284 : vector<1x32x16xbf16> to vector<32x16xbf16>
    %286 = vector.shape_cast %283 : vector<32x16xbf16> to vector<1x32x16xbf16>
    tpu.vector_store %arg11[%c0_350, %c0_351, %c48_352], %286 {strides = array<i32>} : memref<2x32x64xbf16, #tpu.memory_space<vmem>>, vector<1x32x16xbf16>,
    %c0_353 = arith.constant 0 : index
    %c0_354 = arith.constant 0 : index
    %c0_355 = arith.constant 0 : index
    %287 = vector.load %arg10[%c0_353, %c0_354, %c0_355] : memref<2x32x72xbf16, #tpu.memory_space<vmem>>, vector<1x32x72xbf16>
    %288 = vector.shape_cast %287 : vector<1x32x72xbf16> to vector<32x72xbf16>
    %c2_356 = arith.constant 2 : index
    %c0_357 = arith.constant 0 : index
    %c0_358 = arith.constant 0 : index
    %289 = vector.load %arg6[%c2_356, %c0_357, %c0_358] : memref<4x72x8xbf16, #tpu.memory_space<vmem>>, vector<1x72x8xbf16>
    %290 = vector.shape_cast %289 : vector<1x72x8xbf16> to vector<72x8xbf16>
    %cst_359 = arith.constant dense<0.000000e+00> : vector<32x8xf32>
    %291 = tpu.matmul %288, %290, %cst_359 {dimension_numbers = #tpu.dot_dimension_numbers<[1], [0], [0], [1], [0, 0, 1, 1], [], []>} : vector<32x72xbf16>, vector<72x8xbf16>, vector<32x8xf32> -> vector<32x8xf32>
    %c0_360 = arith.constant 0 : index
    %c0_361 = arith.constant 0 : index
    %c0_362 = arith.constant 0 : index
    %292 = vector.load %arg11[%c0_360, %c0_361, %c0_362] : memref<2x32x64xbf16, #tpu.memory_space<vmem>>, vector<1x32x64xbf16>
    %293 = vector.shape_cast %292 : vector<1x32x64xbf16> to vector<32x64xbf16>
    %c2_363 = arith.constant 2 : index
    %c0_364 = arith.constant 0 : index
    %c0_365 = arith.constant 0 : index
    %294 = vector.load %arg7[%c2_363, %c0_364, %c0_365] : memref<4x64x8xbf16, #tpu.memory_space<vmem>>, vector<1x64x8xbf16>
    %295 = vector.shape_cast %294 : vector<1x64x8xbf16> to vector<64x8xbf16>
    %cst_366 = arith.constant dense<0.000000e+00> : vector<32x8xf32>
    %296 = tpu.matmul %293, %295, %cst_366 {dimension_numbers = #tpu.dot_dimension_numbers<[1], [0], [0], [1], [0, 0, 1, 1], [], []>} : vector<32x64xbf16>, vector<64x8xbf16>, vector<32x8xf32> -> vector<32x8xf32>
    %297 = vector.broadcast %8 : vector<1x8xf32> to vector<32x8xf32>
    %298 = arith.mulf %291, %297 : vector<32x8xf32>
    %299 = arith.addf %296, %298 : vector<32x8xf32>
    %300 = vector.broadcast %12 : vector<1x8xf32> to vector<32x8xf32>
    %301 = arith.addf %299, %300 : vector<32x8xf32>
    %cst_367 = arith.constant 0.000000e+00 : f32
    %302 = vector.broadcast %cst_367 : f32 to vector<32x8xf32>
    %303 = arith.maximumf %301, %302 : vector<32x8xf32>
    %c0_368 = arith.constant 0 : index
    %c0_369 = arith.constant 0 : index
    %c2_370 = arith.constant 2 : index
    %c0_371 = arith.constant 0 : index
    %c0_372 = arith.constant 0 : index
    %304 = vector.load %arg9[%c0_368, %c0_369, %c2_370, %c0_371, %c0_372] : memref<1x1x4x32x8xf32, #tpu.memory_space<vmem>>, vector<1x1x1x32x8xf32>
    %305 = vector.shape_cast %304 : vector<1x1x1x32x8xf32> to vector<32x8xf32>
    %306 = vector.shape_cast %303 : vector<32x8xf32> to vector<1x1x1x32x8xf32>
    tpu.vector_store %arg9[%c0_368, %c0_369, %c2_370, %c0_371, %c0_372], %306 {strides = array<i32>} : memref<1x1x4x32x8xf32, #tpu.memory_space<vmem>>, vector<1x1x1x32x8xf32>,
    %c0_373 = arith.constant 0 : index
    %c0_374 = arith.constant 0 : index
    %c1_375 = arith.constant 1 : index
    %c1_376 = arith.constant 1 : index
    %c0_377 = arith.constant 0 : index
    %307 = vector.load %arg4[%c0_373, %c0_374, %c1_375, %c1_376, %c0_377] : memref<1x1x6x10x32xbf16, #tpu.memory_space<vmem>>, vector<1x1x4x8x8xbf16>
    %308 = vector.shape_cast %307 : vector<1x1x4x8x8xbf16> to vector<4x8x8xbf16>
    %309 = vector.shape_cast %308 : vector<4x8x8xbf16> to vector<32x8xbf16>
    %c1_378 = arith.constant 1 : index
    %c0_379 = arith.constant 0 : index
    %c0_380 = arith.constant 0 : index
    %310 = vector.load %arg10[%c1_378, %c0_379, %c0_380] : memref<2x32x72xbf16, #tpu.memory_space<vmem>>, vector<1x32x8xbf16>
    %311 = vector.shape_cast %310 : vector<1x32x8xbf16> to vector<32x8xbf16>
    %312 = vector.shape_cast %309 : vector<32x8xbf16> to vector<1x32x8xbf16>
    tpu.vector_store %arg10[%c1_378, %c0_379, %c0_380], %312 {strides = array<i32>} : memref<2x32x72xbf16, #tpu.memory_space<vmem>>, vector<1x32x8xbf16>,
    %c0_381 = arith.constant 0 : index
    %c0_382 = arith.constant 0 : index
    %c1_383 = arith.constant 1 : index
    %c1_384 = arith.constant 1 : index
    %c8_385 = arith.constant 8 : index
    %313 = vector.load %arg4[%c0_381, %c0_382, %c1_383, %c1_384, %c8_385] : memref<1x1x6x10x32xbf16, #tpu.memory_space<vmem>>, vector<1x1x4x8x8xbf16>
    %314 = vector.shape_cast %313 : vector<1x1x4x8x8xbf16> to vector<4x8x8xbf16>
    %315 = vector.shape_cast %314 : vector<4x8x8xbf16> to vector<32x8xbf16>
    %c1_386 = arith.constant 1 : index
    %c0_387 = arith.constant 0 : index
    %c8_388 = arith.constant 8 : index
    %316 = vector.load %arg10[%c1_386, %c0_387, %c8_388] : memref<2x32x72xbf16, #tpu.memory_space<vmem>>, vector<1x32x8xbf16>
    %317 = vector.shape_cast %316 : vector<1x32x8xbf16> to vector<32x8xbf16>
    %318 = vector.shape_cast %315 : vector<32x8xbf16> to vector<1x32x8xbf16>
    tpu.vector_store %arg10[%c1_386, %c0_387, %c8_388], %318 {strides = array<i32>} : memref<2x32x72xbf16, #tpu.memory_space<vmem>>, vector<1x32x8xbf16>,
    %c0_389 = arith.constant 0 : index
    %c0_390 = arith.constant 0 : index
    %c1_391 = arith.constant 1 : index
    %c2_392 = arith.constant 2 : index
    %c0_393 = arith.constant 0 : index
    %319 = vector.load %arg4[%c0_389, %c0_390, %c1_391, %c2_392, %c0_393] : memref<1x1x6x10x32xbf16, #tpu.memory_space<vmem>>, vector<1x1x4x8x8xbf16>
    %320 = vector.shape_cast %319 : vector<1x1x4x8x8xbf16> to vector<4x8x8xbf16>
    %321 = vector.shape_cast %320 : vector<4x8x8xbf16> to vector<32x8xbf16>
    %c1_394 = arith.constant 1 : index
    %c0_395 = arith.constant 0 : index
    %c16_396 = arith.constant 16 : index
    %322 = vector.load %arg10[%c1_394, %c0_395, %c16_396] : memref<2x32x72xbf16, #tpu.memory_space<vmem>>, vector<1x32x8xbf16>
    %323 = vector.shape_cast %322 : vector<1x32x8xbf16> to vector<32x8xbf16>
    %324 = vector.shape_cast %321 : vector<32x8xbf16> to vector<1x32x8xbf16>
    tpu.vector_store %arg10[%c1_394, %c0_395, %c16_396], %324 {strides = array<i32>} : memref<2x32x72xbf16, #tpu.memory_space<vmem>>, vector<1x32x8xbf16>,
    %c0_397 = arith.constant 0 : index
    %c0_398 = arith.constant 0 : index
    %c1_399 = arith.constant 1 : index
    %c1_400 = arith.constant 1 : index
    %c16_401 = arith.constant 16 : index
    %325 = vector.load %arg4[%c0_397, %c0_398, %c1_399, %c1_400, %c16_401] : memref<1x1x6x10x32xbf16, #tpu.memory_space<vmem>>, vector<1x1x4x8x8xbf16>
    %326 = vector.shape_cast %325 : vector<1x1x4x8x8xbf16> to vector<4x8x8xbf16>
    %327 = vector.shape_cast %326 : vector<4x8x8xbf16> to vector<32x8xbf16>
    %c1_402 = arith.constant 1 : index
    %c0_403 = arith.constant 0 : index
    %c24_404 = arith.constant 24 : index
    %328 = vector.load %arg10[%c1_402, %c0_403, %c24_404] : memref<2x32x72xbf16, #tpu.memory_space<vmem>>, vector<1x32x8xbf16>
    %329 = vector.shape_cast %328 : vector<1x32x8xbf16> to vector<32x8xbf16>
    %330 = vector.shape_cast %327 : vector<32x8xbf16> to vector<1x32x8xbf16>
    tpu.vector_store %arg10[%c1_402, %c0_403, %c24_404], %330 {strides = array<i32>} : memref<2x32x72xbf16, #tpu.memory_space<vmem>>, vector<1x32x8xbf16>,
    %c0_405 = arith.constant 0 : index
    %c0_406 = arith.constant 0 : index
    %c1_407 = arith.constant 1 : index
    %c1_408 = arith.constant 1 : index
    %c24_409 = arith.constant 24 : index
    %331 = vector.load %arg4[%c0_405, %c0_406, %c1_407, %c1_408, %c24_409] : memref<1x1x6x10x32xbf16, #tpu.memory_space<vmem>>, vector<1x1x4x8x8xbf16>
    %332 = vector.shape_cast %331 : vector<1x1x4x8x8xbf16> to vector<4x8x8xbf16>
    %333 = vector.shape_cast %332 : vector<4x8x8xbf16> to vector<32x8xbf16>
    %c1_410 = arith.constant 1 : index
    %c0_411 = arith.constant 0 : index
    %c32_412 = arith.constant 32 : index
    %334 = vector.load %arg10[%c1_410, %c0_411, %c32_412] : memref<2x32x72xbf16, #tpu.memory_space<vmem>>, vector<1x32x8xbf16>
    %335 = vector.shape_cast %334 : vector<1x32x8xbf16> to vector<32x8xbf16>
    %336 = vector.shape_cast %333 : vector<32x8xbf16> to vector<1x32x8xbf16>
    tpu.vector_store %arg10[%c1_410, %c0_411, %c32_412], %336 {strides = array<i32>} : memref<2x32x72xbf16, #tpu.memory_space<vmem>>, vector<1x32x8xbf16>,
    %c0_413 = arith.constant 0 : index
    %c0_414 = arith.constant 0 : index
    %c1_415 = arith.constant 1 : index
    %c2_416 = arith.constant 2 : index
    %c16_417 = arith.constant 16 : index
    %337 = vector.load %arg4[%c0_413, %c0_414, %c1_415, %c2_416, %c16_417] : memref<1x1x6x10x32xbf16, #tpu.memory_space<vmem>>, vector<1x1x4x8x8xbf16>
    %338 = vector.shape_cast %337 : vector<1x1x4x8x8xbf16> to vector<4x8x8xbf16>
    %339 = vector.shape_cast %338 : vector<4x8x8xbf16> to vector<32x8xbf16>
    %c1_418 = arith.constant 1 : index
    %c0_419 = arith.constant 0 : index
    %c40_420 = arith.constant 40 : index
    %340 = vector.load %arg10[%c1_418, %c0_419, %c40_420] : memref<2x32x72xbf16, #tpu.memory_space<vmem>>, vector<1x32x8xbf16>
    %341 = vector.shape_cast %340 : vector<1x32x8xbf16> to vector<32x8xbf16>
    %342 = vector.shape_cast %339 : vector<32x8xbf16> to vector<1x32x8xbf16>
    tpu.vector_store %arg10[%c1_418, %c0_419, %c40_420], %342 {strides = array<i32>} : memref<2x32x72xbf16, #tpu.memory_space<vmem>>, vector<1x32x8xbf16>,
    %c0_421 = arith.constant 0 : index
    %c0_422 = arith.constant 0 : index
    %c2_423 = arith.constant 2 : index
    %c1_424 = arith.constant 1 : index
    %c0_425 = arith.constant 0 : index
    %343 = vector.load %arg4[%c0_421, %c0_422, %c2_423, %c1_424, %c0_425] : memref<1x1x6x10x32xbf16, #tpu.memory_space<vmem>>, vector<1x1x4x8x8xbf16>
    %344 = vector.shape_cast %343 : vector<1x1x4x8x8xbf16> to vector<4x8x8xbf16>
    %345 = vector.shape_cast %344 : vector<4x8x8xbf16> to vector<32x8xbf16>
    %c1_426 = arith.constant 1 : index
    %c0_427 = arith.constant 0 : index
    %c48_428 = arith.constant 48 : index
    %346 = vector.load %arg10[%c1_426, %c0_427, %c48_428] : memref<2x32x72xbf16, #tpu.memory_space<vmem>>, vector<1x32x8xbf16>
    %347 = vector.shape_cast %346 : vector<1x32x8xbf16> to vector<32x8xbf16>
    %348 = vector.shape_cast %345 : vector<32x8xbf16> to vector<1x32x8xbf16>
    tpu.vector_store %arg10[%c1_426, %c0_427, %c48_428], %348 {strides = array<i32>} : memref<2x32x72xbf16, #tpu.memory_space<vmem>>, vector<1x32x8xbf16>,
    %c0_429 = arith.constant 0 : index
    %c0_430 = arith.constant 0 : index
    %c2_431 = arith.constant 2 : index
    %c1_432 = arith.constant 1 : index
    %c8_433 = arith.constant 8 : index
    %349 = vector.load %arg4[%c0_429, %c0_430, %c2_431, %c1_432, %c8_433] : memref<1x1x6x10x32xbf16, #tpu.memory_space<vmem>>, vector<1x1x4x8x8xbf16>
    %350 = vector.shape_cast %349 : vector<1x1x4x8x8xbf16> to vector<4x8x8xbf16>
    %351 = vector.shape_cast %350 : vector<4x8x8xbf16> to vector<32x8xbf16>
    %c1_434 = arith.constant 1 : index
    %c0_435 = arith.constant 0 : index
    %c56_436 = arith.constant 56 : index
    %352 = vector.load %arg10[%c1_434, %c0_435, %c56_436] : memref<2x32x72xbf16, #tpu.memory_space<vmem>>, vector<1x32x8xbf16>
    %353 = vector.shape_cast %352 : vector<1x32x8xbf16> to vector<32x8xbf16>
    %354 = vector.shape_cast %351 : vector<32x8xbf16> to vector<1x32x8xbf16>
    tpu.vector_store %arg10[%c1_434, %c0_435, %c56_436], %354 {strides = array<i32>} : memref<2x32x72xbf16, #tpu.memory_space<vmem>>, vector<1x32x8xbf16>,
    %c0_437 = arith.constant 0 : index
    %c0_438 = arith.constant 0 : index
    %c2_439 = arith.constant 2 : index
    %c2_440 = arith.constant 2 : index
    %c0_441 = arith.constant 0 : index
    %355 = vector.load %arg4[%c0_437, %c0_438, %c2_439, %c2_440, %c0_441] : memref<1x1x6x10x32xbf16, #tpu.memory_space<vmem>>, vector<1x1x4x8x8xbf16>
    %356 = vector.shape_cast %355 : vector<1x1x4x8x8xbf16> to vector<4x8x8xbf16>
    %357 = vector.shape_cast %356 : vector<4x8x8xbf16> to vector<32x8xbf16>
    %c1_442 = arith.constant 1 : index
    %c0_443 = arith.constant 0 : index
    %c64_444 = arith.constant 64 : index
    %358 = vector.load %arg10[%c1_442, %c0_443, %c64_444] : memref<2x32x72xbf16, #tpu.memory_space<vmem>>, vector<1x32x8xbf16>
    %359 = vector.shape_cast %358 : vector<1x32x8xbf16> to vector<32x8xbf16>
    %360 = vector.shape_cast %357 : vector<32x8xbf16> to vector<1x32x8xbf16>
    tpu.vector_store %arg10[%c1_442, %c0_443, %c64_444], %360 {strides = array<i32>} : memref<2x32x72xbf16, #tpu.memory_space<vmem>>, vector<1x32x8xbf16>,
    %c0_445 = arith.constant 0 : index
    %c0_446 = arith.constant 0 : index
    %c1_447 = arith.constant 1 : index
    %c1_448 = arith.constant 1 : index
    %c0_449 = arith.constant 0 : index
    %361 = vector.load %arg3[%c0_445, %c0_446, %c1_447, %c1_448, %c0_449] : memref<1x1x6x10x16xbf16, #tpu.memory_space<vmem>>, vector<1x1x4x8x16xbf16>
    %362 = vector.shape_cast %361 : vector<1x1x4x8x16xbf16> to vector<4x8x16xbf16>
    %363 = vector.shape_cast %362 : vector<4x8x16xbf16> to vector<32x16xbf16>
    %c1_450 = arith.constant 1 : index
    %c0_451 = arith.constant 0 : index
    %c0_452 = arith.constant 0 : index
    %364 = vector.load %arg11[%c1_450, %c0_451, %c0_452] : memref<2x32x64xbf16, #tpu.memory_space<vmem>>, vector<1x32x16xbf16>
    %365 = vector.shape_cast %364 : vector<1x32x16xbf16> to vector<32x16xbf16>
    %366 = vector.shape_cast %363 : vector<32x16xbf16> to vector<1x32x16xbf16>
    tpu.vector_store %arg11[%c1_450, %c0_451, %c0_452], %366 {strides = array<i32>} : memref<2x32x64xbf16, #tpu.memory_space<vmem>>, vector<1x32x16xbf16>,
    %c0_453 = arith.constant 0 : index
    %c0_454 = arith.constant 0 : index
    %c1_455 = arith.constant 1 : index
    %c2_456 = arith.constant 2 : index
    %c0_457 = arith.constant 0 : index
    %367 = vector.load %arg3[%c0_453, %c0_454, %c1_455, %c2_456, %c0_457] : memref<1x1x6x10x16xbf16, #tpu.memory_space<vmem>>, vector<1x1x4x8x16xbf16>
    %368 = vector.shape_cast %367 : vector<1x1x4x8x16xbf16> to vector<4x8x16xbf16>
    %369 = vector.shape_cast %368 : vector<4x8x16xbf16> to vector<32x16xbf16>
    %c1_458 = arith.constant 1 : index
    %c0_459 = arith.constant 0 : index
    %c16_460 = arith.constant 16 : index
    %370 = vector.load %arg11[%c1_458, %c0_459, %c16_460] : memref<2x32x64xbf16, #tpu.memory_space<vmem>>, vector<1x32x16xbf16>
    %371 = vector.shape_cast %370 : vector<1x32x16xbf16> to vector<32x16xbf16>
    %372 = vector.shape_cast %369 : vector<32x16xbf16> to vector<1x32x16xbf16>
    tpu.vector_store %arg11[%c1_458, %c0_459, %c16_460], %372 {strides = array<i32>} : memref<2x32x64xbf16, #tpu.memory_space<vmem>>, vector<1x32x16xbf16>,
    %c0_461 = arith.constant 0 : index
    %c0_462 = arith.constant 0 : index
    %c2_463 = arith.constant 2 : index
    %c1_464 = arith.constant 1 : index
    %c0_465 = arith.constant 0 : index
    %373 = vector.load %arg3[%c0_461, %c0_462, %c2_463, %c1_464, %c0_465] : memref<1x1x6x10x16xbf16, #tpu.memory_space<vmem>>, vector<1x1x4x8x16xbf16>
    %374 = vector.shape_cast %373 : vector<1x1x4x8x16xbf16> to vector<4x8x16xbf16>
    %375 = vector.shape_cast %374 : vector<4x8x16xbf16> to vector<32x16xbf16>
    %c1_466 = arith.constant 1 : index
    %c0_467 = arith.constant 0 : index
    %c32_468 = arith.constant 32 : index
    %376 = vector.load %arg11[%c1_466, %c0_467, %c32_468] : memref<2x32x64xbf16, #tpu.memory_space<vmem>>, vector<1x32x16xbf16>
    %377 = vector.shape_cast %376 : vector<1x32x16xbf16> to vector<32x16xbf16>
    %378 = vector.shape_cast %375 : vector<32x16xbf16> to vector<1x32x16xbf16>
    tpu.vector_store %arg11[%c1_466, %c0_467, %c32_468], %378 {strides = array<i32>} : memref<2x32x64xbf16, #tpu.memory_space<vmem>>, vector<1x32x16xbf16>,
    %c0_469 = arith.constant 0 : index
    %c0_470 = arith.constant 0 : index
    %c2_471 = arith.constant 2 : index
    %c2_472 = arith.constant 2 : index
    %c0_473 = arith.constant 0 : index
    %379 = vector.load %arg3[%c0_469, %c0_470, %c2_471, %c2_472, %c0_473] : memref<1x1x6x10x16xbf16, #tpu.memory_space<vmem>>, vector<1x1x4x8x16xbf16>
    %380 = vector.shape_cast %379 : vector<1x1x4x8x16xbf16> to vector<4x8x16xbf16>
    %381 = vector.shape_cast %380 : vector<4x8x16xbf16> to vector<32x16xbf16>
    %c1_474 = arith.constant 1 : index
    %c0_475 = arith.constant 0 : index
    %c48_476 = arith.constant 48 : index
    %382 = vector.load %arg11[%c1_474, %c0_475, %c48_476] : memref<2x32x64xbf16, #tpu.memory_space<vmem>>, vector<1x32x16xbf16>
    %383 = vector.shape_cast %382 : vector<1x32x16xbf16> to vector<32x16xbf16>
    %384 = vector.shape_cast %381 : vector<32x16xbf16> to vector<1x32x16xbf16>
    tpu.vector_store %arg11[%c1_474, %c0_475, %c48_476], %384 {strides = array<i32>} : memref<2x32x64xbf16, #tpu.memory_space<vmem>>, vector<1x32x16xbf16>,
    %c1_477 = arith.constant 1 : index
    %c0_478 = arith.constant 0 : index
    %c0_479 = arith.constant 0 : index
    %385 = vector.load %arg10[%c1_477, %c0_478, %c0_479] : memref<2x32x72xbf16, #tpu.memory_space<vmem>>, vector<1x32x72xbf16>
    %386 = vector.shape_cast %385 : vector<1x32x72xbf16> to vector<32x72xbf16>
    %c3 = arith.constant 3 : index
    %c0_480 = arith.constant 0 : index
    %c0_481 = arith.constant 0 : index
    %387 = vector.load %arg6[%c3, %c0_480, %c0_481] : memref<4x72x8xbf16, #tpu.memory_space<vmem>>, vector<1x72x8xbf16>
    %388 = vector.shape_cast %387 : vector<1x72x8xbf16> to vector<72x8xbf16>
    %cst_482 = arith.constant dense<0.000000e+00> : vector<32x8xf32>
    %389 = tpu.matmul %386, %388, %cst_482 {dimension_numbers = #tpu.dot_dimension_numbers<[1], [0], [0], [1], [0, 0, 1, 1], [], []>} : vector<32x72xbf16>, vector<72x8xbf16>, vector<32x8xf32> -> vector<32x8xf32>
    %c1_483 = arith.constant 1 : index
    %c0_484 = arith.constant 0 : index
    %c0_485 = arith.constant 0 : index
    %390 = vector.load %arg11[%c1_483, %c0_484, %c0_485] : memref<2x32x64xbf16, #tpu.memory_space<vmem>>, vector<1x32x64xbf16>
    %391 = vector.shape_cast %390 : vector<1x32x64xbf16> to vector<32x64xbf16>
    %c3_486 = arith.constant 3 : index
    %c0_487 = arith.constant 0 : index
    %c0_488 = arith.constant 0 : index
    %392 = vector.load %arg7[%c3_486, %c0_487, %c0_488] : memref<4x64x8xbf16, #tpu.memory_space<vmem>>, vector<1x64x8xbf16>
    %393 = vector.shape_cast %392 : vector<1x64x8xbf16> to vector<64x8xbf16>
    %cst_489 = arith.constant dense<0.000000e+00> : vector<32x8xf32>
    %394 = tpu.matmul %391, %393, %cst_489 {dimension_numbers = #tpu.dot_dimension_numbers<[1], [0], [0], [1], [0, 0, 1, 1], [], []>} : vector<32x64xbf16>, vector<64x8xbf16>, vector<32x8xf32> -> vector<32x8xf32>
    %395 = vector.broadcast %8 : vector<1x8xf32> to vector<32x8xf32>
    %396 = arith.mulf %389, %395 : vector<32x8xf32>
    %397 = arith.addf %394, %396 : vector<32x8xf32>
    %398 = vector.broadcast %12 : vector<1x8xf32> to vector<32x8xf32>
    %399 = arith.addf %397, %398 : vector<32x8xf32>
    %cst_490 = arith.constant 0.000000e+00 : f32
    %400 = vector.broadcast %cst_490 : f32 to vector<32x8xf32>
    %401 = arith.maximumf %399, %400 : vector<32x8xf32>
    %c0_491 = arith.constant 0 : index
    %c0_492 = arith.constant 0 : index
    %c3_493 = arith.constant 3 : index
    %c0_494 = arith.constant 0 : index
    %c0_495 = arith.constant 0 : index
    %402 = vector.load %arg9[%c0_491, %c0_492, %c3_493, %c0_494, %c0_495] : memref<1x1x4x32x8xf32, #tpu.memory_space<vmem>>, vector<1x1x1x32x8xf32>
    %403 = vector.shape_cast %402 : vector<1x1x1x32x8xf32> to vector<32x8xf32>
    %404 = vector.shape_cast %401 : vector<32x8xf32> to vector<1x1x1x32x8xf32>
    tpu.vector_store %arg9[%c0_491, %c0_492, %c3_493, %c0_494, %c0_495], %404 {strides = array<i32>} : memref<1x1x4x32x8xf32, #tpu.memory_space<vmem>>, vector<1x1x1x32x8xf32>,
    return
  }
  func.func @transform_0(%arg0: i32, %arg1: i32) -> (i32, i32, i32) {
    %c0_i32 = arith.constant 0 : i32
    %c0_i32_0 = arith.constant 0 : i32
    %c0_i32_1 = arith.constant 0 : i32
    return %arg0, %c0_i32, %c0_i32_0 : i32, i32, i32
  }
  func.func @transform_1(%arg0: i32, %arg1: i32) -> (i32, i32, i32, i32, i32) {
    %c0_i32 = arith.constant 0 : i32
    %c0_i32_0 = arith.constant 0 : i32
    %c0_i32_1 = arith.constant 0 : i32
    %c0_i32_2 = arith.constant 0 : i32
    return %arg0, %arg1, %c0_i32, %c0_i32_0, %c0_i32_1 : i32, i32, i32, i32, i32
  }
  func.func @transform_2(%arg0: i32, %arg1: i32) -> (i32, i32, i32, i32, i32) {
    %c0_i32 = arith.constant 0 : i32
    %c0_i32_0 = arith.constant 0 : i32
    %c0_i32_1 = arith.constant 0 : i32
    %c0_i32_2 = arith.constant 0 : i32
    return %arg0, %arg1, %c0_i32, %c0_i32_0, %c0_i32_1 : i32, i32, i32, i32, i32
  }
  func.func @transform_3(%arg0: i32, %arg1: i32) -> (i32, i32) {
    %c0_i32 = arith.constant 0 : i32
    %c0_i32_0 = arith.constant 0 : i32
    %c0_i32_1 = arith.constant 0 : i32
    return %c0_i32, %c0_i32_0 : i32, i32
  }
  func.func @transform_4(%arg0: i32, %arg1: i32) -> (i32, i32, i32) {
    %c0_i32 = arith.constant 0 : i32
    %c0_i32_0 = arith.constant 0 : i32
    %c0_i32_1 = arith.constant 0 : i32
    %c0_i32_2 = arith.constant 0 : i32
    return %c0_i32, %c0_i32_0, %c0_i32_1 : i32, i32, i32
  }
  func.func @transform_5(%arg0: i32, %arg1: i32) -> (i32, i32, i32) {
    %c0_i32 = arith.constant 0 : i32
    %c0_i32_0 = arith.constant 0 : i32
    %c0_i32_1 = arith.constant 0 : i32
    %c0_i32_2 = arith.constant 0 : i32
    return %c0_i32, %c0_i32_0, %c0_i32_1 : i32, i32, i32
  }
  func.func @transform_6(%arg0: i32, %arg1: i32) -> (i32, i32) {
    %c0_i32 = arith.constant 0 : i32
    %c0_i32_0 = arith.constant 0 : i32
    %c0_i32_1 = arith.constant 0 : i32
    return %c0_i32, %c0_i32_0 : i32, i32
  }
  func.func @transform_7(%arg0: i32, %arg1: i32) -> (i32, i32, i32, i32, i32) {
    %c0_i32 = arith.constant 0 : i32
    %c0_i32_0 = arith.constant 0 : i32
    %c0_i32_1 = arith.constant 0 : i32
    %c0_i32_2 = arith.constant 0 : i32
    return %arg0, %arg1, %c0_i32, %c0_i32_0, %c0_i32_1 : i32, i32, i32, i32, i32
  }
}

</mosaic_0001>

<llo_original>
// kernel: gau_forward.1
$region0: #{gau_forward.1}
  #allocation0 [shape = 'u32[]', space=smem, size = 0x4, offset = 0x4, fixed_abs, tag = 'smem constant byte address 0x4 - core index']
  #allocation1 [shape = 'u32[144,128]{1,0:T(1,128)}', space=vmem, size = 0x12000, scoped, tag = 'internal scratch']
  #allocation2 [shape = 'bf16[2,32,72]{2,1,0:T(16,128)(2,1)}', space=vmem, size = 0x4000, scoped, tag = 'scratch operand']
  #allocation3 [shape = 'bf16[2,32,64]{2,1,0:T(16,128)(2,1)}', space=vmem, size = 0x4000, scoped, tag = 'scratch operand']
  %s0 = inlined_call_operand.vmem [shape: f32[2,1,16], index: 0, kind: input, shape index: {}]
  %s1 = inlined_call_operand.vmem [shape: bf16[2,2,6,10,16], index: 1, kind: input, shape index: {}]
  %s2 = inlined_call_operand.vmem [shape: bf16[2,2,6,10,32], index: 2, kind: input, shape index: {}]
  %s3 = inlined_call_operand.vmem [shape: bf16[16,8], index: 3, kind: input, shape index: {}]
  %s4 = inlined_call_operand.vmem [shape: bf16[4,72,8], index: 4, kind: input, shape index: {}]
  %s5 = inlined_call_operand.vmem [shape: bf16[4,64,8], index: 5, kind: input, shape index: {}]
  %s6 = inlined_call_operand.vmem [shape: f32[3,8], index: 6, kind: input, shape index: {}]
  %s7 = inlined_call_operand.vmem [shape: f32[2,2,4,32,8], index: 7, kind: output, shape index: {}]
  %s8 = sld [smem:[#allocation0]]
  $region61: #{gau_forward.1} parent=0
    _
  %s10 = ssub.s32 1, %s8
  %s11 = scalar_select 0, %s10, %s8
  loop: start=0, step=1, limit=6
  $region2: #{gau_forward.1} parent=0 // loop_pre_header
    _
  $region3: #{gau_forward.1} parent=0 // loop_header
    %s13 = sphi 0, %s17
    %p14 = scmp.ge.s32.totalorder %s13, 6
    %s20 = sphi 0, %s32
    %s21 = sphi 0, %s28
    %s22 = sphi 0, %s20
    %s23 = sphi 0, %s21
    %s24 = sphi 0, %s22
    %s25 = sphi 0, %s23
    %s35 = sphi 0, %s37
    %s38 = sphi 0, %s35
    %s39 = sphi 0, %s38
    %s55 = sphi 0, %s39
    %s63 = sphi 0, %s65
    %s66 = sphi 0, %s63
    %s67 = sphi 0, %s66
    %s83 = sphi 0, %s67
    %s91 = sphi 0, %s93
    %s94 = sphi 0, %s91
    %s95 = sphi 0, %s94
    %s111 = sphi 0, %s95
    %s115 = sphi 0, %s115
    %s117 = sphi 0, %s115
    %s118 = sphi 0, %s117
    %s132 = sphi 0, %s118
    %s136 = sphi 0, %s136
    %s138 = sphi 0, %s136
    %s139 = sphi 0, %s138
    %s153 = sphi 0, %s139
    %s157 = sphi 0, %s157
    %s159 = sphi 0, %s157
    %s160 = sphi 0, %s159
    %s174 = sphi 0, %s160
    %s178 = sphi 0, %s178
    %s180 = sphi 0, %s178
    %s181 = sphi 0, %s180
    %s195 = sphi 0, %s181
    %s203 = sphi 0, %s205
    %s206 = sphi 0, %s203
    %s207 = sphi 0, %s206
    %s223 = sphi 0, %s207
  $region4: #{gau_forward.1} parent=0 // loop_header_branch
    %16 = sbr.rel (%p14) target = $region8
  $region5: #{gau_forward.1} parent=0 // loop_body
    %s18 = ssub.s32 %s13, 1
    %s19 = ssub.s32 %s13, 2
    %s26 = sadd.s32 1, %s21
    %p27 = scmp.ge.s32.totalorder %s26, 2
    %s28 = scalar_select %p27, 0, %s26
    %s29 = sadd.s32 1, %s20
    %s30 = scalar_select %p27, %s29, %s20
    %p31 = scmp.ge.s32.totalorder %s30, 2
    %s32 = scalar_select %p31, 0, %s30
    %s33 = ssub.s32 %s20, %s32
    %p34 = scmp.eq.s32.totalorder %s33, 0
    %s36 = sadd.s32 %s35, 1
    %s37 = scalar_select %p34, %s35, %s36
    %p40 = pneg %p34
    %p41 = scmp.eq.s32.totalorder %s13, 3
    %p42 = por %p40, %p41
    %p43 = scmp.ne.s32.totalorder %s35, %s38
    %p44 = scmp.eq.s32.totalorder %s13, 0
    %p45 = por %p43, %p44
    %p46 = scmp.ne.s32.totalorder %s35, %s38
    %p47 = scmp.eq.s32.totalorder %s18, 3
    %p48 = por %p46, %p47
    %p49 = scmp.ne.s32.totalorder %s38, %s39
    %p50 = scmp.eq.s32.totalorder %s18, 0
    %p51 = por %p49, %p50
    %p52 = scmp.ne.s32.totalorder %s38, %s39
    %p53 = scmp.eq.s32.totalorder %s19, 3
    %p54 = por %p52, %p53
    %p56 = scmp.ne.s32.totalorder %s39, %s55
    %p57 = scmp.eq.s32.totalorder %s19, 0
    %p58 = por %p56, %p57
    %s59 = ssub.s32 %s20, %s32
    %s60 = ssub.s32 %s21, %s28
    %s61 = sor.u32 %s59, %s60
    %p62 = scmp.eq.s32.totalorder %s61, 0
    %s64 = sadd.s32 %s63, 1
    %s65 = scalar_select %p62, %s63, %s64
    %p68 = pneg %p62
    %p69 = scmp.eq.s32.totalorder %s13, 3
    %p70 = por %p68, %p69
    %p71 = scmp.ne.s32.totalorder %s63, %s66
    %p72 = scmp.eq.s32.totalorder %s13, 0
    %p73 = por %p71, %p72
    %p74 = scmp.ne.s32.totalorder %s63, %s66
    %p75 = scmp.eq.s32.totalorder %s18, 3
    %p76 = por %p74, %p75
    %p77 = scmp.ne.s32.totalorder %s66, %s67
    %p78 = scmp.eq.s32.totalorder %s18, 0
    %p79 = por %p77, %p78
    %p80 = scmp.ne.s32.totalorder %s66, %s67
    %p81 = scmp.eq.s32.totalorder %s19, 3
    %p82 = por %p80, %p81
    %p84 = scmp.ne.s32.totalorder %s67, %s83
    %p85 = scmp.eq.s32.totalorder %s19, 0
    %p86 = por %p84, %p85
    %s87 = ssub.s32 %s20, %s32
    %s88 = ssub.s32 %s21, %s28
    %s89 = sor.u32 %s87, %s88
    %p90 = scmp.eq.s32.totalorder %s89, 0
    %s92 = sadd.s32 %s91, 1
    %s93 = scalar_select %p90, %s91, %s92
    %p96 = pneg %p90
    %p97 = scmp.eq.s32.totalorder %s13, 3
    %p98 = por %p96, %p97
    %p99 = scmp.ne.s32.totalorder %s91, %s94
    %p100 = scmp.eq.s32.totalorder %s13, 0
    %p101 = por %p99, %p100
    %p102 = scmp.ne.s32.totalorder %s91, %s94
    %p103 = scmp.eq.s32.totalorder %s18, 3
    %p104 = por %p102, %p103
    %p105 = scmp.ne.s32.totalorder %s94, %s95
    %p106 = scmp.eq.s32.totalorder %s18, 0
    %p107 = por %p105, %p106
    %p108 = scmp.ne.s32.totalorder %s94, %s95
    %p109 = scmp.eq.s32.totalorder %s19, 3
    %p110 = por %p108, %p109
    %p112 = scmp.ne.s32.totalorder %s95, %s111
    %p113 = scmp.eq.s32.totalorder %s19, 0
    %p114 = por %p112, %p113
    %s116 = sadd.s32 %s115, 1
    %p119 = scmp.eq.s32.totalorder %s13, 3
    %p120 = scmp.ne.s32.totalorder %s115, %s117
    %p121 = scmp.eq.s32.totalorder %s13, 0
    %p122 = por %p120, %p121
    %p123 = scmp.ne.s32.totalorder %s115, %s117
    %p124 = scmp.eq.s32.totalorder %s18, 3
    %p125 = por %p123, %p124
    %p126 = scmp.ne.s32.totalorder %s117, %s118
    %p127 = scmp.eq.s32.totalorder %s18, 0
    %p128 = por %p126, %p127
    %p129 = scmp.ne.s32.totalorder %s117, %s118
    %p130 = scmp.eq.s32.totalorder %s19, 3
    %p131 = por %p129, %p130
    %p133 = scmp.ne.s32.totalorder %s118, %s132
    %p134 = scmp.eq.s32.totalorder %s19, 0
    %p135 = por %p133, %p134
    %s137 = sadd.s32 %s136, 1
    %p140 = scmp.eq.s32.totalorder %s13, 3
    %p141 = scmp.ne.s32.totalorder %s136, %s138
    %p142 = scmp.eq.s32.totalorder %s13, 0
    %p143 = por %p141, %p142
    %p144 = scmp.ne.s32.totalorder %s136, %s138
    %p145 = scmp.eq.s32.totalorder %s18, 3
    %p146 = por %p144, %p145
    %p147 = scmp.ne.s32.totalorder %s138, %s139
    %p148 = scmp.eq.s32.totalorder %s18, 0
    %p149 = por %p147, %p148
    %p150 = scmp.ne.s32.totalorder %s138, %s139
    %p151 = scmp.eq.s32.totalorder %s19, 3
    %p152 = por %p150, %p151
    %p154 = scmp.ne.s32.totalorder %s139, %s153
    %p155 = scmp.eq.s32.totalorder %s19, 0
    %p156 = por %p154, %p155
    %s158 = sadd.s32 %s157, 1
    %p161 = scmp.eq.s32.totalorder %s13, 3
    %p162 = scmp.ne.s32.totalorder %s157, %s159
    %p163 = scmp.eq.s32.totalorder %s13, 0
    %p164 = por %p162, %p163
    %p165 = scmp.ne.s32.totalorder %s157, %s159
    %p166 = scmp.eq.s32.totalorder %s18, 3
    %p167 = por %p165, %p166
    %p168 = scmp.ne.s32.totalorder %s159, %s160
    %p169 = scmp.eq.s32.totalorder %s18, 0
    %p170 = por %p168, %p169
    %p171 = scmp.ne.s32.totalorder %s159, %s160
    %p172 = scmp.eq.s32.totalorder %s19, 3
    %p173 = por %p171, %p172
    %p175 = scmp.ne.s32.totalorder %s160, %s174
    %p176 = scmp.eq.s32.totalorder %s19, 0
    %p177 = por %p175, %p176
    %s179 = sadd.s32 %s178, 1
    %p182 = scmp.eq.s32.totalorder %s13, 3
    %p183 = scmp.ne.s32.totalorder %s178, %s180
    %p184 = scmp.eq.s32.totalorder %s13, 0
    %p185 = por %p183, %p184
    %p186 = scmp.ne.s32.totalorder %s178, %s180
    %p187 = scmp.eq.s32.totalorder %s18, 3
    %p188 = por %p186, %p187
    %p189 = scmp.ne.s32.totalorder %s180, %s181
    %p190 = scmp.eq.s32.totalorder %s18, 0
    %p191 = por %p189, %p190
    %p192 = scmp.ne.s32.totalorder %s180, %s181
    %p193 = scmp.eq.s32.totalorder %s19, 3
    %p194 = por %p192, %p193
    %p196 = scmp.ne.s32.totalorder %s181, %s195
    %p197 = scmp.eq.s32.totalorder %s19, 0
    %p198 = por %p196, %p197
    %s199 = ssub.s32 %s20, %s32
    %s200 = ssub.s32 %s21, %s28
    %s201 = sor.u32 %s199, %s200
    %p202 = scmp.eq.s32.totalorder %s201, 0
    %s204 = sadd.s32 %s203, 1
    %s205 = scalar_select %p202, %s203, %s204
    %p208 = pneg %p202
    %p209 = scmp.eq.s32.totalorder %s13, 3
    %p210 = por %p208, %p209
    %p211 = scmp.ne.s32.totalorder %s203, %s206
    %p212 = scmp.eq.s32.totalorder %s13, 0
    %p213 = por %p211, %p212
    %p214 = scmp.ne.s32.totalorder %s203, %s206
    %p215 = scmp.eq.s32.totalorder %s18, 3
    %p216 = por %p214, %p215
    %p217 = scmp.ne.s32.totalorder %s206, %s207
    %p218 = scmp.eq.s32.totalorder %s18, 0
    %p219 = por %p217, %p218
    %p220 = scmp.ne.s32.totalorder %s206, %s207
    %p221 = scmp.eq.s32.totalorder %s19, 3
    %p222 = por %p220, %p221
    %p224 = scmp.ne.s32.totalorder %s207, %s223
    %p225 = scmp.eq.s32.totalorder %s19, 0
    %p226 = por %p224, %p225
    %p227 = scmp.le.s32.totalorder 1, %s13
    %p228 = scmp.lt.s32.totalorder %s13, 5
    %p229 = pnand %p227, %p228
    %p230 = pneg %p229
    // Predicated region
    $region9: #{gau_forward.1} parent=5 // pred_check
      _
    $region10: #{gau_forward.1} parent=5 // pred_check_branch
      %232 = sbr.rel (%p229) target = $region12
    $region11: #{gau_forward.1} parent=5 // pred_region
      %s233 = ssub.s32 %s13, 1
      // Predicated region
      $region13: #{gau_forward.1} parent=11 // pred_check
        %p234 = pneg %p128
      $region14: #{gau_forward.1} parent=11 // pred_check_branch
        %236 = sbr.rel (%p234) target = $region16
      $region15: #{gau_forward.1} parent=11 // pred_region
        _
      $region16: #{gau_forward.1} parent=11 // pred_fallthru
        _
      // Predicated region
      $region17: #{gau_forward.1} parent=11 // pred_check
        %p237 = pneg %p149
      $region18: #{gau_forward.1} parent=11 // pred_check_branch
        %239 = sbr.rel (%p237) target = $region20
      $region19: #{gau_forward.1} parent=11 // pred_region
        _
      $region20: #{gau_forward.1} parent=11 // pred_fallthru
        _
      // Predicated region
      $region21: #{gau_forward.1} parent=11 // pred_check
        %p240 = pneg %p170
      $region22: #{gau_forward.1} parent=11 // pred_check_branch
        %242 = sbr.rel (%p240) target = $region24
      $region23: #{gau_forward.1} parent=11 // pred_region
        _
      $region24: #{gau_forward.1} parent=11 // pred_fallthru
        _
      // Predicated region
      $region25: #{gau_forward.1} parent=11 // pred_check
        %p243 = pneg %p191
      $region26: #{gau_forward.1} parent=11 // pred_check_branch
        %245 = sbr.rel (%p243) target = $region28
      $region27: #{gau_forward.1} parent=11 // pred_region
        _
      $region28: #{gau_forward.1} parent=11 // pred_fallthru
        _
    $region12: #{gau_forward.1} parent=5 // pred_fallthru
      _
    %p246 = scmp.lt.s32.totalorder %s13, 4
    // Predicated region
    $region29: #{gau_forward.1} parent=5 // pred_check
      %p247 = pneg %p246
    $region30: #{gau_forward.1} parent=5 // pred_check_branch
      %249 = sbr.rel (%p247) target = $region32
    $region31: #{gau_forward.1} parent=5 // pred_region
      // Predicated region
      $region33: #{gau_forward.1} parent=31 // pred_check
        %p250 = pneg %p45
      $region34: #{gau_forward.1} parent=31 // pred_check_branch
        %252 = sbr.rel (%p250) target = $region36
      $region35: #{gau_forward.1} parent=31 // pred_region
        %p253 = scmp.lt.s32.totalorder %s20, 1
        %s254 = scalar_select %p253, %s20, 1
        %s255 = scalar_lea.vmem %s0, %s254
      $region36: #{gau_forward.1} parent=31 // pred_fallthru
        _
      // Predicated region
      $region37: #{gau_forward.1} parent=31 // pred_check
        %p256 = pneg %p73
      $region38: #{gau_forward.1} parent=31 // pred_check_branch
        %258 = sbr.rel (%p256) target = $region40
      $region39: #{gau_forward.1} parent=31 // pred_region
        %p259 = scmp.lt.s32.totalorder %s20, 1
        %s260 = scalar_select %p259, %s20, 1
        %p261 = scmp.lt.s32.totalorder %s21, 1
        %s262 = scalar_select %p261, %s21, 1
        %s263 = smul.addr %s262, 12
        %s264 = smul.addr %s260, 24
        %s265 = sadd.s32 %s263, %s264
        %s266 = smul.addr %s265, 4
        %s267 = scalar_lea.vmem %s1, %s266
      $region40: #{gau_forward.1} parent=31 // pred_fallthru
        _
      // Predicated region
      $region41: #{gau_forward.1} parent=31 // pred_check
        %p268 = pneg %p101
      $region42: #{gau_forward.1} parent=31 // pred_check_branch
        %270 = sbr.rel (%p268) target = $region44
      $region43: #{gau_forward.1} parent=31 // pred_region
        %p271 = scmp.lt.s32.totalorder %s20, 1
        %s272 = scalar_select %p271, %s20, 1
        %p273 = scmp.lt.s32.totalorder %s21, 1
        %s274 = scalar_select %p273, %s21, 1
        %s275 = smul.addr %s274, 12
        %s276 = smul.addr %s272, 24
        %s277 = sadd.s32 %s275, %s276
        %s278 = smul.addr %s277, 4
        %s279 = scalar_lea.vmem %s2, %s278
      $region44: #{gau_forward.1} parent=31 // pred_fallthru
        _
    $region32: #{gau_forward.1} parent=5 // pred_fallthru
      _
    %p280 = scmp.le.s32.totalorder 1, %s13
    %p281 = scmp.lt.s32.totalorder %s13, 5
    %p282 = pnand %p280, %p281
    %p283 = pneg %p282
    // Predicated region
    $region45: #{gau_forward.1} parent=5 // pred_check
      _
    $region46: #{gau_forward.1} parent=5 // pred_check_branch
      %285 = sbr.rel (%p282) target = $region48
    $region47: #{gau_forward.1} parent=5 // pred_region
      %s286 = ssub.s32 %s13, 1
      %p287 = scmp.lt.s32.totalorder %s22, 1
      %s288 = scalar_select %p287, %s22, 1
      %s289 = scalar_lea.vmem %s0, %s288
      %p290 = pneg %p51
      %p291 = pneg %p48
      %p292 = scmp.lt.s32.totalorder %s22, 1
      %s293 = scalar_select %p292, %s22, 1
      %p294 = scmp.lt.s32.totalorder %s23, 1
      %s295 = scalar_select %p294, %s23, 1
      %s296 = smul.addr %s295, 12
      %s297 = smul.addr %s293, 24
      %s298 = sadd.s32 %s296, %s297
      %s299 = smul.addr %s298, 4
      %s300 = scalar_lea.vmem %s1, %s299
      %p301 = pneg %p79
      %p302 = pneg %p76
      %p303 = scmp.lt.s32.totalorder %s22, 1
      %s304 = scalar_select %p303, %s22, 1
      %p305 = scmp.lt.s32.totalorder %s23, 1
      %s306 = scalar_select %p305, %s23, 1
      %s307 = smul.addr %s306, 12
      %s308 = smul.addr %s304, 24
      %s309 = sadd.s32 %s307, %s308
      %s310 = smul.addr %s309, 4
      %s311 = scalar_lea.vmem %s2, %s310
      %p312 = pneg %p107
      %p313 = pneg %p104
      %p314 = pneg %p128
      %p315 = pneg %p125
      %p316 = pneg %p149
      %p317 = pneg %p146
      %p318 = pneg %p170
      %p319 = pneg %p167
      %p320 = pneg %p191
      %p321 = pneg %p188
      %p322 = pneg %p219
      %p323 = pneg %p216
      %p324 = scmp.lt.s32.totalorder %s22, 1
      %s325 = scalar_select %p324, %s22, 1
      %p326 = scmp.lt.s32.totalorder %s23, 1
      %s327 = scalar_select %p326, %s23, 1
      %s328 = smul.addr %s327, 16
      %s329 = smul.addr %s325, 32
      %s330 = sadd.s32 %s328, %s329
      %s331 = smul.addr %s330, 8
      %s332 = scalar_lea.vmem %s7, %s331
      %p333 = scmp.lt.s32.totalorder %s22, 1
      %s334 = scalar_select %p333, %s22, 1
      %s335 = scalar_lea.vmem %s0, %s334
      %p336 = scmp.lt.s32.totalorder %s22, 1
      %s337 = scalar_select %p336, %s22, 1
      %p338 = scmp.lt.s32.totalorder %s23, 1
      %s339 = scalar_select %p338, %s23, 1
      %s340 = smul.addr %s339, 12
      %s341 = smul.addr %s337, 24
      %s342 = sadd.s32 %s340, %s341
      %s343 = smul.addr %s342, 4
      %s344 = scalar_lea.vmem %s1, %s343
      %p345 = scmp.lt.s32.totalorder %s22, 1
      %s346 = scalar_select %p345, %s22, 1
      %p347 = scmp.lt.s32.totalorder %s23, 1
      %s348 = scalar_select %p347, %s23, 1
      %s349 = smul.addr %s348, 12
      %s350 = smul.addr %s346, 24
      %s351 = sadd.s32 %s349, %s350
      %s352 = smul.addr %s351, 4
      %s353 = scalar_lea.vmem %s2, %s352
      %p354 = scmp.lt.s32.totalorder %s22, 1
      %s355 = scalar_select %p354, %s22, 1
      %p356 = scmp.lt.s32.totalorder %s23, 1
      %s357 = scalar_select %p356, %s23, 1
      %s358 = smul.addr %s357, 16
      %s359 = smul.addr %s355, 32
      %s360 = sadd.s32 %s358, %s359
      %s361 = smul.addr %s360, 8
      %s362 = scalar_lea.vmem %s7, %s361
      %v364 = vld [vmem:[%s335] sm:$0x1]
      %v365 = vpack.c.bf16 %v364, %v364
      %v366 = vld [vmem:[%s3] sm:$0xf]
      %v367 = vld [vmem:[%s3 + $0x4] sm:$0xf]
      %v368 = vld [vmem:[%s6] sm:$0x1]
      %v371 = vunpack.c.l.b16 %v366
      %v372 = vunpack.c.l.b16 %v367
      %v373 = vpack.c.b16 %v372, %v371
      %vm375 = vcmask 130048
      %v377 = vsel %vm375, %v365, 0
      %379 = vmatprep.subr.bf16.mxu0 0
      %380 = vmatpush1.bf16.msra.mxu0 %v373
      %381 = vmatprep.subr.bf16.mxu0 0
      %382 = vmatpush1.bf16.msra.mxu0 0
      %383 = vmatprep.subr.bf16.mxu0 0
      %384 = vmatpush1.bf16.msra.mxu0 0
      %385 = vmatprep.subr.bf16.mxu0 0
      %386 = vmatpush1.bf16.msra.mxu0 0
      %387 = vmatprep.subr.bf16.mxu0 0
      %388 = vmatpush1.bf16.msra.mxu0 0
      %389 = vmatprep.subr.bf16.mxu0 0
      %390 = vmatpush1.bf16.msra.mxu0 0
      %391 = vmatprep.subr.bf16.mxu0 0
      %392 = vmatpush1.bf16.msra.mxu0 0
      %393 = vmatprep.subr.bf16.mxu0 0
      %394 = vmatpush1.bf16.msra.mxu0 0
      %395 = vmatprep.subr.bf16.mxu0 0
      %396 = vmatpush1.bf16.msra.mxu0 0
      %397 = vmatprep.subr.bf16.mxu0 0
      %398 = vmatpush1.bf16.msra.mxu0 0
      %399 = vmatprep.subr.bf16.mxu0 0
      %400 = vmatpush1.bf16.msra.mxu0 0
      %401 = vmatprep.subr.bf16.mxu0 0
      %402 = vmatpush1.bf16.msra.mxu0 0
      %403 = vmatprep.subr.bf16.mxu0 0
      %404 = vmatpush1.bf16.msra.mxu0 0
      %405 = vmatprep.subr.bf16.mxu0 0
      %406 = vmatpush1.bf16.msra.mxu0 0
      %407 = vmatprep.subr.bf16.mxu0 0
      %408 = vmatpush1.bf16.msra.mxu0 0
      %409 = vmatprep.subr.bf16.mxu0 0
      %410 = vmatpush1.bf16.msra.mxu0 0
      %411 = vmatprep.mubr.bf16.mxu0 0
      %412 = vmatmul.mubr.bf16.gmra.mrb[0].mxu0 %v377
      %v413 = vpop.f32.mrb[0].mxu0
      %v414 = vadd.f32 %v368, %v413
      %v415 = vpop.f32.mrb[0].mxu0
      %v416 = vpop.f32.mrb[0].mxu0
      %v417 = vpop.f32.mrb[0].mxu0
      %418 = vdwg.mxu0
      %v419 = vmax.f32 %v414, 0.0
      %v420 = vld [vmem:[%s6 + $0x2] sm:$0x1]
      %v421 = vld [vmem:[%s6 + $0x1] sm:$0x1]
      %v422 = vmul.f32 %v419, %v421
      %v423 = vadd.f32 %v420, %v422
      %v424 = vld [vmem:[%s353] sm:$0xf]
      %v425 = vld [vmem:[%s353 + $0x8] sm:$0xf]
      %v426 = vld [vmem:[%s353 + $0x10] sm:$0xf]
      %v427 = vld [vmem:[%s353 + $0x18] sm:$0xf]
      %v432 = vunpack.c.l.b16 %v424
      %v433 = vunpack.c.l.b16 %v425
      %v434 = vunpack.c.l.b16 %v426
      %v435 = vunpack.c.l.b16 %v427
      %v436 = vpack.c.b16 %v433, %v432
      %v437 = vpack.c.b16 %v435, %v434
      %438 = vrot.lane.b32.xlu0 %v436, 104
      %v439 = vpop.permute.xlu0 %438
      %440 = vrot.lane.b32.xlu0 %v437, 104
      %v441 = vpop.permute.xlu0 %440
      %vm444 = vcmask 64512
      %445 = vst.msk [vmem:[#allocation2] sm:$0xff] %vm444, %v439
      %446 = vst.msk [vmem:[#allocation2 + $0x8] sm:$0xff] %vm444, %v441
      %v447 = vld [vmem:[%s353] sm:$0xf]
      %v448 = vld [vmem:[%s353 + $0x4] sm:$0x1]
      %v449 = vld [vmem:[%s353 + $0x8] sm:$0xf]
      %v450 = vld [vmem:[%s353 + $0xc] sm:$0x1]
      %v451 = vld [vmem:[%s353 + $0x10] sm:$0xf]
      %v452 = vld [vmem:[%s353 + $0x14] sm:$0x1]
      %v453 = vld [vmem:[%s353 + $0x18] sm:$0xf]
      %v454 = vld [vmem:[%s353 + $0x1c] sm:$0x1]
      %vm455 = vsmask.f32 3328
      %vm456 = vsmask.f32 7440
      %vm457 = vmor %vm455, %vm456
      %v459 = vshrl.u32 %v447, 16
      %v461 = vrot.slane %v459, 4
      %v462 = vshll.u32 %v447, 16
      %v464 = vrot.slane %v462, 5
      %v465 = vor.u32 %v461, %v464
      %v466 = vrot.slane %v465, 4
      %v468 = vshll.u32 %v448, 16
      %v470 = vrot.slane %v468, 5
      %v471 = vsel %vm457, %v466, %v470
      %v473 = vshrl.u32 %v449, 16
      %v475 = vrot.slane %v473, 4
      %v476 = vshll.u32 %v449, 16
      %v478 = vrot.slane %v476, 5
      %v479 = vor.u32 %v475, %v478
      %v480 = vrot.slane %v479, 4
      %v482 = vshll.u32 %v450, 16
      %v484 = vrot.slane %v482, 5
      %v485 = vsel %vm457, %v480, %v484
      %v487 = vshrl.u32 %v451, 16
      %v489 = vrot.slane %v487, 4
      %v490 = vshll.u32 %v451, 16
      %v492 = vrot.slane %v490, 5
      %v493 = vor.u32 %v489, %v492
      %v494 = vrot.slane %v493, 4
      %v496 = vshll.u32 %v452, 16
      %v498 = vrot.slane %v496, 5
      %v499 = vsel %vm457, %v494, %v498
      %v501 = vshrl.u32 %v453, 16
      %v503 = vrot.slane %v501, 4
      %v504 = vshll.u32 %v453, 16
      %v506 = vrot.slane %v504, 5
      %v507 = vor.u32 %v503, %v506
      %v508 = vrot.slane %v507, 4
      %v510 = vshll.u32 %v454, 16
      %v512 = vrot.slane %v510, 5
      %v513 = vsel %vm457, %v508, %v512
      %v514 = vunpack.c.l.b16 %v471
      %v515 = vunpack.c.l.b16 %v485
      %v516 = vunpack.c.l.b16 %v499
      %v517 = vunpack.c.l.b16 %v513
      %v518 = vpack.c.b16 %v515, %v514
      %v519 = vpack.c.b16 %v517, %v516
      %520 = vrot.lane.b32.xlu0 %v518, 120
      %v521 = vpop.permute.xlu0 %520
      %522 = vrot.lane.b32.xlu0 %v519, 120
      %v523 = vpop.permute.xlu0 %522
      %vm526 = vcmask 130112
      %527 = vst.msk [vmem:[#allocation2] sm:$0xff] %vm526, %v521
      %528 = vst.msk [vmem:[#allocation2 + $0x8] sm:$0xff] %vm526, %v523
      %v529 = vld [vmem:[%s353] sm:$0xf]
      %v530 = vld [vmem:[%s353 + $0x4] sm:$0x1]
      %v531 = vld [vmem:[%s353 + $0x8] sm:$0xf]
      %v532 = vld [vmem:[%s353 + $0xc] sm:$0x1]
      %v533 = vld [vmem:[%s353 + $0x10] sm:$0xf]
      %v534 = vld [vmem:[%s353 + $0x14] sm:$0x1]
      %v535 = vld [vmem:[%s353 + $0x18] sm:$0xf]
      %v536 = vld [vmem:[%s353 + $0x1c] sm:$0x1]
      %v538 = vshrl.u32 %v529, 16
      %v540 = vrot.slane %v538, 4
      %v541 = vshll.u32 %v529, 16
      %v543 = vrot.slane %v541, 5
      %v544 = vor.u32 %v540, %v543
      %v545 = vrot.slane %v544, 4
      %v547 = vshll.u32 %v530, 16
      %v549 = vrot.slane %v547, 5
      %v550 = vsel %vm457, %v545, %v549
      %v552 = vshrl.u32 %v531, 16
      %v554 = vrot.slane %v552, 4
      %v555 = vshll.u32 %v531, 16
      %v557 = vrot.slane %v555, 5
      %v558 = vor.u32 %v554, %v557
      %v559 = vrot.slane %v558, 4
      %v561 = vshll.u32 %v532, 16
      %v563 = vrot.slane %v561, 5
      %v564 = vsel %vm457, %v559, %v563
      %v566 = vshrl.u32 %v533, 16
      %v568 = vrot.slane %v566, 4
      %v569 = vshll.u32 %v533, 16
      %v571 = vrot.slane %v569, 5
      %v572 = vor.u32 %v568, %v571
      %v573 = vrot.slane %v572, 4
      %v575 = vshll.u32 %v534, 16
      %v577 = vrot.slane %v575, 5
      %v578 = vsel %vm457, %v573, %v577
      %v580 = vshrl.u32 %v535, 16
      %v582 = vrot.slane %v580, 4
      %v583 = vshll.u32 %v535, 16
      %v585 = vrot.slane %v583, 5
      %v586 = vor.u32 %v582, %v585
      %v587 = vrot.slane %v586, 4
      %v589 = vshll.u32 %v536, 16
      %v591 = vrot.slane %v589, 5
      %v592 = vsel %vm457, %v587, %v591
      %v593 = vunpack.c.l.b16 %v550
      %v594 = vunpack.c.l.b16 %v564
      %v595 = vunpack.c.l.b16 %v578
      %v596 = vunpack.c.l.b16 %v592
      %v597 = vpack.c.b16 %v594, %v593
      %v598 = vpack.c.b16 %v596, %v595
      %599 = vrot.lane.b32.xlu0 %v597, 120
      %v600 = vpop.permute.xlu0 %599
      %601 = vrot.lane.b32.xlu0 %v598, 120
      %v602 = vpop.permute.xlu0 %601
      %vm605 = vcmask 195712
      %606 = vst.msk [vmem:[#allocation2] sm:$0xff] %vm605, %v600
      %607 = vst.msk [vmem:[#allocation2 + $0x8] sm:$0xff] %vm605, %v602
      %s608 = scalar_lea.vmem %s353, 8
      %v609 = vld [vmem:[%s608] sm:$0xf]
      %v610 = vld [vmem:[%s608 + $0x8] sm:$0xf]
      %v611 = vld [vmem:[%s608 + $0x10] sm:$0xf]
      %v612 = vld [vmem:[%s608 + $0x18] sm:$0xf]
      %v617 = vunpack.c.l.b16 %v609
      %v618 = vunpack.c.l.b16 %v610
      %v619 = vunpack.c.l.b16 %v611
      %v620 = vunpack.c.l.b16 %v612
      %v621 = vpack.c.b16 %v618, %v617
      %v622 = vpack.c.b16 %v620, %v619
      %623 = vrot.lane.b32.xlu0 %v621, 16
      %v624 = vpop.permute.xlu0 %623
      %625 = vrot.lane.b32.xlu0 %v622, 16
      %v626 = vpop.permute.xlu0 %625
      %vm629 = vcmask 261312
      %630 = vst.msk [vmem:[#allocation2] sm:$0xff] %vm629, %v624
      %631 = vst.msk [vmem:[#allocation2 + $0x8] sm:$0xff] %vm629, %v626
      %v632 = vld [vmem:[%s608] sm:$0xf]
      %v633 = vld [vmem:[%s608 + $0x4] sm:$0x1]
      %v634 = vld [vmem:[%s608 + $0x8] sm:$0xf]
      %v635 = vld [vmem:[%s608 + $0xc] sm:$0x1]
      %v636 = vld [vmem:[%s608 + $0x10] sm:$0xf]
      %v637 = vld [vmem:[%s608 + $0x14] sm:$0x1]
      %v638 = vld [vmem:[%s608 + $0x18] sm:$0xf]
      %v639 = vld [vmem:[%s608 + $0x1c] sm:$0x1]
      %v641 = vshrl.u32 %v632, 16
      %v643 = vrot.slane %v641, 4
      %v644 = vshll.u32 %v632, 16
      %v646 = vrot.slane %v644, 5
      %v647 = vor.u32 %v643, %v646
      %v648 = vrot.slane %v647, 4
      %v650 = vshll.u32 %v633, 16
      %v652 = vrot.slane %v650, 5
      %v653 = vsel %vm457, %v648, %v652
      %v655 = vshrl.u32 %v634, 16
      %v657 = vrot.slane %v655, 4
      %v658 = vshll.u32 %v634, 16
      %v660 = vrot.slane %v658, 5
      %v661 = vor.u32 %v657, %v660
      %v662 = vrot.slane %v661, 4
      %v664 = vshll.u32 %v635, 16
      %v666 = vrot.slane %v664, 5
      %v667 = vsel %vm457, %v662, %v666
      %v669 = vshrl.u32 %v636, 16
      %v671 = vrot.slane %v669, 4
      %v672 = vshll.u32 %v636, 16
      %v674 = vrot.slane %v672, 5
      %v675 = vor.u32 %v671, %v674
      %v676 = vrot.slane %v675, 4
      %v678 = vshll.u32 %v637, 16
      %v680 = vrot.slane %v678, 5
      %v681 = vsel %vm457, %v676, %v680
      %v683 = vshrl.u32 %v638, 16
      %v685 = vrot.slane %v683, 4
      %v686 = vshll.u32 %v638, 16
      %v688 = vrot.slane %v686, 5
      %v689 = vor.u32 %v685, %v688
      %v690 = vrot.slane %v689, 4
      %v692 = vshll.u32 %v639, 16
      %v694 = vrot.slane %v692, 5
      %v695 = vsel %vm457, %v690, %v694
      %v696 = vunpack.c.l.b16 %v653
      %v697 = vunpack.c.l.b16 %v667
      %v698 = vunpack.c.l.b16 %v681
      %v699 = vunpack.c.l.b16 %v695
      %v700 = vpack.c.b16 %v697, %v696
      %v701 = vpack.c.b16 %v699, %v698
      %702 = vrot.lane.b32.xlu0 %v700, 32
      %v703 = vpop.permute.xlu0 %702
      %704 = vrot.lane.b32.xlu0 %v701, 32
      %v705 = vpop.permute.xlu0 %704
      %vm708 = vcmask 326912
      %709 = vst.msk [vmem:[#allocation2] sm:$0xff] %vm708, %v703
      %710 = vst.msk [vmem:[#allocation2 + $0x8] sm:$0xff] %vm708, %v705
      %v711 = vld [vmem:[%s608] sm:$0xf]
      %v712 = vld [vmem:[%s608 + $0x4] sm:$0x1]
      %v713 = vld [vmem:[%s608 + $0x8] sm:$0xf]
      %v714 = vld [vmem:[%s608 + $0xc] sm:$0x1]
      %v715 = vld [vmem:[%s608 + $0x10] sm:$0xf]
      %v716 = vld [vmem:[%s608 + $0x14] sm:$0x1]
      %v717 = vld [vmem:[%s608 + $0x18] sm:$0xf]
      %v718 = vld [vmem:[%s608 + $0x1c] sm:$0x1]
      %v720 = vshrl.u32 %v711, 16
      %v722 = vrot.slane %v720, 4
      %v723 = vshll.u32 %v711, 16
      %v725 = vrot.slane %v723, 5
      %v726 = vor.u32 %v722, %v725
      %v727 = vrot.slane %v726, 4
      %v729 = vshll.u32 %v712, 16
      %v731 = vrot.slane %v729, 5
      %v732 = vsel %vm457, %v727, %v731
      %v734 = vshrl.u32 %v713, 16
      %v736 = vrot.slane %v734, 4
      %v737 = vshll.u32 %v713, 16
      %v739 = vrot.slane %v737, 5
      %v740 = vor.u32 %v736, %v739
      %v741 = vrot.slane %v740, 4
      %v743 = vshll.u32 %v714, 16
      %v745 = vrot.slane %v743, 5
      %v746 = vsel %vm457, %v741, %v745
      %v748 = vshrl.u32 %v715, 16
      %v750 = vrot.slane %v748, 4
      %v751 = vshll.u32 %v715, 16
      %v753 = vrot.slane %v751, 5
      %v754 = vor.u32 %v750, %v753
      %v755 = vrot.slane %v754, 4
      %v757 = vshll.u32 %v716, 16
      %v759 = vrot.slane %v757, 5
      %v760 = vsel %vm457, %v755, %v759
      %v762 = vshrl.u32 %v717, 16
      %v764 = vrot.slane %v762, 4
      %v765 = vshll.u32 %v717, 16
      %v767 = vrot.slane %v765, 5
      %v768 = vor.u32 %v764, %v767
      %v769 = vrot.slane %v768, 4
      %v771 = vshll.u32 %v718, 16
      %v773 = vrot.slane %v771, 5
      %v774 = vsel %vm457, %v769, %v773
      %v775 = vunpack.c.l.b16 %v732
      %v776 = vunpack.c.l.b16 %v746
      %v777 = vunpack.c.l.b16 %v760
      %v778 = vunpack.c.l.b16 %v774
      %v779 = vpack.c.b16 %v776, %v775
      %v780 = vpack.c.b16 %v778, %v777
      %781 = vrot.lane.b32.xlu0 %v779, 32
      %v782 = vpop.permute.xlu0 %781
      %783 = vrot.lane.b32.xlu0 %v780, 32
      %v784 = vpop.permute.xlu0 %783
      %vm787 = vcmask 392512
      %788 = vst.msk [vmem:[#allocation2] sm:$0xff] %vm787, %v782
      %789 = vst.msk [vmem:[#allocation2 + $0x8] sm:$0xff] %vm787, %v784
      %v790 = vld [vmem:[%s608] sm:$0xf]
      %v791 = vld [vmem:[%s608 + $0x8] sm:$0xf]
      %v792 = vld [vmem:[%s608 + $0x10] sm:$0xf]
      %v793 = vld [vmem:[%s608 + $0x18] sm:$0xf]
      %v798 = vunpack.c.l.b16 %v790
      %v799 = vunpack.c.l.b16 %v791
      %v800 = vunpack.c.l.b16 %v792
      %v801 = vunpack.c.l.b16 %v793
      %v802 = vpack.c.b16 %v799, %v798
      %v803 = vpack.c.b16 %v801, %v800
      %804 = vrot.lane.b32.xlu0 %v802, 24
      %v805 = vpop.permute.xlu0 %804
      %806 = vrot.lane.b32.xlu0 %v803, 24
      %v807 = vpop.permute.xlu0 %806
      %vm810 = vcmask 458112
      %811 = vst.msk [vmem:[#allocation2] sm:$0xff] %vm810, %v805
      %812 = vst.msk [vmem:[#allocation2 + $0x8] sm:$0xff] %vm810, %v807
      %v813 = vld [vmem:[%s608] sm:$0xf]
      %v814 = vld [vmem:[%s608 + $0x4] sm:$0x1]
      %v815 = vld [vmem:[%s608 + $0x8] sm:$0xf]
      %v816 = vld [vmem:[%s608 + $0xc] sm:$0x1]
      %v817 = vld [vmem:[%s608 + $0x10] sm:$0xf]
      %v818 = vld [vmem:[%s608 + $0x14] sm:$0x1]
      %v819 = vld [vmem:[%s608 + $0x18] sm:$0xf]
      %v820 = vld [vmem:[%s608 + $0x1c] sm:$0x1]
      %v822 = vshrl.u32 %v813, 16
      %v824 = vrot.slane %v822, 4
      %v825 = vshll.u32 %v813, 16
      %v827 = vrot.slane %v825, 5
      %v828 = vor.u32 %v824, %v827
      %v829 = vrot.slane %v828, 4
      %v831 = vshll.u32 %v814, 16
      %v833 = vrot.slane %v831, 5
      %v834 = vsel %vm457, %v829, %v833
      %v836 = vshrl.u32 %v815, 16
      %v838 = vrot.slane %v836, 4
      %v839 = vshll.u32 %v815, 16
      %v841 = vrot.slane %v839, 5
      %v842 = vor.u32 %v838, %v841
      %v843 = vrot.slane %v842, 4
      %v845 = vshll.u32 %v816, 16
      %v847 = vrot.slane %v845, 5
      %v848 = vsel %vm457, %v843, %v847
      %v850 = vshrl.u32 %v817, 16
      %v852 = vrot.slane %v850, 4
      %v853 = vshll.u32 %v817, 16
      %v855 = vrot.slane %v853, 5
      %v856 = vor.u32 %v852, %v855
      %v857 = vrot.slane %v856, 4
      %v859 = vshll.u32 %v818, 16
      %v861 = vrot.slane %v859, 5
      %v862 = vsel %vm457, %v857, %v861
      %v864 = vshrl.u32 %v819, 16
      %v866 = vrot.slane %v864, 4
      %v867 = vshll.u32 %v819, 16
      %v869 = vrot.slane %v867, 5
      %v870 = vor.u32 %v866, %v869
      %v871 = vrot.slane %v870, 4
      %v873 = vshll.u32 %v820, 16
      %v875 = vrot.slane %v873, 5
      %v876 = vsel %vm457, %v871, %v875
      %v877 = vunpack.c.l.b16 %v834
      %v878 = vunpack.c.l.b16 %v848
      %v879 = vunpack.c.l.b16 %v862
      %v880 = vunpack.c.l.b16 %v876
      %v881 = vpack.c.b16 %v878, %v877
      %v882 = vpack.c.b16 %v880, %v879
      %883 = vrot.lane.b32.xlu0 %v881, 40
      %v884 = vpop.permute.xlu0 %883
      %885 = vrot.lane.b32.xlu0 %v882, 40
      %v886 = vpop.permute.xlu0 %885
      %vm889 = vcmask 523712
      %890 = vst.msk [vmem:[#allocation2] sm:$0xff] %vm889, %v884
      %891 = vst.msk [vmem:[#allocation2 + $0x8] sm:$0xff] %vm889, %v886
      %v892 = vld [vmem:[%s608] sm:$0xf]
      %v893 = vld [vmem:[%s608 + $0x4] sm:$0x1]
      %v894 = vld [vmem:[%s608 + $0x8] sm:$0xf]
      %v895 = vld [vmem:[%s608 + $0xc] sm:$0x1]
      %v896 = vld [vmem:[%s608 + $0x10] sm:$0xf]
      %v897 = vld [vmem:[%s608 + $0x14] sm:$0x1]
      %v898 = vld [vmem:[%s608 + $0x18] sm:$0xf]
      %v899 = vld [vmem:[%s608 + $0x1c] sm:$0x1]
      %v901 = vshrl.u32 %v892, 16
      %v903 = vrot.slane %v901, 4
      %v904 = vshll.u32 %v892, 16
      %v906 = vrot.slane %v904, 5
      %v907 = vor.u32 %v903, %v906
      %v908 = vrot.slane %v907, 4
      %v910 = vshll.u32 %v893, 16
      %v912 = vrot.slane %v910, 5
      %v913 = vsel %vm457, %v908, %v912
      %v915 = vshrl.u32 %v894, 16
      %v917 = vrot.slane %v915, 4
      %v918 = vshll.u32 %v894, 16
      %v920 = vrot.slane %v918, 5
      %v921 = vor.u32 %v917, %v920
      %v922 = vrot.slane %v921, 4
      %v924 = vshll.u32 %v895, 16
      %v926 = vrot.slane %v924, 5
      %v927 = vsel %vm457, %v922, %v926
      %v929 = vshrl.u32 %v896, 16
      %v931 = vrot.slane %v929, 4
      %v932 = vshll.u32 %v896, 16
      %v934 = vrot.slane %v932, 5
      %v935 = vor.u32 %v931, %v934
      %v936 = vrot.slane %v935, 4
      %v938 = vshll.u32 %v897, 16
      %v940 = vrot.slane %v938, 5
      %v941 = vsel %vm457, %v936, %v940
      %v943 = vshrl.u32 %v898, 16
      %v945 = vrot.slane %v943, 4
      %v946 = vshll.u32 %v898, 16
      %v948 = vrot.slane %v946, 5
      %v949 = vor.u32 %v945, %v948
      %v950 = vrot.slane %v949, 4
      %v952 = vshll.u32 %v899, 16
      %v954 = vrot.slane %v952, 5
      %v955 = vsel %vm457, %v950, %v954
      %v956 = vunpack.c.l.b16 %v913
      %v957 = vunpack.c.l.b16 %v927
      %v958 = vunpack.c.l.b16 %v941
      %v959 = vunpack.c.l.b16 %v955
      %v960 = vpack.c.b16 %v957, %v956
      %v961 = vpack.c.b16 %v959, %v958
      %962 = vrot.lane.b32.xlu0 %v960, 40
      %v963 = vpop.permute.xlu0 %962
      %964 = vrot.lane.b32.xlu0 %v961, 40
      %v965 = vpop.permute.xlu0 %964
      %vm968 = vcmask 589312
      %969 = vst.msk [vmem:[#allocation2] sm:$0xff] %vm968, %v963
      %970 = vst.msk [vmem:[#allocation2 + $0x8] sm:$0xff] %vm968, %v965
      %v971 = vld [vmem:[%s344] sm:$0xf]
      %v972 = vld [vmem:[%s344 + $0x8] sm:$0xf]
      %v973 = vld [vmem:[%s344 + $0x10] sm:$0xf]
      %v974 = vld [vmem:[%s344 + $0x18] sm:$0xf]
      %v979 = vunpack.c.l.b16 %v971
      %v980 = vunpack.c.l.b16 %v972
      %v981 = vunpack.c.l.b16 %v973
      %v982 = vunpack.c.l.b16 %v974
      %v983 = vpack.c.b16 %v980, %v979
      %v984 = vpack.c.b16 %v982, %v981
      %987 = vst.msk [vmem:[#allocation3] sm:$0xff] %vm375, %v983
      %988 = vst.msk [vmem:[#allocation3 + $0x8] sm:$0xff] %vm375, %v984
      %v989 = vld [vmem:[%s344] sm:$0xf]
      %v990 = vld [vmem:[%s344 + $0x4] sm:$0x1]
      %v991 = vld [vmem:[%s344 + $0x8] sm:$0xf]
      %v992 = vld [vmem:[%s344 + $0xc] sm:$0x1]
      %v993 = vld [vmem:[%s344 + $0x10] sm:$0xf]
      %v994 = vld [vmem:[%s344 + $0x14] sm:$0x1]
      %v995 = vld [vmem:[%s344 + $0x18] sm:$0xf]
      %v996 = vld [vmem:[%s344 + $0x1c] sm:$0x1]
      %v998 = vshrl.u32 %v989, 16
      %v1000 = vrot.slane %v998, 4
      %v1001 = vshll.u32 %v989, 16
      %v1003 = vrot.slane %v1001, 5
      %v1004 = vor.u32 %v1000, %v1003
      %v1005 = vrot.slane %v1004, 4
      %v1007 = vshll.u32 %v990, 16
      %v1009 = vrot.slane %v1007, 5
      %v1010 = vsel %vm457, %v1005, %v1009
      %v1012 = vshrl.u32 %v991, 16
      %v1014 = vrot.slane %v1012, 4
      %v1015 = vshll.u32 %v991, 16
      %v1017 = vrot.slane %v1015, 5
      %v1018 = vor.u32 %v1014, %v1017
      %v1019 = vrot.slane %v1018, 4
      %v1021 = vshll.u32 %v992, 16
      %v1023 = vrot.slane %v1021, 5
      %v1024 = vsel %vm457, %v1019, %v1023
      %v1026 = vshrl.u32 %v993, 16
      %v1028 = vrot.slane %v1026, 4
      %v1029 = vshll.u32 %v993, 16
      %v1031 = vrot.slane %v1029, 5
      %v1032 = vor.u32 %v1028, %v1031
      %v1033 = vrot.slane %v1032, 4
      %v1035 = vshll.u32 %v994, 16
      %v1037 = vrot.slane %v1035, 5
      %v1038 = vsel %vm457, %v1033, %v1037
      %v1040 = vshrl.u32 %v995, 16
      %v1042 = vrot.slane %v1040, 4
      %v1043 = vshll.u32 %v995, 16
      %v1045 = vrot.slane %v1043, 5
      %v1046 = vor.u32 %v1042, %v1045
      %v1047 = vrot.slane %v1046, 4
      %v1049 = vshll.u32 %v996, 16
      %v1051 = vrot.slane %v1049, 5
      %v1052 = vsel %vm457, %v1047, %v1051
      %v1053 = vunpack.c.l.b16 %v1010
      %v1054 = vunpack.c.l.b16 %v1024
      %v1055 = vunpack.c.l.b16 %v1038
      %v1056 = vunpack.c.l.b16 %v1052
      %v1057 = vpack.c.b16 %v1054, %v1053
      %v1058 = vpack.c.b16 %v1056, %v1055
      %1059 = vrot.lane.b32.xlu0 %v1057, 16
      %v1060 = vpop.permute.xlu0 %1059
      %1061 = vrot.lane.b32.xlu0 %v1058, 16
      %v1062 = vpop.permute.xlu0 %1061
      %vm1065 = vcmask 261248
      %1066 = vst.msk [vmem:[#allocation3] sm:$0xff] %vm1065, %v1060
      %1067 = vst.msk [vmem:[#allocation3 + $0x8] sm:$0xff] %vm1065, %v1062
      %s1068 = scalar_lea.vmem %s344, 8
      %v1069 = vld [vmem:[%s1068] sm:$0xf]
      %v1070 = vld [vmem:[%s1068 + $0x8] sm:$0xf]
      %v1071 = vld [vmem:[%s1068 + $0x10] sm:$0xf]
      %v1072 = vld [vmem:[%s1068 + $0x18] sm:$0xf]
      %v1077 = vunpack.c.l.b16 %v1069
      %v1078 = vunpack.c.l.b16 %v1070
      %v1079 = vunpack.c.l.b16 %v1071
      %v1080 = vunpack.c.l.b16 %v1072
      %v1081 = vpack.c.b16 %v1078, %v1077
      %v1082 = vpack.c.b16 %v1080, %v1079
      %1083 = vrot.lane.b32.xlu0 %v1081, 32
      %v1084 = vpop.permute.xlu0 %1083
      %1085 = vrot.lane.b32.xlu0 %v1082, 32
      %v1086 = vpop.permute.xlu0 %1085
      %vm1089 = vcmask 392448
      %1090 = vst.msk [vmem:[#allocation3] sm:$0xff] %vm1089, %v1084
      %1091 = vst.msk [vmem:[#allocation3 + $0x8] sm:$0xff] %vm1089, %v1086
      %v1092 = vld [vmem:[%s1068] sm:$0xf]
      %v1093 = vld [vmem:[%s1068 + $0x4] sm:$0x1]
      %v1094 = vld [vmem:[%s1068 + $0x8] sm:$0xf]
      %v1095 = vld [vmem:[%s1068 + $0xc] sm:$0x1]
      %v1096 = vld [vmem:[%s1068 + $0x10] sm:$0xf]
      %v1097 = vld [vmem:[%s1068 + $0x14] sm:$0x1]
      %v1098 = vld [vmem:[%s1068 + $0x18] sm:$0xf]
      %v1099 = vld [vmem:[%s1068 + $0x1c] sm:$0x1]
      %v1101 = vshrl.u32 %v1092, 16
      %v1103 = vrot.slane %v1101, 4
      %v1104 = vshll.u32 %v1092, 16
      %v1106 = vrot.slane %v1104, 5
      %v1107 = vor.u32 %v1103, %v1106
      %v1108 = vrot.slane %v1107, 4
      %v1110 = vshll.u32 %v1093, 16
      %v1112 = vrot.slane %v1110, 5
      %v1113 = vsel %vm457, %v1108, %v1112
      %v1115 = vshrl.u32 %v1094, 16
      %v1117 = vrot.slane %v1115, 4
      %v1118 = vshll.u32 %v1094, 16
      %v1120 = vrot.slane %v1118, 5
      %v1121 = vor.u32 %v1117, %v1120
      %v1122 = vrot.slane %v1121, 4
      %v1124 = vshll.u32 %v1095, 16
      %v1126 = vrot.slane %v1124, 5
      %v1127 = vsel %vm457, %v1122, %v1126
      %v1129 = vshrl.u32 %v1096, 16
      %v1131 = vrot.slane %v1129, 4
      %v1132 = vshll.u32 %v1096, 16
      %v1134 = vrot.slane %v1132, 5
      %v1135 = vor.u32 %v1131, %v1134
      %v1136 = vrot.slane %v1135, 4
      %v1138 = vshll.u32 %v1097, 16
      %v1140 = vrot.slane %v1138, 5
      %v1141 = vsel %vm457, %v1136, %v1140
      %v1143 = vshrl.u32 %v1098, 16
      %v1145 = vrot.slane %v1143, 4
      %v1146 = vshll.u32 %v1098, 16
      %v1148 = vrot.slane %v1146, 5
      %v1149 = vor.u32 %v1145, %v1148
      %v1150 = vrot.slane %v1149, 4
      %v1152 = vshll.u32 %v1099, 16
      %v1154 = vrot.slane %v1152, 5
      %v1155 = vsel %vm457, %v1150, %v1154
      %v1156 = vunpack.c.l.b16 %v1113
      %v1157 = vunpack.c.l.b16 %v1127
      %v1158 = vunpack.c.l.b16 %v1141
      %v1159 = vunpack.c.l.b16 %v1155
      %v1160 = vpack.c.b16 %v1157, %v1156
      %v1161 = vpack.c.b16 %v1159, %v1158
      %1162 = vrot.lane.b32.xlu0 %v1160, 48
      %v1163 = vpop.permute.xlu0 %1162
      %1164 = vrot.lane.b32.xlu0 %v1161, 48
      %v1165 = vpop.permute.xlu0 %1164
      %vm1168 = vcmask 523648
      %1169 = vst.msk [vmem:[#allocation3] sm:$0xff] %vm1168, %v1163
      %1170 = vst.msk [vmem:[#allocation3 + $0x8] sm:$0xff] %vm1168, %v1165
      %v1171 = vld [vmem:[#allocation2] sm:$0xff]
      %v1172 = vld [vmem:[#allocation2 + $0x8] sm:$0xff]
      %v1173 = vld [vmem:[%s4] sm:$0xf]
      %v1174 = vld [vmem:[%s4 + $0x4] sm:$0xf]
      %v1175 = vld [vmem:[%s4 + $0x8] sm:$0xf]
      %v1176 = vld [vmem:[%s4 + $0xc] sm:$0xf]
      %v1177 = vld [vmem:[%s4 + $0x10] sm:$0xf]
      %v1178 = vld [vmem:[%s4 + $0x14] sm:$0xf]
      %v1179 = vld [vmem:[%s4 + $0x18] sm:$0xf]
      %v1180 = vld [vmem:[%s4 + $0x1c] sm:$0xf]
      %v1181 = vld [vmem:[%s4 + $0x20] sm:$0xf]
      %v1191 = vunpack.c.l.b16 %v1173
      %v1192 = vunpack.c.l.b16 %v1174
      %v1193 = vunpack.c.l.b16 %v1175
      %v1194 = vunpack.c.l.b16 %v1176
      %v1195 = vunpack.c.l.b16 %v1177
      %v1196 = vunpack.c.l.b16 %v1178
      %v1197 = vunpack.c.l.b16 %v1179
      %v1198 = vunpack.c.l.b16 %v1180
      %v1199 = vunpack.c.l.b16 %v1181
      %v1200 = vpack.c.b16 %v1192, %v1191
      %v1201 = vpack.c.b16 %v1194, %v1193
      %v1202 = vpack.c.b16 %v1196, %v1195
      %v1203 = vpack.c.b16 %v1198, %v1197
      %v1204 = vpack.c.b16 %v1199, %v1199
      %vm1209 = vcmask 588800
      %v1211 = vsel %vm1209, %v1171, 0
      %v1214 = vsel %vm1209, %v1172, 0
      %vm1216 = vcmask 1043456
      %v1218 = vsel %vm1216, %v1204, 0
      %1220 = vmatprep.subr.bf16.mxu0 0
      %1221 = vmatpush1.bf16.msra.mxu0 %v1200
      %1222 = vmatprep.subr.bf16.mxu0 0
      %1223 = vmatpush1.bf16.msra.mxu0 %v1201
      %1224 = vmatprep.subr.bf16.mxu0 0
      %1225 = vmatpush1.bf16.msra.mxu0 %v1202
      %1226 = vmatprep.subr.bf16.mxu0 0
      %1227 = vmatpush1.bf16.msra.mxu0 %v1203
      %1228 = vmatprep.subr.bf16.mxu0 0
      %1229 = vmatpush1.bf16.msra.mxu0 %v1218
      %1230 = vmatprep.subr.bf16.mxu0 0
      %1231 = vmatpush1.bf16.msra.mxu0 0
      %1232 = vmatprep.subr.bf16.mxu0 0
      %1233 = vmatpush1.bf16.msra.mxu0 0
      %1234 = vmatprep.subr.bf16.mxu0 0
      %1235 = vmatpush1.bf16.msra.mxu0 0
      %1236 = vmatprep.subr.bf16.mxu0 0
      %1237 = vmatpush1.bf16.msra.mxu0 0
      %1238 = vmatprep.subr.bf16.mxu0 0
      %1239 = vmatpush1.bf16.msra.mxu0 0
      %1240 = vmatprep.subr.bf16.mxu0 0
      %1241 = vmatpush1.bf16.msra.mxu0 0
      %1242 = vmatprep.subr.bf16.mxu0 0
      %1243 = vmatpush1.bf16.msra.mxu0 0
      %1244 = vmatprep.subr.bf16.mxu0 0
      %1245 = vmatpush1.bf16.msra.mxu0 0
      %1246 = vmatprep.subr.bf16.mxu0 0
      %1247 = vmatpush1.bf16.msra.mxu0 0
      %1248 = vmatprep.subr.bf16.mxu0 0
      %1249 = vmatpush1.bf16.msra.mxu0 0
      %1250 = vmatprep.subr.bf16.mxu0 0
      %1251 = vmatpush1.bf16.msra.mxu0 0
      %1252 = vmatprep.mubr.bf16.mxu0 0
      %1253 = vmatmul.mubr.bf16.gmra.mrb[0].mxu0 %v1211
      %v1254 = vpop.f32.mrb[0].mxu0
      %v1255 = vadd.f32 0.0, %v1254
      %v1256 = vpop.f32.mrb[0].mxu0
      %v1257 = vpop.f32.mrb[0].mxu0
      %v1258 = vadd.f32 0.0, %v1257
      %v1259 = vpop.f32.mrb[0].mxu0
      %1260 = vmatprep.mubr.bf16.mxu0 0
      %1261 = vmatmul.mubr.bf16.gmra.mrb[0].mxu0 %v1214
      %v1262 = vpop.f32.mrb[0].mxu0
      %v1263 = vadd.f32 0.0, %v1262
      %v1264 = vpop.f32.mrb[0].mxu0
      %v1265 = vpop.f32.mrb[0].mxu0
      %v1266 = vadd.f32 0.0, %v1265
      %v1267 = vpop.f32.mrb[0].mxu0
      %1268 = vdwg.mxu0
      %v1269 = vld [vmem:[#allocation3] sm:$0xff]
      %v1270 = vld [vmem:[#allocation3 + $0x8] sm:$0xff]
      %v1271 = vld [vmem:[%s5] sm:$0xf]
      %v1272 = vld [vmem:[%s5 + $0x4] sm:$0xf]
      %v1273 = vld [vmem:[%s5 + $0x8] sm:$0xf]
      %v1274 = vld [vmem:[%s5 + $0xc] sm:$0xf]
      %v1275 = vld [vmem:[%s5 + $0x10] sm:$0xf]
      %v1276 = vld [vmem:[%s5 + $0x14] sm:$0xf]
      %v1277 = vld [vmem:[%s5 + $0x18] sm:$0xf]
      %v1278 = vld [vmem:[%s5 + $0x1c] sm:$0xf]
      %v1279 = vlaneseq
      %v1280 = vshrl.u32 %v1279, 7
      %v1281 = vsub.s32 0, %v1280
      %v1282 = vrot.slane %v419, %v1281
      %v1283 = vmul.f32 %v1255, %v1282
      %v1284 = vmul.f32 %v1258, %v1282
      %v1285 = vmul.f32 %v1263, %v1282
      %v1286 = vmul.f32 %v1266, %v1282
      %v1295 = vunpack.c.l.b16 %v1271
      %v1296 = vunpack.c.l.b16 %v1272
      %v1297 = vunpack.c.l.b16 %v1273
      %v1298 = vunpack.c.l.b16 %v1274
      %v1299 = vunpack.c.l.b16 %v1275
      %v1300 = vunpack.c.l.b16 %v1276
      %v1301 = vunpack.c.l.b16 %v1277
      %v1302 = vunpack.c.l.b16 %v1278
      %v1303 = vpack.c.b16 %v1296, %v1295
      %v1304 = vpack.c.b16 %v1298, %v1297
      %v1305 = vpack.c.b16 %v1300, %v1299
      %v1306 = vpack.c.b16 %v1302, %v1301
      %vm1311 = vcmask 523264
      %v1313 = vsel %vm1311, %v1269, 0
      %v1316 = vsel %vm1311, %v1270, 0
      %1318 = vmatprep.subr.bf16.mxu0 0
      %1319 = vmatpush1.bf16.msra.mxu0 %v1303
      %1320 = vmatprep.subr.bf16.mxu0 0
      %1321 = vmatpush1.bf16.msra.mxu0 %v1304
      %1322 = vmatprep.subr.bf16.mxu0 0
      %1323 = vmatpush1.bf16.msra.mxu0 %v1305
      %1324 = vmatprep.subr.bf16.mxu0 0
      %1325 = vmatpush1.bf16.msra.mxu0 %v1306
      %1326 = vmatprep.subr.bf16.mxu0 0
      %1327 = vmatpush1.bf16.msra.mxu0 0
      %1328 = vmatprep.subr.bf16.mxu0 0
      %1329 = vmatpush1.bf16.msra.mxu0 0
      %1330 = vmatprep.subr.bf16.mxu0 0
      %1331 = vmatpush1.bf16.msra.mxu0 0
      %1332 = vmatprep.subr.bf16.mxu0 0
      %1333 = vmatpush1.bf16.msra.mxu0 0
      %1334 = vmatprep.subr.bf16.mxu0 0
      %1335 = vmatpush1.bf16.msra.mxu0 0
      %1336 = vmatprep.subr.bf16.mxu0 0
      %1337 = vmatpush1.bf16.msra.mxu0 0
      %1338 = vmatprep.subr.bf16.mxu0 0
      %1339 = vmatpush1.bf16.msra.mxu0 0
      %1340 = vmatprep.subr.bf16.mxu0 0
      %1341 = vmatpush1.bf16.msra.mxu0 0
      %1342 = vmatprep.subr.bf16.mxu0 0
      %1343 = vmatpush1.bf16.msra.mxu0 0
      %1344 = vmatprep.subr.bf16.mxu0 0
      %1345 = vmatpush1.bf16.msra.mxu0 0
      %1346 = vmatprep.subr.bf16.mxu0 0
      %1347 = vmatpush1.bf16.msra.mxu0 0
      %1348 = vmatprep.subr.bf16.mxu0 0
      %1349 = vmatpush1.bf16.msra.mxu0 0
      %1350 = vmatprep.mubr.bf16.mxu0 0
      %1351 = vmatmul.mubr.bf16.gmra.mrb[0].mxu0 %v1313
      %v1352 = vpop.f32.mrb[0].mxu0
      %v1353 = vadd.f32 %v1283, %v1352
      %v1354 = vpop.f32.mrb[0].mxu0
      %v1355 = vpop.f32.mrb[0].mxu0
      %v1356 = vadd.f32 %v1284, %v1355
      %v1357 = vpop.f32.mrb[0].mxu0
      %1358 = vmatprep.mubr.bf16.mxu0 0
      %1359 = vmatmul.mubr.bf16.gmra.mrb[0].mxu0 %v1316
      %v1360 = vpop.f32.mrb[0].mxu0
      %v1361 = vadd.f32 %v1285, %v1360
      %v1362 = vpop.f32.mrb[0].mxu0
      %v1363 = vpop.f32.mrb[0].mxu0
      %v1364 = vadd.f32 %v1286, %v1363
      %v1365 = vpop.f32.mrb[0].mxu0
      %1366 = vdwg.mxu0
      %v1367 = vlaneseq
      %v1368 = vshrl.u32 %v1367, 7
      %v1369 = vsub.s32 0, %v1368
      %v1370 = vrot.slane %v423, %v1369
      %v1371 = vadd.f32 %v1353, %v1370
      %v1372 = vadd.f32 %v1356, %v1370
      %v1373 = vadd.f32 %v1361, %v1370
      %v1374 = vadd.f32 %v1364, %v1370
      %v1375 = vmax.f32 %v1371, 0.0
      %v1376 = vmax.f32 %v1372, 0.0
      %v1377 = vmax.f32 %v1373, 0.0
      %v1378 = vmax.f32 %v1374, 0.0
      %1379 = vst.msk [vmem:[%s362] sm:$0xff] %vm444, %v1375
      %1380 = vst.msk [vmem:[%s362 + $0x8] sm:$0xff] %vm444, %v1376
      %1381 = vst.msk [vmem:[%s362 + $0x10] sm:$0xff] %vm444, %v1377
      %1382 = vst.msk [vmem:[%s362 + $0x18] sm:$0xff] %vm444, %v1378
      %v1383 = vld [vmem:[%s353] sm:$0xf]
      %v1384 = vld [vmem:[%s353 + $0x4] sm:$0x1]
      %v1385 = vld [vmem:[%s353 + $0x8] sm:$0xf]
      %v1386 = vld [vmem:[%s353 + $0xc] sm:$0x1]
      %v1387 = vld [vmem:[%s353 + $0x10] sm:$0xf]
      %v1388 = vld [vmem:[%s353 + $0x14] sm:$0x1]
      %v1389 = vld [vmem:[%s353 + $0x18] sm:$0xf]
      %v1390 = vld [vmem:[%s353 + $0x1c] sm:$0x1]
      %v1392 = vshrl.u32 %v1383, 16
      %v1394 = vrot.slane %v1392, 4
      %v1395 = vshll.u32 %v1383, 16
      %v1397 = vrot.slane %v1395, 5
      %v1398 = vor.u32 %v1394, %v1397
      %v1399 = vrot.slane %v1398, 4
      %v1401 = vshll.u32 %v1384, 16
      %v1403 = vrot.slane %v1401, 5
      %v1404 = vsel %vm457, %v1399, %v1403
      %v1406 = vshrl.u32 %v1385, 16
      %v1408 = vrot.slane %v1406, 4
      %v1409 = vshll.u32 %v1385, 16
      %v1411 = vrot.slane %v1409, 5
      %v1412 = vor.u32 %v1408, %v1411
      %v1413 = vrot.slane %v1412, 4
      %v1415 = vshll.u32 %v1386, 16
      %v1417 = vrot.slane %v1415, 5
      %v1418 = vsel %vm457, %v1413, %v1417
      %v1420 = vshrl.u32 %v1387, 16
      %v1422 = vrot.slane %v1420, 4
      %v1423 = vshll.u32 %v1387, 16
      %v1425 = vrot.slane %v1423, 5
      %v1426 = vor.u32 %v1422, %v1425
      %v1427 = vrot.slane %v1426, 4
      %v1429 = vshll.u32 %v1388, 16
      %v1431 = vrot.slane %v1429, 5
      %v1432 = vsel %vm457, %v1427, %v1431
      %v1434 = vshrl.u32 %v1389, 16
      %v1436 = vrot.slane %v1434, 4
      %v1437 = vshll.u32 %v1389, 16
      %v1439 = vrot.slane %v1437, 5
      %v1440 = vor.u32 %v1436, %v1439
      %v1441 = vrot.slane %v1440, 4
      %v1443 = vshll.u32 %v1390, 16
      %v1445 = vrot.slane %v1443, 5
      %v1446 = vsel %vm457, %v1441, %v1445
      %v1447 = vunpack.c.l.b16 %v1404
      %v1448 = vunpack.c.l.b16 %v1418
      %v1449 = vunpack.c.l.b16 %v1432
      %v1450 = vunpack.c.l.b16 %v1446
      %v1451 = vpack.c.b16 %v1448, %v1447
      %v1452 = vpack.c.b16 %v1450, %v1449
      %1453 = vrot.lane.b32.xlu0 %v1451, 112
      %v1454 = vpop.permute.xlu0 %1453
      %1455 = vrot.lane.b32.xlu0 %v1452, 112
      %v1456 = vpop.permute.xlu0 %1455
      %s1459 = scalar_lea.vmem [#allocation2], 16
      %1460 = vst.msk [vmem:[%s1459] sm:$0xff] %vm444, %v1454
      %1461 = vst.msk [vmem:[%s1459 + $0x8] sm:$0xff] %vm444, %v1456
      %v1462 = vld [vmem:[%s353] sm:$0xf]
      %v1463 = vld [vmem:[%s353 + $0x4] sm:$0x1]
      %v1464 = vld [vmem:[%s353 + $0x8] sm:$0xf]
      %v1465 = vld [vmem:[%s353 + $0xc] sm:$0x1]
      %v1466 = vld [vmem:[%s353 + $0x10] sm:$0xf]
      %v1467 = vld [vmem:[%s353 + $0x14] sm:$0x1]
      %v1468 = vld [vmem:[%s353 + $0x18] sm:$0xf]
      %v1469 = vld [vmem:[%s353 + $0x1c] sm:$0x1]
      %v1471 = vshrl.u32 %v1462, 16
      %v1473 = vrot.slane %v1471, 4
      %v1474 = vshll.u32 %v1462, 16
      %v1476 = vrot.slane %v1474, 5
      %v1477 = vor.u32 %v1473, %v1476
      %v1478 = vrot.slane %v1477, 4
      %v1480 = vshll.u32 %v1463, 16
      %v1482 = vrot.slane %v1480, 5
      %v1483 = vsel %vm457, %v1478, %v1482
      %v1485 = vshrl.u32 %v1464, 16
      %v1487 = vrot.slane %v1485, 4
      %v1488 = vshll.u32 %v1464, 16
      %v1490 = vrot.slane %v1488, 5
      %v1491 = vor.u32 %v1487, %v1490
      %v1492 = vrot.slane %v1491, 4
      %v1494 = vshll.u32 %v1465, 16
      %v1496 = vrot.slane %v1494, 5
      %v1497 = vsel %vm457, %v1492, %v1496
      %v1499 = vshrl.u32 %v1466, 16
      %v1501 = vrot.slane %v1499, 4
      %v1502 = vshll.u32 %v1466, 16
      %v1504 = vrot.slane %v1502, 5
      %v1505 = vor.u32 %v1501, %v1504
      %v1506 = vrot.slane %v1505, 4
      %v1508 = vshll.u32 %v1467, 16
      %v1510 = vrot.slane %v1508, 5
      %v1511 = vsel %vm457, %v1506, %v1510
      %v1513 = vshrl.u32 %v1468, 16
      %v1515 = vrot.slane %v1513, 4
      %v1516 = vshll.u32 %v1468, 16
      %v1518 = vrot.slane %v1516, 5
      %v1519 = vor.u32 %v1515, %v1518
      %v1520 = vrot.slane %v1519, 4
      %v1522 = vshll.u32 %v1469, 16
      %v1524 = vrot.slane %v1522, 5
      %v1525 = vsel %vm457, %v1520, %v1524
      %v1526 = vunpack.c.l.b16 %v1483
      %v1527 = vunpack.c.l.b16 %v1497
      %v1528 = vunpack.c.l.b16 %v1511
      %v1529 = vunpack.c.l.b16 %v1525
      %v1530 = vpack.c.b16 %v1527, %v1526
      %v1531 = vpack.c.b16 %v1529, %v1528
      %1532 = vrot.lane.b32.xlu0 %v1530, 112
      %v1533 = vpop.permute.xlu0 %1532
      %1534 = vrot.lane.b32.xlu0 %v1531, 112
      %v1535 = vpop.permute.xlu0 %1534
      %1538 = vst.msk [vmem:[%s1459] sm:$0xff] %vm526, %v1533
      %1539 = vst.msk [vmem:[%s1459 + $0x8] sm:$0xff] %vm526, %v1535
      %v1540 = vld [vmem:[%s353] sm:$0xe]
      %v1541 = vld [vmem:[%s353 + $0x4] sm:$0x1]
      %v1542 = vld [vmem:[%s353 + $0x8] sm:$0xe]
      %v1543 = vld [vmem:[%s353 + $0xc] sm:$0x1]
      %v1544 = vld [vmem:[%s353 + $0x10] sm:$0xe]
      %v1545 = vld [vmem:[%s353 + $0x14] sm:$0x1]
      %v1546 = vld [vmem:[%s353 + $0x18] sm:$0xe]
      %v1547 = vld [vmem:[%s353 + $0x1c] sm:$0x1]
      %vm1556 = vcmask 1042432
      %vm1557 = vcmask 1046532
      %vm1558 = vmor %vm1556, %vm1557
      %v1559 = vrot.slane %v1540, 5
      %v1560 = vrot.slane %v1559, 4
      %v1561 = vrot.slane %v1541, 5
      %v1562 = vsel %vm1558, %v1560, %v1561
      %v1563 = vrot.slane %v1542, 5
      %v1564 = vrot.slane %v1563, 4
      %v1565 = vrot.slane %v1543, 5
      %v1566 = vsel %vm1558, %v1564, %v1565
      %v1567 = vrot.slane %v1544, 5
      %v1568 = vrot.slane %v1567, 4
      %v1569 = vrot.slane %v1545, 5
      %v1570 = vsel %vm1558, %v1568, %v1569
      %v1571 = vrot.slane %v1546, 5
      %v1572 = vrot.slane %v1571, 4
      %v1573 = vrot.slane %v1547, 5
      %v1574 = vsel %vm1558, %v1572, %v1573
      %v1575 = vunpack.c.l.b16 %v1562
      %v1576 = vunpack.c.l.b16 %v1566
      %v1577 = vunpack.c.l.b16 %v1570
      %v1578 = vunpack.c.l.b16 %v1574
      %v1579 = vpack.c.b16 %v1576, %v1575
      %v1580 = vpack.c.b16 %v1578, %v1577
      %1583 = vst.msk [vmem:[%s1459] sm:$0xff] %vm605, %v1579
      %1584 = vst.msk [vmem:[%s1459 + $0x8] sm:$0xff] %vm605, %v1580
      %v1585 = vld [vmem:[%s608] sm:$0xf]
      %v1586 = vld [vmem:[%s608 + $0x4] sm:$0x1]
      %v1587 = vld [vmem:[%s608 + $0x8] sm:$0xf]
      %v1588 = vld [vmem:[%s608 + $0xc] sm:$0x1]
      %v1589 = vld [vmem:[%s608 + $0x10] sm:$0xf]
      %v1590 = vld [vmem:[%s608 + $0x14] sm:$0x1]
      %v1591 = vld [vmem:[%s608 + $0x18] sm:$0xf]
      %v1592 = vld [vmem:[%s608 + $0x1c] sm:$0x1]
      %v1594 = vshrl.u32 %v1585, 16
      %v1596 = vrot.slane %v1594, 4
      %v1597 = vshll.u32 %v1585, 16
      %v1599 = vrot.slane %v1597, 5
      %v1600 = vor.u32 %v1596, %v1599
      %v1601 = vrot.slane %v1600, 4
      %v1603 = vshll.u32 %v1586, 16
      %v1605 = vrot.slane %v1603, 5
      %v1606 = vsel %vm457, %v1601, %v1605
      %v1608 = vshrl.u32 %v1587, 16
      %v1610 = vrot.slane %v1608, 4
      %v1611 = vshll.u32 %v1587, 16
      %v1613 = vrot.slane %v1611, 5
      %v1614 = vor.u32 %v1610, %v1613
      %v1615 = vrot.slane %v1614, 4
      %v1617 = vshll.u32 %v1588, 16
      %v1619 = vrot.slane %v1617, 5
      %v1620 = vsel %vm457, %v1615, %v1619
      %v1622 = vshrl.u32 %v1589, 16
      %v1624 = vrot.slane %v1622, 4
      %v1625 = vshll.u32 %v1589, 16
      %v1627 = vrot.slane %v1625, 5
      %v1628 = vor.u32 %v1624, %v1627
      %v1629 = vrot.slane %v1628, 4
      %v1631 = vshll.u32 %v1590, 16
      %v1633 = vrot.slane %v1631, 5
      %v1634 = vsel %vm457, %v1629, %v1633
      %v1636 = vshrl.u32 %v1591, 16
      %v1638 = vrot.slane %v1636, 4
      %v1639 = vshll.u32 %v1591, 16
      %v1641 = vrot.slane %v1639, 5
      %v1642 = vor.u32 %v1638, %v1641
      %v1643 = vrot.slane %v1642, 4
      %v1645 = vshll.u32 %v1592, 16
      %v1647 = vrot.slane %v1645, 5
      %v1648 = vsel %vm457, %v1643, %v1647
      %v1649 = vunpack.c.l.b16 %v1606
      %v1650 = vunpack.c.l.b16 %v1620
      %v1651 = vunpack.c.l.b16 %v1634
      %v1652 = vunpack.c.l.b16 %v1648
      %v1653 = vpack.c.b16 %v1650, %v1649
      %v1654 = vpack.c.b16 %v1652, %v1651
      %1655 = vrot.lane.b32.xlu0 %v1653, 24
      %v1656 = vpop.permute.xlu0 %1655
      %1657 = vrot.lane.b32.xlu0 %v1654, 24
      %v1658 = vpop.permute.xlu0 %1657
      %1661 = vst.msk [vmem:[%s1459] sm:$0xff] %vm629, %v1656
      %1662 = vst.msk [vmem:[%s1459 + $0x8] sm:$0xff] %vm629, %v1658
      %v1663 = vld [vmem:[%s608] sm:$0xf]
      %v1664 = vld [vmem:[%s608 + $0x4] sm:$0x1]
      %v1665 = vld [vmem:[%s608 + $0x8] sm:$0xf]
      %v1666 = vld [vmem:[%s608 + $0xc] sm:$0x1]
      %v1667 = vld [vmem:[%s608 + $0x10] sm:$0xf]
      %v1668 = vld [vmem:[%s608 + $0x14] sm:$0x1]
      %v1669 = vld [vmem:[%s608 + $0x18] sm:$0xf]
      %v1670 = vld [vmem:[%s608 + $0x1c] sm:$0x1]
      %v1672 = vshrl.u32 %v1663, 16
      %v1674 = vrot.slane %v1672, 4
      %v1675 = vshll.u32 %v1663, 16
      %v1677 = vrot.slane %v1675, 5
      %v1678 = vor.u32 %v1674, %v1677
      %v1679 = vrot.slane %v1678, 4
      %v1681 = vshll.u32 %v1664, 16
      %v1683 = vrot.slane %v1681, 5
      %v1684 = vsel %vm457, %v1679, %v1683
      %v1686 = vshrl.u32 %v1665, 16
      %v1688 = vrot.slane %v1686, 4
      %v1689 = vshll.u32 %v1665, 16
      %v1691 = vrot.slane %v1689, 5
      %v1692 = vor.u32 %v1688, %v1691
      %v1693 = vrot.slane %v1692, 4
      %v1695 = vshll.u32 %v1666, 16
      %v1697 = vrot.slane %v1695, 5
      %v1698 = vsel %vm457, %v1693, %v1697
      %v1700 = vshrl.u32 %v1667, 16
      %v1702 = vrot.slane %v1700, 4
      %v1703 = vshll.u32 %v1667, 16
      %v1705 = vrot.slane %v1703, 5
      %v1706 = vor.u32 %v1702, %v1705
      %v1707 = vrot.slane %v1706, 4
      %v1709 = vshll.u32 %v1668, 16
      %v1711 = vrot.slane %v1709, 5
      %v1712 = vsel %vm457, %v1707, %v1711
      %v1714 = vshrl.u32 %v1669, 16
      %v1716 = vrot.slane %v1714, 4
      %v1717 = vshll.u32 %v1669, 16
      %v1719 = vrot.slane %v1717, 5
      %v1720 = vor.u32 %v1716, %v1719
      %v1721 = vrot.slane %v1720, 4
      %v1723 = vshll.u32 %v1670, 16
      %v1725 = vrot.slane %v1723, 5
      %v1726 = vsel %vm457, %v1721, %v1725
      %v1727 = vunpack.c.l.b16 %v1684
      %v1728 = vunpack.c.l.b16 %v1698
      %v1729 = vunpack.c.l.b16 %v1712
      %v1730 = vunpack.c.l.b16 %v1726
      %v1731 = vpack.c.b16 %v1728, %v1727
      %v1732 = vpack.c.b16 %v1730, %v1729
      %1733 = vrot.lane.b32.xlu0 %v1731, 24
      %v1734 = vpop.permute.xlu0 %1733
      %1735 = vrot.lane.b32.xlu0 %v1732, 24
      %v1736 = vpop.permute.xlu0 %1735
      %1739 = vst.msk [vmem:[%s1459] sm:$0xff] %vm708, %v1734
      %1740 = vst.msk [vmem:[%s1459 + $0x8] sm:$0xff] %vm708, %v1736
      %v1741 = vld [vmem:[%s608] sm:$0xe]
      %v1742 = vld [vmem:[%s608 + $0x4] sm:$0x1]
      %v1743 = vld [vmem:[%s608 + $0x8] sm:$0xe]
      %v1744 = vld [vmem:[%s608 + $0xc] sm:$0x1]
      %v1745 = vld [vmem:[%s608 + $0x10] sm:$0xe]
      %v1746 = vld [vmem:[%s608 + $0x14] sm:$0x1]
      %v1747 = vld [vmem:[%s608 + $0x18] sm:$0xe]
      %v1748 = vld [vmem:[%s608 + $0x1c] sm:$0x1]
      %v1757 = vrot.slane %v1741, 5
      %v1758 = vrot.slane %v1757, 4
      %v1759 = vrot.slane %v1742, 5
      %v1760 = vsel %vm1558, %v1758, %v1759
      %v1761 = vrot.slane %v1743, 5
      %v1762 = vrot.slane %v1761, 4
      %v1763 = vrot.slane %v1744, 5
      %v1764 = vsel %vm1558, %v1762, %v1763
      %v1765 = vrot.slane %v1745, 5
      %v1766 = vrot.slane %v1765, 4
      %v1767 = vrot.slane %v1746, 5
      %v1768 = vsel %vm1558, %v1766, %v1767
      %v1769 = vrot.slane %v1747, 5
      %v1770 = vrot.slane %v1769, 4
      %v1771 = vrot.slane %v1748, 5
      %v1772 = vsel %vm1558, %v1770, %v1771
      %v1773 = vunpack.c.l.b16 %v1760
      %v1774 = vunpack.c.l.b16 %v1764
      %v1775 = vunpack.c.l.b16 %v1768
      %v1776 = vunpack.c.l.b16 %v1772
      %v1777 = vpack.c.b16 %v1774, %v1773
      %v1778 = vpack.c.b16 %v1776, %v1775
      %1779 = vrot.lane.b32.xlu0 %v1777, 40
      %v1780 = vpop.permute.xlu0 %1779
      %1781 = vrot.lane.b32.xlu0 %v1778, 40
      %v1782 = vpop.permute.xlu0 %1781
      %1785 = vst.msk [vmem:[%s1459] sm:$0xff] %vm787, %v1780
      %1786 = vst.msk [vmem:[%s1459 + $0x8] sm:$0xff] %vm787, %v1782
      %v1787 = vld [vmem:[%s608] sm:$0xf]
      %v1788 = vld [vmem:[%s608 + $0x4] sm:$0x1]
      %v1789 = vld [vmem:[%s608 + $0x8] sm:$0xf]
      %v1790 = vld [vmem:[%s608 + $0xc] sm:$0x1]
      %v1791 = vld [vmem:[%s608 + $0x10] sm:$0xf]
      %v1792 = vld [vmem:[%s608 + $0x14] sm:$0x1]
      %v1793 = vld [vmem:[%s608 + $0x18] sm:$0xf]
      %v1794 = vld [vmem:[%s608 + $0x1c] sm:$0x1]
      %v1796 = vshrl.u32 %v1787, 16
      %v1798 = vrot.slane %v1796, 4
      %v1799 = vshll.u32 %v1787, 16
      %v1801 = vrot.slane %v1799, 5
      %v1802 = vor.u32 %v1798, %v1801
      %v1803 = vrot.slane %v1802, 4
      %v1805 = vshll.u32 %v1788, 16
      %v1807 = vrot.slane %v1805, 5
      %v1808 = vsel %vm457, %v1803, %v1807
      %v1810 = vshrl.u32 %v1789, 16
      %v1812 = vrot.slane %v1810, 4
      %v1813 = vshll.u32 %v1789, 16
      %v1815 = vrot.slane %v1813, 5
      %v1816 = vor.u32 %v1812, %v1815
      %v1817 = vrot.slane %v1816, 4
      %v1819 = vshll.u32 %v1790, 16
      %v1821 = vrot.slane %v1819, 5
      %v1822 = vsel %vm457, %v1817, %v1821
      %v1824 = vshrl.u32 %v1791, 16
      %v1826 = vrot.slane %v1824, 4
      %v1827 = vshll.u32 %v1791, 16
      %v1829 = vrot.slane %v1827, 5
      %v1830 = vor.u32 %v1826, %v1829
      %v1831 = vrot.slane %v1830, 4
      %v1833 = vshll.u32 %v1792, 16
      %v1835 = vrot.slane %v1833, 5
      %v1836 = vsel %vm457, %v1831, %v1835
      %v1838 = vshrl.u32 %v1793, 16
      %v1840 = vrot.slane %v1838, 4
      %v1841 = vshll.u32 %v1793, 16
      %v1843 = vrot.slane %v1841, 5
      %v1844 = vor.u32 %v1840, %v1843
      %v1845 = vrot.slane %v1844, 4
      %v1847 = vshll.u32 %v1794, 16
      %v1849 = vrot.slane %v1847, 5
      %v1850 = vsel %vm457, %v1845, %v1849
      %v1851 = vunpack.c.l.b16 %v1808
      %v1852 = vunpack.c.l.b16 %v1822
      %v1853 = vunpack.c.l.b16 %v1836
      %v1854 = vunpack.c.l.b16 %v1850
      %v1855 = vpack.c.b16 %v1852, %v1851
      %v1856 = vpack.c.b16 %v1854, %v1853
      %1857 = vrot.lane.b32.xlu0 %v1855, 32
      %v1858 = vpop.permute.xlu0 %1857
      %1859 = vrot.lane.b32.xlu0 %v1856, 32
      %v1860 = vpop.permute.xlu0 %1859
      %1863 = vst.msk [vmem:[%s1459] sm:$0xff] %vm810, %v1858
      %1864 = vst.msk [vmem:[%s1459 + $0x8] sm:$0xff] %vm810, %v1860
      %v1865 = vld [vmem:[%s608] sm:$0xf]
      %v1866 = vld [vmem:[%s608 + $0x4] sm:$0x1]
      %v1867 = vld [vmem:[%s608 + $0x8] sm:$0xf]
      %v1868 = vld [vmem:[%s608 + $0xc] sm:$0x1]
      %v1869 = vld [vmem:[%s608 + $0x10] sm:$0xf]
      %v1870 = vld [vmem:[%s608 + $0x14] sm:$0x1]
      %v1871 = vld [vmem:[%s608 + $0x18] sm:$0xf]
      %v1872 = vld [vmem:[%s608 + $0x1c] sm:$0x1]
      %v1874 = vshrl.u32 %v1865, 16
      %v1876 = vrot.slane %v1874, 4
      %v1877 = vshll.u32 %v1865, 16
      %v1879 = vrot.slane %v1877, 5
      %v1880 = vor.u32 %v1876, %v1879
      %v1881 = vrot.slane %v1880, 4
      %v1883 = vshll.u32 %v1866, 16
      %v1885 = vrot.slane %v1883, 5
      %v1886 = vsel %vm457, %v1881, %v1885
      %v1888 = vshrl.u32 %v1867, 16
      %v1890 = vrot.slane %v1888, 4
      %v1891 = vshll.u32 %v1867, 16
      %v1893 = vrot.slane %v1891, 5
      %v1894 = vor.u32 %v1890, %v1893
      %v1895 = vrot.slane %v1894, 4
      %v1897 = vshll.u32 %v1868, 16
      %v1899 = vrot.slane %v1897, 5
      %v1900 = vsel %vm457, %v1895, %v1899
      %v1902 = vshrl.u32 %v1869, 16
      %v1904 = vrot.slane %v1902, 4
      %v1905 = vshll.u32 %v1869, 16
      %v1907 = vrot.slane %v1905, 5
      %v1908 = vor.u32 %v1904, %v1907
      %v1909 = vrot.slane %v1908, 4
      %v1911 = vshll.u32 %v1870, 16
      %v1913 = vrot.slane %v1911, 5
      %v1914 = vsel %vm457, %v1909, %v1913
      %v1916 = vshrl.u32 %v1871, 16
      %v1918 = vrot.slane %v1916, 4
      %v1919 = vshll.u32 %v1871, 16
      %v1921 = vrot.slane %v1919, 5
      %v1922 = vor.u32 %v1918, %v1921
      %v1923 = vrot.slane %v1922, 4
      %v1925 = vshll.u32 %v1872, 16
      %v1927 = vrot.slane %v1925, 5
      %v1928 = vsel %vm457, %v1923, %v1927
      %v1929 = vunpack.c.l.b16 %v1886
      %v1930 = vunpack.c.l.b16 %v1900
      %v1931 = vunpack.c.l.b16 %v1914
      %v1932 = vunpack.c.l.b16 %v1928
      %v1933 = vpack.c.b16 %v1930, %v1929
      %v1934 = vpack.c.b16 %v1932, %v1931
      %1935 = vrot.lane.b32.xlu0 %v1933, 32
      %v1936 = vpop.permute.xlu0 %1935
      %1937 = vrot.lane.b32.xlu0 %v1934, 32
      %v1938 = vpop.permute.xlu0 %1937
      %1941 = vst.msk [vmem:[%s1459] sm:$0xff] %vm889, %v1936
      %1942 = vst.msk [vmem:[%s1459 + $0x8] sm:$0xff] %vm889, %v1938
      %v1943 = vld [vmem:[%s608] sm:$0xe]
      %v1944 = vld [vmem:[%s608 + $0x4] sm:$0x1]
      %v1945 = vld [vmem:[%s608 + $0x8] sm:$0xe]
      %v1946 = vld [vmem:[%s608 + $0xc] sm:$0x1]
      %v1947 = vld [vmem:[%s608 + $0x10] sm:$0xe]
      %v1948 = vld [vmem:[%s608 + $0x14] sm:$0x1]
      %v1949 = vld [vmem:[%s608 + $0x18] sm:$0xe]
      %v1950 = vld [vmem:[%s608 + $0x1c] sm:$0x1]
      %v1959 = vrot.slane %v1943, 5
      %v1960 = vrot.slane %v1959, 4
      %v1961 = vrot.slane %v1944, 5
      %v1962 = vsel %vm1558, %v1960, %v1961
      %v1963 = vrot.slane %v1945, 5
      %v1964 = vrot.slane %v1963, 4
      %v1965 = vrot.slane %v1946, 5
      %v1966 = vsel %vm1558, %v1964, %v1965
      %v1967 = vrot.slane %v1947, 5
      %v1968 = vrot.slane %v1967, 4
      %v1969 = vrot.slane %v1948, 5
      %v1970 = vsel %vm1558, %v1968, %v1969
      %v1971 = vrot.slane %v1949, 5
      %v1972 = vrot.slane %v1971, 4
      %v1973 = vrot.slane %v1950, 5
      %v1974 = vsel %vm1558, %v1972, %v1973
      %v1975 = vunpack.c.l.b16 %v1962
      %v1976 = vunpack.c.l.b16 %v1966
      %v1977 = vunpack.c.l.b16 %v1970
      %v1978 = vunpack.c.l.b16 %v1974
      %v1979 = vpack.c.b16 %v1976, %v1975
      %v1980 = vpack.c.b16 %v1978, %v1977
      %1981 = vrot.lane.b32.xlu0 %v1979, 48
      %v1982 = vpop.permute.xlu0 %1981
      %1983 = vrot.lane.b32.xlu0 %v1980, 48
      %v1984 = vpop.permute.xlu0 %1983
      %1987 = vst.msk [vmem:[%s1459] sm:$0xff] %vm968, %v1982
      %1988 = vst.msk [vmem:[%s1459 + $0x8] sm:$0xff] %vm968, %v1984
      %v1989 = vld [vmem:[%s344] sm:$0xf]
      %v1990 = vld [vmem:[%s344 + $0x4] sm:$0x1]
      %v1991 = vld [vmem:[%s344 + $0x8] sm:$0xf]
      %v1992 = vld [vmem:[%s344 + $0xc] sm:$0x1]
      %v1993 = vld [vmem:[%s344 + $0x10] sm:$0xf]
      %v1994 = vld [vmem:[%s344 + $0x14] sm:$0x1]
      %v1995 = vld [vmem:[%s344 + $0x18] sm:$0xf]
      %v1996 = vld [vmem:[%s344 + $0x1c] sm:$0x1]
      %v1998 = vshrl.u32 %v1989, 16
      %v2000 = vrot.slane %v1998, 4
      %v2001 = vshll.u32 %v1989, 16
      %v2003 = vrot.slane %v2001, 5
      %v2004 = vor.u32 %v2000, %v2003
      %v2005 = vrot.slane %v2004, 4
      %v2007 = vshll.u32 %v1990, 16
      %v2009 = vrot.slane %v2007, 5
      %v2010 = vsel %vm457, %v2005, %v2009
      %v2012 = vshrl.u32 %v1991, 16
      %v2014 = vrot.slane %v2012, 4
      %v2015 = vshll.u32 %v1991, 16
      %v2017 = vrot.slane %v2015, 5
      %v2018 = vor.u32 %v2014, %v2017
      %v2019 = vrot.slane %v2018, 4
      %v2021 = vshll.u32 %v1992, 16
      %v2023 = vrot.slane %v2021, 5
      %v2024 = vsel %vm457, %v2019, %v2023
      %v2026 = vshrl.u32 %v1993, 16
      %v2028 = vrot.slane %v2026, 4
      %v2029 = vshll.u32 %v1993, 16
      %v2031 = vrot.slane %v2029, 5
      %v2032 = vor.u32 %v2028, %v2031
      %v2033 = vrot.slane %v2032, 4
      %v2035 = vshll.u32 %v1994, 16
      %v2037 = vrot.slane %v2035, 5
      %v2038 = vsel %vm457, %v2033, %v2037
      %v2040 = vshrl.u32 %v1995, 16
      %v2042 = vrot.slane %v2040, 4
      %v2043 = vshll.u32 %v1995, 16
      %v2045 = vrot.slane %v2043, 5
      %v2046 = vor.u32 %v2042, %v2045
      %v2047 = vrot.slane %v2046, 4
      %v2049 = vshll.u32 %v1996, 16
      %v2051 = vrot.slane %v2049, 5
      %v2052 = vsel %vm457, %v2047, %v2051
      %v2053 = vunpack.c.l.b16 %v2010
      %v2054 = vunpack.c.l.b16 %v2024
      %v2055 = vunpack.c.l.b16 %v2038
      %v2056 = vunpack.c.l.b16 %v2052
      %v2057 = vpack.c.b16 %v2054, %v2053
      %v2058 = vpack.c.b16 %v2056, %v2055
      %s2061 = scalar_lea.vmem [#allocation3], 16
      %2062 = vst.msk [vmem:[%s2061] sm:$0xff] %vm375, %v2057
      %2063 = vst.msk [vmem:[%s2061 + $0x8] sm:$0xff] %vm375, %v2058
      %v2064 = vld [vmem:[%s344] sm:$0xe]
      %v2065 = vld [vmem:[%s344 + $0x4] sm:$0x1]
      %v2066 = vld [vmem:[%s344 + $0x8] sm:$0xe]
      %v2067 = vld [vmem:[%s344 + $0xc] sm:$0x1]
      %v2068 = vld [vmem:[%s344 + $0x10] sm:$0xe]
      %v2069 = vld [vmem:[%s344 + $0x14] sm:$0x1]
      %v2070 = vld [vmem:[%s344 + $0x18] sm:$0xe]
      %v2071 = vld [vmem:[%s344 + $0x1c] sm:$0x1]
      %v2080 = vrot.slane %v2064, 5
      %v2081 = vrot.slane %v2080, 4
      %v2082 = vrot.slane %v2065, 5
      %v2083 = vsel %vm1558, %v2081, %v2082
      %v2084 = vrot.slane %v2066, 5
      %v2085 = vrot.slane %v2084, 4
      %v2086 = vrot.slane %v2067, 5
      %v2087 = vsel %vm1558, %v2085, %v2086
      %v2088 = vrot.slane %v2068, 5
      %v2089 = vrot.slane %v2088, 4
      %v2090 = vrot.slane %v2069, 5
      %v2091 = vsel %vm1558, %v2089, %v2090
      %v2092 = vrot.slane %v2070, 5
      %v2093 = vrot.slane %v2092, 4
      %v2094 = vrot.slane %v2071, 5
      %v2095 = vsel %vm1558, %v2093, %v2094
      %v2096 = vunpack.c.l.b16 %v2083
      %v2097 = vunpack.c.l.b16 %v2087
      %v2098 = vunpack.c.l.b16 %v2091
      %v2099 = vunpack.c.l.b16 %v2095
      %v2100 = vpack.c.b16 %v2097, %v2096
      %v2101 = vpack.c.b16 %v2099, %v2098
      %2102 = vrot.lane.b32.xlu0 %v2100, 16
      %v2103 = vpop.permute.xlu0 %2102
      %2104 = vrot.lane.b32.xlu0 %v2101, 16
      %v2105 = vpop.permute.xlu0 %2104
      %2108 = vst.msk [vmem:[%s2061] sm:$0xff] %vm1065, %v2103
      %2109 = vst.msk [vmem:[%s2061 + $0x8] sm:$0xff] %vm1065, %v2105
      %v2110 = vld [vmem:[%s1068] sm:$0xf]
      %v2111 = vld [vmem:[%s1068 + $0x4] sm:$0x1]
      %v2112 = vld [vmem:[%s1068 + $0x8] sm:$0xf]
      %v2113 = vld [vmem:[%s1068 + $0xc] sm:$0x1]
      %v2114 = vld [vmem:[%s1068 + $0x10] sm:$0xf]
      %v2115 = vld [vmem:[%s1068 + $0x14] sm:$0x1]
      %v2116 = vld [vmem:[%s1068 + $0x18] sm:$0xf]
      %v2117 = vld [vmem:[%s1068 + $0x1c] sm:$0x1]
      %v2119 = vshrl.u32 %v2110, 16
      %v2121 = vrot.slane %v2119, 4
      %v2122 = vshll.u32 %v2110, 16
      %v2124 = vrot.slane %v2122, 5
      %v2125 = vor.u32 %v2121, %v2124
      %v2126 = vrot.slane %v2125, 4
      %v2128 = vshll.u32 %v2111, 16
      %v2130 = vrot.slane %v2128, 5
      %v2131 = vsel %vm457, %v2126, %v2130
      %v2133 = vshrl.u32 %v2112, 16
      %v2135 = vrot.slane %v2133, 4
      %v2136 = vshll.u32 %v2112, 16
      %v2138 = vrot.slane %v2136, 5
      %v2139 = vor.u32 %v2135, %v2138
      %v2140 = vrot.slane %v2139, 4
      %v2142 = vshll.u32 %v2113, 16
      %v2144 = vrot.slane %v2142, 5
      %v2145 = vsel %vm457, %v2140, %v2144
      %v2147 = vshrl.u32 %v2114, 16
      %v2149 = vrot.slane %v2147, 4
      %v2150 = vshll.u32 %v2114, 16
      %v2152 = vrot.slane %v2150, 5
      %v2153 = vor.u32 %v2149, %v2152
      %v2154 = vrot.slane %v2153, 4
      %v2156 = vshll.u32 %v2115, 16
      %v2158 = vrot.slane %v2156, 5
      %v2159 = vsel %vm457, %v2154, %v2158
      %v2161 = vshrl.u32 %v2116, 16
      %v2163 = vrot.slane %v2161, 4
      %v2164 = vshll.u32 %v2116, 16
      %v2166 = vrot.slane %v2164, 5
      %v2167 = vor.u32 %v2163, %v2166
      %v2168 = vrot.slane %v2167, 4
      %v2170 = vshll.u32 %v2117, 16
      %v2172 = vrot.slane %v2170, 5
      %v2173 = vsel %vm457, %v2168, %v2172
      %v2174 = vunpack.c.l.b16 %v2131
      %v2175 = vunpack.c.l.b16 %v2145
      %v2176 = vunpack.c.l.b16 %v2159
      %v2177 = vunpack.c.l.b16 %v2173
      %v2178 = vpack.c.b16 %v2175, %v2174
      %v2179 = vpack.c.b16 %v2177, %v2176
      %2180 = vrot.lane.b32.xlu0 %v2178, 32
      %v2181 = vpop.permute.xlu0 %2180
      %2182 = vrot.lane.b32.xlu0 %v2179, 32
      %v2183 = vpop.permute.xlu0 %2182
      %2186 = vst.msk [vmem:[%s2061] sm:$0xff] %vm1089, %v2181
      %2187 = vst.msk [vmem:[%s2061 + $0x8] sm:$0xff] %vm1089, %v2183
      %v2188 = vld [vmem:[%s1068] sm:$0xe]
      %v2189 = vld [vmem:[%s1068 + $0x4] sm:$0x1]
      %v2190 = vld [vmem:[%s1068 + $0x8] sm:$0xe]
      %v2191 = vld [vmem:[%s1068 + $0xc] sm:$0x1]
      %v2192 = vld [vmem:[%s1068 + $0x10] sm:$0xe]
      %v2193 = vld [vmem:[%s1068 + $0x14] sm:$0x1]
      %v2194 = vld [vmem:[%s1068 + $0x18] sm:$0xe]
      %v2195 = vld [vmem:[%s1068 + $0x1c] sm:$0x1]
      %v2204 = vrot.slane %v2188, 5
      %v2205 = vrot.slane %v2204, 4
      %v2206 = vrot.slane %v2189, 5
      %v2207 = vsel %vm1558, %v2205, %v2206
      %v2208 = vrot.slane %v2190, 5
      %v2209 = vrot.slane %v2208, 4
      %v2210 = vrot.slane %v2191, 5
      %v2211 = vsel %vm1558, %v2209, %v2210
      %v2212 = vrot.slane %v2192, 5
      %v2213 = vrot.slane %v2212, 4
      %v2214 = vrot.slane %v2193, 5
      %v2215 = vsel %vm1558, %v2213, %v2214
      %v2216 = vrot.slane %v2194, 5
      %v2217 = vrot.slane %v2216, 4
      %v2218 = vrot.slane %v2195, 5
      %v2219 = vsel %vm1558, %v2217, %v2218
      %v2220 = vunpack.c.l.b16 %v2207
      %v2221 = vunpack.c.l.b16 %v2211
      %v2222 = vunpack.c.l.b16 %v2215
      %v2223 = vunpack.c.l.b16 %v2219
      %v2224 = vpack.c.b16 %v2221, %v2220
      %v2225 = vpack.c.b16 %v2223, %v2222
      %2226 = vrot.lane.b32.xlu0 %v2224, 48
      %v2227 = vpop.permute.xlu0 %2226
      %2228 = vrot.lane.b32.xlu0 %v2225, 48
      %v2229 = vpop.permute.xlu0 %2228
      %2232 = vst.msk [vmem:[%s2061] sm:$0xff] %vm1168, %v2227
      %2233 = vst.msk [vmem:[%s2061 + $0x8] sm:$0xff] %vm1168, %v2229
      %v2234 = vld [vmem:[%s1459] sm:$0xff]
      %v2235 = vld [vmem:[%s1459 + $0x8] sm:$0xff]
      %s2236 = scalar_lea.vmem %s4, 36
      %v2237 = vld [vmem:[%s2236] sm:$0xf]
      %v2238 = vld [vmem:[%s2236 + $0x4] sm:$0xf]
      %v2239 = vld [vmem:[%s2236 + $0x8] sm:$0xf]
      %v2240 = vld [vmem:[%s2236 + $0xc] sm:$0xf]
      %v2241 = vld [vmem:[%s2236 + $0x10] sm:$0xf]
      %v2242 = vld [vmem:[%s2236 + $0x14] sm:$0xf]
      %v2243 = vld [vmem:[%s2236 + $0x18] sm:$0xf]
      %v2244 = vld [vmem:[%s2236 + $0x1c] sm:$0xf]
      %v2245 = vld [vmem:[%s2236 + $0x20] sm:$0xf]
      %v2255 = vunpack.c.l.b16 %v2237
      %v2256 = vunpack.c.l.b16 %v2238
      %v2257 = vunpack.c.l.b16 %v2239
      %v2258 = vunpack.c.l.b16 %v2240
      %v2259 = vunpack.c.l.b16 %v2241
      %v2260 = vunpack.c.l.b16 %v2242
      %v2261 = vunpack.c.l.b16 %v2243
      %v2262 = vunpack.c.l.b16 %v2244
      %v2263 = vunpack.c.l.b16 %v2245
      %v2264 = vpack.c.b16 %v2256, %v2255
      %v2265 = vpack.c.b16 %v2258, %v2257
      %v2266 = vpack.c.b16 %v2260, %v2259
      %v2267 = vpack.c.b16 %v2262, %v2261
      %v2268 = vpack.c.b16 %v2263, %v2263
      %v2274 = vsel %vm1209, %v2234, 0
      %v2277 = vsel %vm1209, %v2235, 0
      %v2280 = vsel %vm1216, %v2268, 0
      %2282 = vmatprep.subr.bf16.mxu0 0
      %2283 = vmatpush1.bf16.msra.mxu0 %v2264
      %2284 = vmatprep.subr.bf16.mxu0 0
      %2285 = vmatpush1.bf16.msra.mxu0 %v2265
      %2286 = vmatprep.subr.bf16.mxu0 0
      %2287 = vmatpush1.bf16.msra.mxu0 %v2266
      %2288 = vmatprep.subr.bf16.mxu0 0
      %2289 = vmatpush1.bf16.msra.mxu0 %v2267
      %2290 = vmatprep.subr.bf16.mxu0 0
      %2291 = vmatpush1.bf16.msra.mxu0 %v2280
      %2292 = vmatprep.subr.bf16.mxu0 0
      %2293 = vmatpush1.bf16.msra.mxu0 0
      %2294 = vmatprep.subr.bf16.mxu0 0
      %2295 = vmatpush1.bf16.msra.mxu0 0
      %2296 = vmatprep.subr.bf16.mxu0 0
      %2297 = vmatpush1.bf16.msra.mxu0 0
      %2298 = vmatprep.subr.bf16.mxu0 0
      %2299 = vmatpush1.bf16.msra.mxu0 0
      %2300 = vmatprep.subr.bf16.mxu0 0
      %2301 = vmatpush1.bf16.msra.mxu0 0
      %2302 = vmatprep.subr.bf16.mxu0 0
      %2303 = vmatpush1.bf16.msra.mxu0 0
      %2304 = vmatprep.subr.bf16.mxu0 0
      %2305 = vmatpush1.bf16.msra.mxu0 0
      %2306 = vmatprep.subr.bf16.mxu0 0
      %2307 = vmatpush1.bf16.msra.mxu0 0
      %2308 = vmatprep.subr.bf16.mxu0 0
      %2309 = vmatpush1.bf16.msra.mxu0 0
      %2310 = vmatprep.subr.bf16.mxu0 0
      %2311 = vmatpush1.bf16.msra.mxu0 0
      %2312 = vmatprep.subr.bf16.mxu0 0
      %2313 = vmatpush1.bf16.msra.mxu0 0
      %2314 = vmatprep.mubr.bf16.mxu0 0
      %2315 = vmatmul.mubr.bf16.gmra.mrb[0].mxu0 %v2274
      %v2316 = vpop.f32.mrb[0].mxu0
      %v2317 = vadd.f32 0.0, %v2316
      %v2318 = vpop.f32.mrb[0].mxu0
      %v2319 = vpop.f32.mrb[0].mxu0
      %v2320 = vadd.f32 0.0, %v2319
      %v2321 = vpop.f32.mrb[0].mxu0
      %2322 = vmatprep.mubr.bf16.mxu0 0
      %2323 = vmatmul.mubr.bf16.gmra.mrb[0].mxu0 %v2277
      %v2324 = vpop.f32.mrb[0].mxu0
      %v2325 = vadd.f32 0.0, %v2324
      %v2326 = vpop.f32.mrb[0].mxu0
      %v2327 = vpop.f32.mrb[0].mxu0
      %v2328 = vadd.f32 0.0, %v2327
      %v2329 = vpop.f32.mrb[0].mxu0
      %2330 = vdwg.mxu0
      %v2331 = vld [vmem:[%s2061] sm:$0xff]
      %v2332 = vld [vmem:[%s2061 + $0x8] sm:$0xff]
      %s2333 = scalar_lea.vmem %s5, 32
      %v2334 = vld [vmem:[%s2333] sm:$0xf]
      %v2335 = vld [vmem:[%s2333 + $0x4] sm:$0xf]
      %v2336 = vld [vmem:[%s2333 + $0x8] sm:$0xf]
      %v2337 = vld [vmem:[%s2333 + $0xc] sm:$0xf]
      %v2338 = vld [vmem:[%s2333 + $0x10] sm:$0xf]
      %v2339 = vld [vmem:[%s2333 + $0x14] sm:$0xf]
      %v2340 = vld [vmem:[%s2333 + $0x18] sm:$0xf]
      %v2341 = vld [vmem:[%s2333 + $0x1c] sm:$0xf]
      %v2342 = vmul.f32 %v2317, %v1282
      %v2343 = vmul.f32 %v2320, %v1282
      %v2344 = vmul.f32 %v2325, %v1282
      %v2345 = vmul.f32 %v2328, %v1282
      %v2354 = vunpack.c.l.b16 %v2334
      %v2355 = vunpack.c.l.b16 %v2335
      %v2356 = vunpack.c.l.b16 %v2336
      %v2357 = vunpack.c.l.b16 %v2337
      %v2358 = vunpack.c.l.b16 %v2338
      %v2359 = vunpack.c.l.b16 %v2339
      %v2360 = vunpack.c.l.b16 %v2340
      %v2361 = vunpack.c.l.b16 %v2341
      %v2362 = vpack.c.b16 %v2355, %v2354
      %v2363 = vpack.c.b16 %v2357, %v2356
      %v2364 = vpack.c.b16 %v2359, %v2358
      %v2365 = vpack.c.b16 %v2361, %v2360
      %v2371 = vsel %vm1311, %v2331, 0
      %v2374 = vsel %vm1311, %v2332, 0
      %2376 = vmatprep.subr.bf16.mxu0 0
      %2377 = vmatpush1.bf16.msra.mxu0 %v2362
      %2378 = vmatprep.subr.bf16.mxu0 0
      %2379 = vmatpush1.bf16.msra.mxu0 %v2363
      %2380 = vmatprep.subr.bf16.mxu0 0
      %2381 = vmatpush1.bf16.msra.mxu0 %v2364
      %2382 = vmatprep.subr.bf16.mxu0 0
      %2383 = vmatpush1.bf16.msra.mxu0 %v2365
      %2384 = vmatprep.subr.bf16.mxu0 0
      %2385 = vmatpush1.bf16.msra.mxu0 0
      %2386 = vmatprep.subr.bf16.mxu0 0
      %2387 = vmatpush1.bf16.msra.mxu0 0
      %2388 = vmatprep.subr.bf16.mxu0 0
      %2389 = vmatpush1.bf16.msra.mxu0 0
      %2390 = vmatprep.subr.bf16.mxu0 0
      %2391 = vmatpush1.bf16.msra.mxu0 0
      %2392 = vmatprep.subr.bf16.mxu0 0
      %2393 = vmatpush1.bf16.msra.mxu0 0
      %2394 = vmatprep.subr.bf16.mxu0 0
      %2395 = vmatpush1.bf16.msra.mxu0 0
      %2396 = vmatprep.subr.bf16.mxu0 0
      %2397 = vmatpush1.bf16.msra.mxu0 0
      %2398 = vmatprep.subr.bf16.mxu0 0
      %2399 = vmatpush1.bf16.msra.mxu0 0
      %2400 = vmatprep.subr.bf16.mxu0 0
      %2401 = vmatpush1.bf16.msra.mxu0 0
      %2402 = vmatprep.subr.bf16.mxu0 0
      %2403 = vmatpush1.bf16.msra.mxu0 0
      %2404 = vmatprep.subr.bf16.mxu0 0
      %2405 = vmatpush1.bf16.msra.mxu0 0
      %2406 = vmatprep.subr.bf16.mxu0 0
      %2407 = vmatpush1.bf16.msra.mxu0 0
      %2408 = vmatprep.mubr.bf16.mxu0 0
      %2409 = vmatmul.mubr.bf16.gmra.mrb[0].mxu0 %v2371
      %v2410 = vpop.f32.mrb[0].mxu0
      %v2411 = vadd.f32 %v2342, %v2410
      %v2412 = vpop.f32.mrb[0].mxu0
      %v2413 = vpop.f32.mrb[0].mxu0
      %v2414 = vadd.f32 %v2343, %v2413
      %v2415 = vpop.f32.mrb[0].mxu0
      %2416 = vmatprep.mubr.bf16.mxu0 0
      %2417 = vmatmul.mubr.bf16.gmra.mrb[0].mxu0 %v2374
      %v2418 = vpop.f32.mrb[0].mxu0
      %v2419 = vadd.f32 %v2344, %v2418
      %v2420 = vpop.f32.mrb[0].mxu0
      %v2421 = vpop.f32.mrb[0].mxu0
      %v2422 = vadd.f32 %v2345, %v2421
      %v2423 = vpop.f32.mrb[0].mxu0
      %2424 = vdwg.mxu0
      %v2425 = vadd.f32 %v2411, %v1370
      %v2426 = vadd.f32 %v2414, %v1370
      %v2427 = vadd.f32 %v2419, %v1370
      %v2428 = vadd.f32 %v2422, %v1370
      %v2429 = vmax.f32 %v2425, 0.0
      %v2430 = vmax.f32 %v2426, 0.0
      %v2431 = vmax.f32 %v2427, 0.0
      %v2432 = vmax.f32 %v2428, 0.0
      %s2433 = scalar_lea.vmem %s362, 32
      %2434 = vst.msk [vmem:[%s2433] sm:$0xff] %vm444, %v2429
      %2435 = vst.msk [vmem:[%s2433 + $0x8] sm:$0xff] %vm444, %v2430
      %2436 = vst.msk [vmem:[%s2433 + $0x10] sm:$0xff] %vm444, %v2431
      %2437 = vst.msk [vmem:[%s2433 + $0x18] sm:$0xff] %vm444, %v2432
      %v2438 = vld [vmem:[%s608] sm:$0xf]
      %v2439 = vld [vmem:[%s608 + $0x8] sm:$0xf]
      %v2440 = vld [vmem:[%s608 + $0x10] sm:$0xf]
      %v2441 = vld [vmem:[%s608 + $0x18] sm:$0xf]
      %v2446 = vunpack.c.l.b16 %v2438
      %v2447 = vunpack.c.l.b16 %v2439
      %v2448 = vunpack.c.l.b16 %v2440
      %v2449 = vunpack.c.l.b16 %v2441
      %v2450 = vpack.c.b16 %v2447, %v2446
      %v2451 = vpack.c.b16 %v2449, %v2448
      %2452 = vrot.lane.b32.xlu0 %v2450, 120
      %v2453 = vpop.permute.xlu0 %2452
      %2454 = vrot.lane.b32.xlu0 %v2451, 120
      %v2455 = vpop.permute.xlu0 %2454
      %2458 = vst.msk [vmem:[#allocation2] sm:$0xff] %vm444, %v2453
      %2459 = vst.msk [vmem:[#allocation2 + $0x8] sm:$0xff] %vm444, %v2455
      %v2460 = vld [vmem:[%s608] sm:$0xf]
      %v2461 = vld [vmem:[%s608 + $0x4] sm:$0x1]
      %v2462 = vld [vmem:[%s608 + $0x8] sm:$0xf]
      %v2463 = vld [vmem:[%s608 + $0xc] sm:$0x1]
      %v2464 = vld [vmem:[%s608 + $0x10] sm:$0xf]
      %v2465 = vld [vmem:[%s608 + $0x14] sm:$0x1]
      %v2466 = vld [vmem:[%s608 + $0x18] sm:$0xf]
      %v2467 = vld [vmem:[%s608 + $0x1c] sm:$0x1]
      %v2469 = vshrl.u32 %v2460, 16
      %v2471 = vrot.slane %v2469, 4
      %v2472 = vshll.u32 %v2460, 16
      %v2474 = vrot.slane %v2472, 5
      %v2475 = vor.u32 %v2471, %v2474
      %v2476 = vrot.slane %v2475, 4
      %v2478 = vshll.u32 %v2461, 16
      %v2480 = vrot.slane %v2478, 5
      %v2481 = vsel %vm457, %v2476, %v2480
      %v2483 = vshrl.u32 %v2462, 16
      %v2485 = vrot.slane %v2483, 4
      %v2486 = vshll.u32 %v2462, 16
      %v2488 = vrot.slane %v2486, 5
      %v2489 = vor.u32 %v2485, %v2488
      %v2490 = vrot.slane %v2489, 4
      %v2492 = vshll.u32 %v2463, 16
      %v2494 = vrot.slane %v2492, 5
      %v2495 = vsel %vm457, %v2490, %v2494
      %v2497 = vshrl.u32 %v2464, 16
      %v2499 = vrot.slane %v2497, 4
      %v2500 = vshll.u32 %v2464, 16
      %v2502 = vrot.slane %v2500, 5
      %v2503 = vor.u32 %v2499, %v2502
      %v2504 = vrot.slane %v2503, 4
      %v2506 = vshll.u32 %v2465, 16
      %v2508 = vrot.slane %v2506, 5
      %v2509 = vsel %vm457, %v2504, %v2508
      %v2511 = vshrl.u32 %v2466, 16
      %v2513 = vrot.slane %v2511, 4
      %v2514 = vshll.u32 %v2466, 16
      %v2516 = vrot.slane %v2514, 5
      %v2517 = vor.u32 %v2513, %v2516
      %v2518 = vrot.slane %v2517, 4
      %v2520 = vshll.u32 %v2467, 16
      %v2522 = vrot.slane %v2520, 5
      %v2523 = vsel %vm457, %v2518, %v2522
      %v2524 = vunpack.c.l.b16 %v2481
      %v2525 = vunpack.c.l.b16 %v2495
      %v2526 = vunpack.c.l.b16 %v2509
      %v2527 = vunpack.c.l.b16 %v2523
      %v2528 = vpack.c.b16 %v2525, %v2524
      %v2529 = vpack.c.b16 %v2527, %v2526
      %2530 = vrot.lane.b32.xlu0 %v2528, 8
      %v2531 = vpop.permute.xlu0 %2530
      %2532 = vrot.lane.b32.xlu0 %v2529, 8
      %v2533 = vpop.permute.xlu0 %2532
      %2536 = vst.msk [vmem:[#allocation2] sm:$0xff] %vm526, %v2531
      %2537 = vst.msk [vmem:[#allocation2 + $0x8] sm:$0xff] %vm526, %v2533
      %v2538 = vld [vmem:[%s608] sm:$0xf]
      %v2539 = vld [vmem:[%s608 + $0x4] sm:$0x1]
      %v2540 = vld [vmem:[%s608 + $0x8] sm:$0xf]
      %v2541 = vld [vmem:[%s608 + $0xc] sm:$0x1]
      %v2542 = vld [vmem:[%s608 + $0x10] sm:$0xf]
      %v2543 = vld [vmem:[%s608 + $0x14] sm:$0x1]
      %v2544 = vld [vmem:[%s608 + $0x18] sm:$0xf]
      %v2545 = vld [vmem:[%s608 + $0x1c] sm:$0x1]
      %v2547 = vshrl.u32 %v2538, 16
      %v2549 = vrot.slane %v2547, 4
      %v2550 = vshll.u32 %v2538, 16
      %v2552 = vrot.slane %v2550, 5
      %v2553 = vor.u32 %v2549, %v2552
      %v2554 = vrot.slane %v2553, 4
      %v2556 = vshll.u32 %v2539, 16
      %v2558 = vrot.slane %v2556, 5
      %v2559 = vsel %vm457, %v2554, %v2558
      %v2561 = vshrl.u32 %v2540, 16
      %v2563 = vrot.slane %v2561, 4
      %v2564 = vshll.u32 %v2540, 16
      %v2566 = vrot.slane %v2564, 5
      %v2567 = vor.u32 %v2563, %v2566
      %v2568 = vrot.slane %v2567, 4
      %v2570 = vshll.u32 %v2541, 16
      %v2572 = vrot.slane %v2570, 5
      %v2573 = vsel %vm457, %v2568, %v2572
      %v2575 = vshrl.u32 %v2542, 16
      %v2577 = vrot.slane %v2575, 4
      %v2578 = vshll.u32 %v2542, 16
      %v2580 = vrot.slane %v2578, 5
      %v2581 = vor.u32 %v2577, %v2580
      %v2582 = vrot.slane %v2581, 4
      %v2584 = vshll.u32 %v2543, 16
      %v2586 = vrot.slane %v2584, 5
      %v2587 = vsel %vm457, %v2582, %v2586
      %v2589 = vshrl.u32 %v2544, 16
      %v2591 = vrot.slane %v2589, 4
      %v2592 = vshll.u32 %v2544, 16
      %v2594 = vrot.slane %v2592, 5
      %v2595 = vor.u32 %v2591, %v2594
      %v2596 = vrot.slane %v2595, 4
      %v2598 = vshll.u32 %v2545, 16
      %v2600 = vrot.slane %v2598, 5
      %v2601 = vsel %vm457, %v2596, %v2600
      %v2602 = vunpack.c.l.b16 %v2559
      %v2603 = vunpack.c.l.b16 %v2573
      %v2604 = vunpack.c.l.b16 %v2587
      %v2605 = vunpack.c.l.b16 %v2601
      %v2606 = vpack.c.b16 %v2603, %v2602
      %v2607 = vpack.c.b16 %v2605, %v2604
      %2608 = vrot.lane.b32.xlu0 %v2606, 8
      %v2609 = vpop.permute.xlu0 %2608
      %2610 = vrot.lane.b32.xlu0 %v2607, 8
      %v2611 = vpop.permute.xlu0 %2610
      %2614 = vst.msk [vmem:[#allocation2] sm:$0xff] %vm605, %v2609
      %2615 = vst.msk [vmem:[#allocation2 + $0x8] sm:$0xff] %vm605, %v2611
      %v2616 = vld [vmem:[%s608] sm:$0xf]
      %v2617 = vld [vmem:[%s608 + $0x8] sm:$0xf]
      %v2618 = vld [vmem:[%s608 + $0x10] sm:$0xf]
      %v2619 = vld [vmem:[%s608 + $0x18] sm:$0xf]
      %v2624 = vunpack.c.l.b16 %v2616
      %v2625 = vunpack.c.l.b16 %v2617
      %v2626 = vunpack.c.l.b16 %v2618
      %v2627 = vunpack.c.l.b16 %v2619
      %v2628 = vpack.c.b16 %v2625, %v2624
      %v2629 = vpack.c.b16 %v2627, %v2626
      %2632 = vst.msk [vmem:[#allocation2] sm:$0xff] %vm629, %v2628
      %2633 = vst.msk [vmem:[#allocation2 + $0x8] sm:$0xff] %vm629, %v2629
      %v2634 = vld [vmem:[%s608] sm:$0xf]
      %v2635 = vld [vmem:[%s608 + $0x4] sm:$0x1]
      %v2636 = vld [vmem:[%s608 + $0x8] sm:$0xf]
      %v2637 = vld [vmem:[%s608 + $0xc] sm:$0x1]
      %v2638 = vld [vmem:[%s608 + $0x10] sm:$0xf]
      %v2639 = vld [vmem:[%s608 + $0x14] sm:$0x1]
      %v2640 = vld [vmem:[%s608 + $0x18] sm:$0xf]
      %v2641 = vld [vmem:[%s608 + $0x1c] sm:$0x1]
      %v2643 = vshrl.u32 %v2634, 16
      %v2645 = vrot.slane %v2643, 4
      %v2646 = vshll.u32 %v2634, 16
      %v2648 = vrot.slane %v2646, 5
      %v2649 = vor.u32 %v2645, %v2648
      %v2650 = vrot.slane %v2649, 4
      %v2652 = vshll.u32 %v2635, 16
      %v2654 = vrot.slane %v2652, 5
      %v2655 = vsel %vm457, %v2650, %v2654
      %v2657 = vshrl.u32 %v2636, 16
      %v2659 = vrot.slane %v2657, 4
      %v2660 = vshll.u32 %v2636, 16
      %v2662 = vrot.slane %v2660, 5
      %v2663 = vor.u32 %v2659, %v2662
      %v2664 = vrot.slane %v2663, 4
      %v2666 = vshll.u32 %v2637, 16
      %v2668 = vrot.slane %v2666, 5
      %v2669 = vsel %vm457, %v2664, %v2668
      %v2671 = vshrl.u32 %v2638, 16
      %v2673 = vrot.slane %v2671, 4
      %v2674 = vshll.u32 %v2638, 16
      %v2676 = vrot.slane %v2674, 5
      %v2677 = vor.u32 %v2673, %v2676
      %v2678 = vrot.slane %v2677, 4
      %v2680 = vshll.u32 %v2639, 16
      %v2682 = vrot.slane %v2680, 5
      %v2683 = vsel %vm457, %v2678, %v2682
      %v2685 = vshrl.u32 %v2640, 16
      %v2687 = vrot.slane %v2685, 4
      %v2688 = vshll.u32 %v2640, 16
      %v2690 = vrot.slane %v2688, 5
      %v2691 = vor.u32 %v2687, %v2690
      %v2692 = vrot.slane %v2691, 4
      %v2694 = vshll.u32 %v2641, 16
      %v2696 = vrot.slane %v2694, 5
      %v2697 = vsel %vm457, %v2692, %v2696
      %v2698 = vunpack.c.l.b16 %v2655
      %v2699 = vunpack.c.l.b16 %v2669
      %v2700 = vunpack.c.l.b16 %v2683
      %v2701 = vunpack.c.l.b16 %v2697
      %v2702 = vpack.c.b16 %v2699, %v2698
      %v2703 = vpack.c.b16 %v2701, %v2700
      %2704 = vrot.lane.b32.xlu0 %v2702, 16
      %v2705 = vpop.permute.xlu0 %2704
      %2706 = vrot.lane.b32.xlu0 %v2703, 16
      %v2707 = vpop.permute.xlu0 %2706
      %2710 = vst.msk [vmem:[#allocation2] sm:$0xff] %vm708, %v2705
      %2711 = vst.msk [vmem:[#allocation2 + $0x8] sm:$0xff] %vm708, %v2707
      %v2712 = vld [vmem:[%s608] sm:$0xf]
      %v2713 = vld [vmem:[%s608 + $0x4] sm:$0x1]
      %v2714 = vld [vmem:[%s608 + $0x8] sm:$0xf]
      %v2715 = vld [vmem:[%s608 + $0xc] sm:$0x1]
      %v2716 = vld [vmem:[%s608 + $0x10] sm:$0xf]
      %v2717 = vld [vmem:[%s608 + $0x14] sm:$0x1]
      %v2718 = vld [vmem:[%s608 + $0x18] sm:$0xf]
      %v2719 = vld [vmem:[%s608 + $0x1c] sm:$0x1]
      %v2721 = vshrl.u32 %v2712, 16
      %v2723 = vrot.slane %v2721, 4
      %v2724 = vshll.u32 %v2712, 16
      %v2726 = vrot.slane %v2724, 5
      %v2727 = vor.u32 %v2723, %v2726
      %v2728 = vrot.slane %v2727, 4
      %v2730 = vshll.u32 %v2713, 16
      %v2732 = vrot.slane %v2730, 5
      %v2733 = vsel %vm457, %v2728, %v2732
      %v2735 = vshrl.u32 %v2714, 16
      %v2737 = vrot.slane %v2735, 4
      %v2738 = vshll.u32 %v2714, 16
      %v2740 = vrot.slane %v2738, 5
      %v2741 = vor.u32 %v2737, %v2740
      %v2742 = vrot.slane %v2741, 4
      %v2744 = vshll.u32 %v2715, 16
      %v2746 = vrot.slane %v2744, 5
      %v2747 = vsel %vm457, %v2742, %v2746
      %v2749 = vshrl.u32 %v2716, 16
      %v2751 = vrot.slane %v2749, 4
      %v2752 = vshll.u32 %v2716, 16
      %v2754 = vrot.slane %v2752, 5
      %v2755 = vor.u32 %v2751, %v2754
      %v2756 = vrot.slane %v2755, 4
      %v2758 = vshll.u32 %v2717, 16
      %v2760 = vrot.slane %v2758, 5
      %v2761 = vsel %vm457, %v2756, %v2760
      %v2763 = vshrl.u32 %v2718, 16
      %v2765 = vrot.slane %v2763, 4
      %v2766 = vshll.u32 %v2718, 16
      %v2768 = vrot.slane %v2766, 5
      %v2769 = vor.u32 %v2765, %v2768
      %v2770 = vrot.slane %v2769, 4
      %v2772 = vshll.u32 %v2719, 16
      %v2774 = vrot.slane %v2772, 5
      %v2775 = vsel %vm457, %v2770, %v2774
      %v2776 = vunpack.c.l.b16 %v2733
      %v2777 = vunpack.c.l.b16 %v2747
      %v2778 = vunpack.c.l.b16 %v2761
      %v2779 = vunpack.c.l.b16 %v2775
      %v2780 = vpack.c.b16 %v2777, %v2776
      %v2781 = vpack.c.b16 %v2779, %v2778
      %2782 = vrot.lane.b32.xlu0 %v2780, 16
      %v2783 = vpop.permute.xlu0 %2782
      %2784 = vrot.lane.b32.xlu0 %v2781, 16
      %v2785 = vpop.permute.xlu0 %2784
      %2788 = vst.msk [vmem:[#allocation2] sm:$0xff] %vm787, %v2783
      %2789 = vst.msk [vmem:[#allocation2 + $0x8] sm:$0xff] %vm787, %v2785
      %s2790 = scalar_lea.vmem %s353, 16
      %v2791 = vld [vmem:[%s2790] sm:$0xf]
      %v2792 = vld [vmem:[%s2790 + $0x8] sm:$0xf]
      %v2793 = vld [vmem:[%s2790 + $0x10] sm:$0xf]
      %v2794 = vld [vmem:[%s2790 + $0x18] sm:$0xf]
      %v2799 = vunpack.c.l.b16 %v2791
      %v2800 = vunpack.c.l.b16 %v2792
      %v2801 = vunpack.c.l.b16 %v2793
      %v2802 = vunpack.c.l.b16 %v2794
      %v2803 = vpack.c.b16 %v2800, %v2799
      %v2804 = vpack.c.b16 %v2802, %v2801
      %2805 = vrot.lane.b32.xlu0 %v2803, 40
      %v2806 = vpop.permute.xlu0 %2805
      %2807 = vrot.lane.b32.xlu0 %v2804, 40
      %v2808 = vpop.permute.xlu0 %2807
      %2811 = vst.msk [vmem:[#allocation2] sm:$0xff] %vm810, %v2806
      %2812 = vst.msk [vmem:[#allocation2 + $0x8] sm:$0xff] %vm810, %v2808
      %v2813 = vld [vmem:[%s2790] sm:$0xf]
      %v2814 = vld [vmem:[%s2790 + $0x4] sm:$0x1]
      %v2815 = vld [vmem:[%s2790 + $0x8] sm:$0xf]
      %v2816 = vld [vmem:[%s2790 + $0xc] sm:$0x1]
      %v2817 = vld [vmem:[%s2790 + $0x10] sm:$0xf]
      %v2818 = vld [vmem:[%s2790 + $0x14] sm:$0x1]
      %v2819 = vld [vmem:[%s2790 + $0x18] sm:$0xf]
      %v2820 = vld [vmem:[%s2790 + $0x1c] sm:$0x1]
      %v2822 = vshrl.u32 %v2813, 16
      %v2824 = vrot.slane %v2822, 4
      %v2825 = vshll.u32 %v2813, 16
      %v2827 = vrot.slane %v2825, 5
      %v2828 = vor.u32 %v2824, %v2827
      %v2829 = vrot.slane %v2828, 4
      %v2831 = vshll.u32 %v2814, 16
      %v2833 = vrot.slane %v2831, 5
      %v2834 = vsel %vm457, %v2829, %v2833
      %v2836 = vshrl.u32 %v2815, 16
      %v2838 = vrot.slane %v2836, 4
      %v2839 = vshll.u32 %v2815, 16
      %v2841 = vrot.slane %v2839, 5
      %v2842 = vor.u32 %v2838, %v2841
      %v2843 = vrot.slane %v2842, 4
      %v2845 = vshll.u32 %v2816, 16
      %v2847 = vrot.slane %v2845, 5
      %v2848 = vsel %vm457, %v2843, %v2847
      %v2850 = vshrl.u32 %v2817, 16
      %v2852 = vrot.slane %v2850, 4
      %v2853 = vshll.u32 %v2817, 16
      %v2855 = vrot.slane %v2853, 5
      %v2856 = vor.u32 %v2852, %v2855
      %v2857 = vrot.slane %v2856, 4
      %v2859 = vshll.u32 %v2818, 16
      %v2861 = vrot.slane %v2859, 5
      %v2862 = vsel %vm457, %v2857, %v2861
      %v2864 = vshrl.u32 %v2819, 16
      %v2866 = vrot.slane %v2864, 4
      %v2867 = vshll.u32 %v2819, 16
      %v2869 = vrot.slane %v2867, 5
      %v2870 = vor.u32 %v2866, %v2869
      %v2871 = vrot.slane %v2870, 4
      %v2873 = vshll.u32 %v2820, 16
      %v2875 = vrot.slane %v2873, 5
      %v2876 = vsel %vm457, %v2871, %v2875
      %v2877 = vunpack.c.l.b16 %v2834
      %v2878 = vunpack.c.l.b16 %v2848
      %v2879 = vunpack.c.l.b16 %v2862
      %v2880 = vunpack.c.l.b16 %v2876
      %v2881 = vpack.c.b16 %v2878, %v2877
      %v2882 = vpack.c.b16 %v2880, %v2879
      %2883 = vrot.lane.b32.xlu0 %v2881, 56
      %v2884 = vpop.permute.xlu0 %2883
      %2885 = vrot.lane.b32.xlu0 %v2882, 56
      %v2886 = vpop.permute.xlu0 %2885
      %2889 = vst.msk [vmem:[#allocation2] sm:$0xff] %vm889, %v2884
      %2890 = vst.msk [vmem:[#allocation2 + $0x8] sm:$0xff] %vm889, %v2886
      %v2891 = vld [vmem:[%s2790] sm:$0xf]
      %v2892 = vld [vmem:[%s2790 + $0x4] sm:$0x1]
      %v2893 = vld [vmem:[%s2790 + $0x8] sm:$0xf]
      %v2894 = vld [vmem:[%s2790 + $0xc] sm:$0x1]
      %v2895 = vld [vmem:[%s2790 + $0x10] sm:$0xf]
      %v2896 = vld [vmem:[%s2790 + $0x14] sm:$0x1]
      %v2897 = vld [vmem:[%s2790 + $0x18] sm:$0xf]
      %v2898 = vld [vmem:[%s2790 + $0x1c] sm:$0x1]
      %v2900 = vshrl.u32 %v2891, 16
      %v2902 = vrot.slane %v2900, 4
      %v2903 = vshll.u32 %v2891, 16
      %v2905 = vrot.slane %v2903, 5
      %v2906 = vor.u32 %v2902, %v2905
      %v2907 = vrot.slane %v2906, 4
      %v2909 = vshll.u32 %v2892, 16
      %v2911 = vrot.slane %v2909, 5
      %v2912 = vsel %vm457, %v2907, %v2911
      %v2914 = vshrl.u32 %v2893, 16
      %v2916 = vrot.slane %v2914, 4
      %v2917 = vshll.u32 %v2893, 16
      %v2919 = vrot.slane %v2917, 5
      %v2920 = vor.u32 %v2916, %v2919
      %v2921 = vrot.slane %v2920, 4
      %v2923 = vshll.u32 %v2894, 16
      %v2925 = vrot.slane %v2923, 5
      %v2926 = vsel %vm457, %v2921, %v2925
      %v2928 = vshrl.u32 %v2895, 16
      %v2930 = vrot.slane %v2928, 4
      %v2931 = vshll.u32 %v2895, 16
      %v2933 = vrot.slane %v2931, 5
      %v2934 = vor.u32 %v2930, %v2933
      %v2935 = vrot.slane %v2934, 4
      %v2937 = vshll.u32 %v2896, 16
      %v2939 = vrot.slane %v2937, 5
      %v2940 = vsel %vm457, %v2935, %v2939
      %v2942 = vshrl.u32 %v2897, 16
      %v2944 = vrot.slane %v2942, 4
      %v2945 = vshll.u32 %v2897, 16
      %v2947 = vrot.slane %v2945, 5
      %v2948 = vor.u32 %v2944, %v2947
      %v2949 = vrot.slane %v2948, 4
      %v2951 = vshll.u32 %v2898, 16
      %v2953 = vrot.slane %v2951, 5
      %v2954 = vsel %vm457, %v2949, %v2953
      %v2955 = vunpack.c.l.b16 %v2912
      %v2956 = vunpack.c.l.b16 %v2926
      %v2957 = vunpack.c.l.b16 %v2940
      %v2958 = vunpack.c.l.b16 %v2954
      %v2959 = vpack.c.b16 %v2956, %v2955
      %v2960 = vpack.c.b16 %v2958, %v2957
      %2961 = vrot.lane.b32.xlu0 %v2959, 56
      %v2962 = vpop.permute.xlu0 %2961
      %2963 = vrot.lane.b32.xlu0 %v2960, 56
      %v2964 = vpop.permute.xlu0 %2963
      %2967 = vst.msk [vmem:[#allocation2] sm:$0xff] %vm968, %v2962
      %2968 = vst.msk [vmem:[#allocation2 + $0x8] sm:$0xff] %vm968, %v2964
      %v2969 = vld [vmem:[%s1068] sm:$0xf]
      %v2970 = vld [vmem:[%s1068 + $0x8] sm:$0xf]
      %v2971 = vld [vmem:[%s1068 + $0x10] sm:$0xf]
      %v2972 = vld [vmem:[%s1068 + $0x18] sm:$0xf]
      %v2977 = vunpack.c.l.b16 %v2969
      %v2978 = vunpack.c.l.b16 %v2970
      %v2979 = vunpack.c.l.b16 %v2971
      %v2980 = vunpack.c.l.b16 %v2972
      %v2981 = vpack.c.b16 %v2978, %v2977
      %v2982 = vpack.c.b16 %v2980, %v2979
      %2985 = vst.msk [vmem:[#allocation3] sm:$0xff] %vm375, %v2981
      %2986 = vst.msk [vmem:[#allocation3 + $0x8] sm:$0xff] %vm375, %v2982
      %v2987 = vld [vmem:[%s1068] sm:$0xf]
      %v2988 = vld [vmem:[%s1068 + $0x4] sm:$0x1]
      %v2989 = vld [vmem:[%s1068 + $0x8] sm:$0xf]
      %v2990 = vld [vmem:[%s1068 + $0xc] sm:$0x1]
      %v2991 = vld [vmem:[%s1068 + $0x10] sm:$0xf]
      %v2992 = vld [vmem:[%s1068 + $0x14] sm:$0x1]
      %v2993 = vld [vmem:[%s1068 + $0x18] sm:$0xf]
      %v2994 = vld [vmem:[%s1068 + $0x1c] sm:$0x1]
      %v2996 = vshrl.u32 %v2987, 16
      %v2998 = vrot.slane %v2996, 4
      %v2999 = vshll.u32 %v2987, 16
      %v3001 = vrot.slane %v2999, 5
      %v3002 = vor.u32 %v2998, %v3001
      %v3003 = vrot.slane %v3002, 4
      %v3005 = vshll.u32 %v2988, 16
      %v3007 = vrot.slane %v3005, 5
      %v3008 = vsel %vm457, %v3003, %v3007
      %v3010 = vshrl.u32 %v2989, 16
      %v3012 = vrot.slane %v3010, 4
      %v3013 = vshll.u32 %v2989, 16
      %v3015 = vrot.slane %v3013, 5
      %v3016 = vor.u32 %v3012, %v3015
      %v3017 = vrot.slane %v3016, 4
      %v3019 = vshll.u32 %v2990, 16
      %v3021 = vrot.slane %v3019, 5
      %v3022 = vsel %vm457, %v3017, %v3021
      %v3024 = vshrl.u32 %v2991, 16
      %v3026 = vrot.slane %v3024, 4
      %v3027 = vshll.u32 %v2991, 16
      %v3029 = vrot.slane %v3027, 5
      %v3030 = vor.u32 %v3026, %v3029
      %v3031 = vrot.slane %v3030, 4
      %v3033 = vshll.u32 %v2992, 16
      %v3035 = vrot.slane %v3033, 5
      %v3036 = vsel %vm457, %v3031, %v3035
      %v3038 = vshrl.u32 %v2993, 16
      %v3040 = vrot.slane %v3038, 4
      %v3041 = vshll.u32 %v2993, 16
      %v3043 = vrot.slane %v3041, 5
      %v3044 = vor.u32 %v3040, %v3043
      %v3045 = vrot.slane %v3044, 4
      %v3047 = vshll.u32 %v2994, 16
      %v3049 = vrot.slane %v3047, 5
      %v3050 = vsel %vm457, %v3045, %v3049
      %v3051 = vunpack.c.l.b16 %v3008
      %v3052 = vunpack.c.l.b16 %v3022
      %v3053 = vunpack.c.l.b16 %v3036
      %v3054 = vunpack.c.l.b16 %v3050
      %v3055 = vpack.c.b16 %v3052, %v3051
      %v3056 = vpack.c.b16 %v3054, %v3053
      %3057 = vrot.lane.b32.xlu0 %v3055, 16
      %v3058 = vpop.permute.xlu0 %3057
      %3059 = vrot.lane.b32.xlu0 %v3056, 16
      %v3060 = vpop.permute.xlu0 %3059
      %3063 = vst.msk [vmem:[#allocation3] sm:$0xff] %vm1065, %v3058
      %3064 = vst.msk [vmem:[#allocation3 + $0x8] sm:$0xff] %vm1065, %v3060
      %s3065 = scalar_lea.vmem %s344, 16
      %v3066 = vld [vmem:[%s3065] sm:$0xf]
      %v3067 = vld [vmem:[%s3065 + $0x8] sm:$0xf]
      %v3068 = vld [vmem:[%s3065 + $0x10] sm:$0xf]
      %v3069 = vld [vmem:[%s3065 + $0x18] sm:$0xf]
      %v3074 = vunpack.c.l.b16 %v3066
      %v3075 = vunpack.c.l.b16 %v3067
      %v3076 = vunpack.c.l.b16 %v3068
      %v3077 = vunpack.c.l.b16 %v3069
      %v3078 = vpack.c.b16 %v3075, %v3074
      %v3079 = vpack.c.b16 %v3077, %v3076
      %3080 = vrot.lane.b32.xlu0 %v3078, 32
      %v3081 = vpop.permute.xlu0 %3080
      %3082 = vrot.lane.b32.xlu0 %v3079, 32
      %v3083 = vpop.permute.xlu0 %3082
      %3086 = vst.msk [vmem:[#allocation3] sm:$0xff] %vm1089, %v3081
      %3087 = vst.msk [vmem:[#allocation3 + $0x8] sm:$0xff] %vm1089, %v3083
      %v3088 = vld [vmem:[%s3065] sm:$0xf]
      %v3089 = vld [vmem:[%s3065 + $0x4] sm:$0x1]
      %v3090 = vld [vmem:[%s3065 + $0x8] sm:$0xf]
      %v3091 = vld [vmem:[%s3065 + $0xc] sm:$0x1]
      %v3092 = vld [vmem:[%s3065 + $0x10] sm:$0xf]
      %v3093 = vld [vmem:[%s3065 + $0x14] sm:$0x1]
      %v3094 = vld [vmem:[%s3065 + $0x18] sm:$0xf]
      %v3095 = vld [vmem:[%s3065 + $0x1c] sm:$0x1]
      %v3097 = vshrl.u32 %v3088, 16
      %v3099 = vrot.slane %v3097, 4
      %v3100 = vshll.u32 %v3088, 16
      %v3102 = vrot.slane %v3100, 5
      %v3103 = vor.u32 %v3099, %v3102
      %v3104 = vrot.slane %v3103, 4
      %v3106 = vshll.u32 %v3089, 16
      %v3108 = vrot.slane %v3106, 5
      %v3109 = vsel %vm457, %v3104, %v3108
      %v3111 = vshrl.u32 %v3090, 16
      %v3113 = vrot.slane %v3111, 4
      %v3114 = vshll.u32 %v3090, 16
      %v3116 = vrot.slane %v3114, 5
      %v3117 = vor.u32 %v3113, %v3116
      %v3118 = vrot.slane %v3117, 4
      %v3120 = vshll.u32 %v3091, 16
      %v3122 = vrot.slane %v3120, 5
      %v3123 = vsel %vm457, %v3118, %v3122
      %v3125 = vshrl.u32 %v3092, 16
      %v3127 = vrot.slane %v3125, 4
      %v3128 = vshll.u32 %v3092, 16
      %v3130 = vrot.slane %v3128, 5
      %v3131 = vor.u32 %v3127, %v3130
      %v3132 = vrot.slane %v3131, 4
      %v3134 = vshll.u32 %v3093, 16
      %v3136 = vrot.slane %v3134, 5
      %v3137 = vsel %vm457, %v3132, %v3136
      %v3139 = vshrl.u32 %v3094, 16
      %v3141 = vrot.slane %v3139, 4
      %v3142 = vshll.u32 %v3094, 16
      %v3144 = vrot.slane %v3142, 5
      %v3145 = vor.u32 %v3141, %v3144
      %v3146 = vrot.slane %v3145, 4
      %v3148 = vshll.u32 %v3095, 16
      %v3150 = vrot.slane %v3148, 5
      %v3151 = vsel %vm457, %v3146, %v3150
      %v3152 = vunpack.c.l.b16 %v3109
      %v3153 = vunpack.c.l.b16 %v3123
      %v3154 = vunpack.c.l.b16 %v3137
      %v3155 = vunpack.c.l.b16 %v3151
      %v3156 = vpack.c.b16 %v3153, %v3152
      %v3157 = vpack.c.b16 %v3155, %v3154
      %3158 = vrot.lane.b32.xlu0 %v3156, 48
      %v3159 = vpop.permute.xlu0 %3158
      %3160 = vrot.lane.b32.xlu0 %v3157, 48
      %v3161 = vpop.permute.xlu0 %3160
      %3164 = vst.msk [vmem:[#allocation3] sm:$0xff] %vm1168, %v3159
      %3165 = vst.msk [vmem:[#allocation3 + $0x8] sm:$0xff] %vm1168, %v3161
      %v3166 = vld [vmem:[#allocation2] sm:$0xff]
      %v3167 = vld [vmem:[#allocation2 + $0x8] sm:$0xff]
      %s3168 = scalar_lea.vmem %s4, 72
      %v3169 = vld [vmem:[%s3168] sm:$0xf]
      %v3170 = vld [vmem:[%s3168 + $0x4] sm:$0xf]
      %v3171 = vld [vmem:[%s3168 + $0x8] sm:$0xf]
      %v3172 = vld [vmem:[%s3168 + $0xc] sm:$0xf]
      %v3173 = vld [vmem:[%s3168 + $0x10] sm:$0xf]
      %v3174 = vld [vmem:[%s3168 + $0x14] sm:$0xf]
      %v3175 = vld [vmem:[%s3168 + $0x18] sm:$0xf]
      %v3176 = vld [vmem:[%s3168 + $0x1c] sm:$0xf]
      %v3177 = vld [vmem:[%s3168 + $0x20] sm:$0xf]
      %v3187 = vunpack.c.l.b16 %v3169
      %v3188 = vunpack.c.l.b16 %v3170
      %v3189 = vunpack.c.l.b16 %v3171
      %v3190 = vunpack.c.l.b16 %v3172
      %v3191 = vunpack.c.l.b16 %v3173
      %v3192 = vunpack.c.l.b16 %v3174
      %v3193 = vunpack.c.l.b16 %v3175
      %v3194 = vunpack.c.l.b16 %v3176
      %v3195 = vunpack.c.l.b16 %v3177
      %v3196 = vpack.c.b16 %v3188, %v3187
      %v3197 = vpack.c.b16 %v3190, %v3189
      %v3198 = vpack.c.b16 %v3192, %v3191
      %v3199 = vpack.c.b16 %v3194, %v3193
      %v3200 = vpack.c.b16 %v3195, %v3195
      %v3206 = vsel %vm1209, %v3166, 0
      %v3209 = vsel %vm1209, %v3167, 0
      %v3212 = vsel %vm1216, %v3200, 0
      %3214 = vmatprep.subr.bf16.mxu0 0
      %3215 = vmatpush1.bf16.msra.mxu0 %v3196
      %3216 = vmatprep.subr.bf16.mxu0 0
      %3217 = vmatpush1.bf16.msra.mxu0 %v3197
      %3218 = vmatprep.subr.bf16.mxu0 0
      %3219 = vmatpush1.bf16.msra.mxu0 %v3198
      %3220 = vmatprep.subr.bf16.mxu0 0
      %3221 = vmatpush1.bf16.msra.mxu0 %v3199
      %3222 = vmatprep.subr.bf16.mxu0 0
      %3223 = vmatpush1.bf16.msra.mxu0 %v3212
      %3224 = vmatprep.subr.bf16.mxu0 0
      %3225 = vmatpush1.bf16.msra.mxu0 0
      %3226 = vmatprep.subr.bf16.mxu0 0
      %3227 = vmatpush1.bf16.msra.mxu0 0
      %3228 = vmatprep.subr.bf16.mxu0 0
      %3229 = vmatpush1.bf16.msra.mxu0 0
      %3230 = vmatprep.subr.bf16.mxu0 0
      %3231 = vmatpush1.bf16.msra.mxu0 0
      %3232 = vmatprep.subr.bf16.mxu0 0
      %3233 = vmatpush1.bf16.msra.mxu0 0
      %3234 = vmatprep.subr.bf16.mxu0 0
      %3235 = vmatpush1.bf16.msra.mxu0 0
      %3236 = vmatprep.subr.bf16.mxu0 0
      %3237 = vmatpush1.bf16.msra.mxu0 0
      %3238 = vmatprep.subr.bf16.mxu0 0
      %3239 = vmatpush1.bf16.msra.mxu0 0
      %3240 = vmatprep.subr.bf16.mxu0 0
      %3241 = vmatpush1.bf16.msra.mxu0 0
      %3242 = vmatprep.subr.bf16.mxu0 0
      %3243 = vmatpush1.bf16.msra.mxu0 0
      %3244 = vmatprep.subr.bf16.mxu0 0
      %3245 = vmatpush1.bf16.msra.mxu0 0
      %3246 = vmatprep.mubr.bf16.mxu0 0
      %3247 = vmatmul.mubr.bf16.gmra.mrb[0].mxu0 %v3206
      %v3248 = vpop.f32.mrb[0].mxu0
      %v3249 = vadd.f32 0.0, %v3248
      %v3250 = vpop.f32.mrb[0].mxu0
      %v3251 = vpop.f32.mrb[0].mxu0
      %v3252 = vadd.f32 0.0, %v3251
      %v3253 = vpop.f32.mrb[0].mxu0
      %3254 = vmatprep.mubr.bf16.mxu0 0
      %3255 = vmatmul.mubr.bf16.gmra.mrb[0].mxu0 %v3209
      %v3256 = vpop.f32.mrb[0].mxu0
      %v3257 = vadd.f32 0.0, %v3256
      %v3258 = vpop.f32.mrb[0].mxu0
      %v3259 = vpop.f32.mrb[0].mxu0
      %v3260 = vadd.f32 0.0, %v3259
      %v3261 = vpop.f32.mrb[0].mxu0
      %3262 = vdwg.mxu0
      %v3263 = vld [vmem:[#allocation3] sm:$0xff]
      %v3264 = vld [vmem:[#allocation3 + $0x8] sm:$0xff]
      %s3265 = scalar_lea.vmem %s5, 64
      %v3266 = vld [vmem:[%s3265] sm:$0xf]
      %v3267 = vld [vmem:[%s3265 + $0x4] sm:$0xf]
      %v3268 = vld [vmem:[%s3265 + $0x8] sm:$0xf]
      %v3269 = vld [vmem:[%s3265 + $0xc] sm:$0xf]
      %v3270 = vld [vmem:[%s3265 + $0x10] sm:$0xf]
      %v3271 = vld [vmem:[%s3265 + $0x14] sm:$0xf]
      %v3272 = vld [vmem:[%s3265 + $0x18] sm:$0xf]
      %v3273 = vld [vmem:[%s3265 + $0x1c] sm:$0xf]
      %v3274 = vmul.f32 %v3249, %v1282
      %v3275 = vmul.f32 %v3252, %v1282
      %v3276 = vmul.f32 %v3257, %v1282
      %v3277 = vmul.f32 %v3260, %v1282
      %v3286 = vunpack.c.l.b16 %v3266
      %v3287 = vunpack.c.l.b16 %v3267
      %v3288 = vunpack.c.l.b16 %v3268
      %v3289 = vunpack.c.l.b16 %v3269
      %v3290 = vunpack.c.l.b16 %v3270
      %v3291 = vunpack.c.l.b16 %v3271
      %v3292 = vunpack.c.l.b16 %v3272
      %v3293 = vunpack.c.l.b16 %v3273
      %v3294 = vpack.c.b16 %v3287, %v3286
      %v3295 = vpack.c.b16 %v3289, %v3288
      %v3296 = vpack.c.b16 %v3291, %v3290
      %v3297 = vpack.c.b16 %v3293, %v3292
      %v3303 = vsel %vm1311, %v3263, 0
      %v3306 = vsel %vm1311, %v3264, 0
      %3308 = vmatprep.subr.bf16.mxu0 0
      %3309 = vmatpush1.bf16.msra.mxu0 %v3294
      %3310 = vmatprep.subr.bf16.mxu0 0
      %3311 = vmatpush1.bf16.msra.mxu0 %v3295
      %3312 = vmatprep.subr.bf16.mxu0 0
      %3313 = vmatpush1.bf16.msra.mxu0 %v3296
      %3314 = vmatprep.subr.bf16.mxu0 0
      %3315 = vmatpush1.bf16.msra.mxu0 %v3297
      %3316 = vmatprep.subr.bf16.mxu0 0
      %3317 = vmatpush1.bf16.msra.mxu0 0
      %3318 = vmatprep.subr.bf16.mxu0 0
      %3319 = vmatpush1.bf16.msra.mxu0 0
      %3320 = vmatprep.subr.bf16.mxu0 0
      %3321 = vmatpush1.bf16.msra.mxu0 0
      %3322 = vmatprep.subr.bf16.mxu0 0
      %3323 = vmatpush1.bf16.msra.mxu0 0
      %3324 = vmatprep.subr.bf16.mxu0 0
      %3325 = vmatpush1.bf16.msra.mxu0 0
      %3326 = vmatprep.subr.bf16.mxu0 0
      %3327 = vmatpush1.bf16.msra.mxu0 0
      %3328 = vmatprep.subr.bf16.mxu0 0
      %3329 = vmatpush1.bf16.msra.mxu0 0
      %3330 = vmatprep.subr.bf16.mxu0 0
      %3331 = vmatpush1.bf16.msra.mxu0 0
      %3332 = vmatprep.subr.bf16.mxu0 0
      %3333 = vmatpush1.bf16.msra.mxu0 0
      %3334 = vmatprep.subr.bf16.mxu0 0
      %3335 = vmatpush1.bf16.msra.mxu0 0
      %3336 = vmatprep.subr.bf16.mxu0 0
      %3337 = vmatpush1.bf16.msra.mxu0 0
      %3338 = vmatprep.subr.bf16.mxu0 0
      %3339 = vmatpush1.bf16.msra.mxu0 0
      %3340 = vmatprep.mubr.bf16.mxu0 0
      %3341 = vmatmul.mubr.bf16.gmra.mrb[0].mxu0 %v3303
      %v3342 = vpop.f32.mrb[0].mxu0
      %v3343 = vadd.f32 %v3274, %v3342
      %v3344 = vpop.f32.mrb[0].mxu0
      %v3345 = vpop.f32.mrb[0].mxu0
      %v3346 = vadd.f32 %v3275, %v3345
      %v3347 = vpop.f32.mrb[0].mxu0
      %3348 = vmatprep.mubr.bf16.mxu0 0
      %3349 = vmatmul.mubr.bf16.gmra.mrb[0].mxu0 %v3306
      %v3350 = vpop.f32.mrb[0].mxu0
      %v3351 = vadd.f32 %v3276, %v3350
      %v3352 = vpop.f32.mrb[0].mxu0
      %v3353 = vpop.f32.mrb[0].mxu0
      %v3354 = vadd.f32 %v3277, %v3353
      %v3355 = vpop.f32.mrb[0].mxu0
      %3356 = vdwg.mxu0
      %v3357 = vadd.f32 %v3343, %v1370
      %v3358 = vadd.f32 %v3346, %v1370
      %v3359 = vadd.f32 %v3351, %v1370
      %v3360 = vadd.f32 %v3354, %v1370
      %v3361 = vmax.f32 %v3357, 0.0
      %v3362 = vmax.f32 %v3358, 0.0
      %v3363 = vmax.f32 %v3359, 0.0
      %v3364 = vmax.f32 %v3360, 0.0
      %s3365 = scalar_lea.vmem %s362, 64
      %3366 = vst.msk [vmem:[%s3365] sm:$0xff] %vm444, %v3361
      %3367 = vst.msk [vmem:[%s3365 + $0x8] sm:$0xff] %vm444, %v3362
      %3368 = vst.msk [vmem:[%s3365 + $0x10] sm:$0xff] %vm444, %v3363
      %3369 = vst.msk [vmem:[%s3365 + $0x18] sm:$0xff] %vm444, %v3364
      %v3370 = vld [vmem:[%s608] sm:$0xf]
      %v3371 = vld [vmem:[%s608 + $0x4] sm:$0x1]
      %v3372 = vld [vmem:[%s608 + $0x8] sm:$0xf]
      %v3373 = vld [vmem:[%s608 + $0xc] sm:$0x1]
      %v3374 = vld [vmem:[%s608 + $0x10] sm:$0xf]
      %v3375 = vld [vmem:[%s608 + $0x14] sm:$0x1]
      %v3376 = vld [vmem:[%s608 + $0x18] sm:$0xf]
      %v3377 = vld [vmem:[%s608 + $0x1c] sm:$0x1]
      %v3379 = vshrl.u32 %v3370, 16
      %v3381 = vrot.slane %v3379, 4
      %v3382 = vshll.u32 %v3370, 16
      %v3384 = vrot.slane %v3382, 5
      %v3385 = vor.u32 %v3381, %v3384
      %v3386 = vrot.slane %v3385, 4
      %v3388 = vshll.u32 %v3371, 16
      %v3390 = vrot.slane %v3388, 5
      %v3391 = vsel %vm457, %v3386, %v3390
      %v3393 = vshrl.u32 %v3372, 16
      %v3395 = vrot.slane %v3393, 4
      %v3396 = vshll.u32 %v3372, 16
      %v3398 = vrot.slane %v3396, 5
      %v3399 = vor.u32 %v3395, %v3398
      %v3400 = vrot.slane %v3399, 4
      %v3402 = vshll.u32 %v3373, 16
      %v3404 = vrot.slane %v3402, 5
      %v3405 = vsel %vm457, %v3400, %v3404
      %v3407 = vshrl.u32 %v3374, 16
      %v3409 = vrot.slane %v3407, 4
      %v3410 = vshll.u32 %v3374, 16
      %v3412 = vrot.slane %v3410, 5
      %v3413 = vor.u32 %v3409, %v3412
      %v3414 = vrot.slane %v3413, 4
      %v3416 = vshll.u32 %v3375, 16
      %v3418 = vrot.slane %v3416, 5
      %v3419 = vsel %vm457, %v3414, %v3418
      %v3421 = vshrl.u32 %v3376, 16
      %v3423 = vrot.slane %v3421, 4
      %v3424 = vshll.u32 %v3376, 16
      %v3426 = vrot.slane %v3424, 5
      %v3427 = vor.u32 %v3423, %v3426
      %v3428 = vrot.slane %v3427, 4
      %v3430 = vshll.u32 %v3377, 16
      %v3432 = vrot.slane %v3430, 5
      %v3433 = vsel %vm457, %v3428, %v3432
      %v3434 = vunpack.c.l.b16 %v3391
      %v3435 = vunpack.c.l.b16 %v3405
      %v3436 = vunpack.c.l.b16 %v3419
      %v3437 = vunpack.c.l.b16 %v3433
      %v3438 = vpack.c.b16 %v3435, %v3434
      %v3439 = vpack.c.b16 %v3437, %v3436
      %3442 = vst.msk [vmem:[%s1459] sm:$0xff] %vm444, %v3438
      %3443 = vst.msk [vmem:[%s1459 + $0x8] sm:$0xff] %vm444, %v3439
      %v3444 = vld [vmem:[%s608] sm:$0xf]
      %v3445 = vld [vmem:[%s608 + $0x4] sm:$0x1]
      %v3446 = vld [vmem:[%s608 + $0x8] sm:$0xf]
      %v3447 = vld [vmem:[%s608 + $0xc] sm:$0x1]
      %v3448 = vld [vmem:[%s608 + $0x10] sm:$0xf]
      %v3449 = vld [vmem:[%s608 + $0x14] sm:$0x1]
      %v3450 = vld [vmem:[%s608 + $0x18] sm:$0xf]
      %v3451 = vld [vmem:[%s608 + $0x1c] sm:$0x1]
      %v3453 = vshrl.u32 %v3444, 16
      %v3455 = vrot.slane %v3453, 4
      %v3456 = vshll.u32 %v3444, 16
      %v3458 = vrot.slane %v3456, 5
      %v3459 = vor.u32 %v3455, %v3458
      %v3460 = vrot.slane %v3459, 4
      %v3462 = vshll.u32 %v3445, 16
      %v3464 = vrot.slane %v3462, 5
      %v3465 = vsel %vm457, %v3460, %v3464
      %v3467 = vshrl.u32 %v3446, 16
      %v3469 = vrot.slane %v3467, 4
      %v3470 = vshll.u32 %v3446, 16
      %v3472 = vrot.slane %v3470, 5
      %v3473 = vor.u32 %v3469, %v3472
      %v3474 = vrot.slane %v3473, 4
      %v3476 = vshll.u32 %v3447, 16
      %v3478 = vrot.slane %v3476, 5
      %v3479 = vsel %vm457, %v3474, %v3478
      %v3481 = vshrl.u32 %v3448, 16
      %v3483 = vrot.slane %v3481, 4
      %v3484 = vshll.u32 %v3448, 16
      %v3486 = vrot.slane %v3484, 5
      %v3487 = vor.u32 %v3483, %v3486
      %v3488 = vrot.slane %v3487, 4
      %v3490 = vshll.u32 %v3449, 16
      %v3492 = vrot.slane %v3490, 5
      %v3493 = vsel %vm457, %v3488, %v3492
      %v3495 = vshrl.u32 %v3450, 16
      %v3497 = vrot.slane %v3495, 4
      %v3498 = vshll.u32 %v3450, 16
      %v3500 = vrot.slane %v3498, 5
      %v3501 = vor.u32 %v3497, %v3500
      %v3502 = vrot.slane %v3501, 4
      %v3504 = vshll.u32 %v3451, 16
      %v3506 = vrot.slane %v3504, 5
      %v3507 = vsel %vm457, %v3502, %v3506
      %v3508 = vunpack.c.l.b16 %v3465
      %v3509 = vunpack.c.l.b16 %v3479
      %v3510 = vunpack.c.l.b16 %v3493
      %v3511 = vunpack.c.l.b16 %v3507
      %v3512 = vpack.c.b16 %v3509, %v3508
      %v3513 = vpack.c.b16 %v3511, %v3510
      %3516 = vst.msk [vmem:[%s1459] sm:$0xff] %vm526, %v3512
      %3517 = vst.msk [vmem:[%s1459 + $0x8] sm:$0xff] %vm526, %v3513
      %v3518 = vld [vmem:[%s608] sm:$0xe]
      %v3519 = vld [vmem:[%s608 + $0x4] sm:$0x1]
      %v3520 = vld [vmem:[%s608 + $0x8] sm:$0xe]
      %v3521 = vld [vmem:[%s608 + $0xc] sm:$0x1]
      %v3522 = vld [vmem:[%s608 + $0x10] sm:$0xe]
      %v3523 = vld [vmem:[%s608 + $0x14] sm:$0x1]
      %v3524 = vld [vmem:[%s608 + $0x18] sm:$0xe]
      %v3525 = vld [vmem:[%s608 + $0x1c] sm:$0x1]
      %v3534 = vrot.slane %v3518, 5
      %v3535 = vrot.slane %v3534, 4
      %v3536 = vrot.slane %v3519, 5
      %v3537 = vsel %vm1558, %v3535, %v3536
      %v3538 = vrot.slane %v3520, 5
      %v3539 = vrot.slane %v3538, 4
      %v3540 = vrot.slane %v3521, 5
      %v3541 = vsel %vm1558, %v3539, %v3540
      %v3542 = vrot.slane %v3522, 5
      %v3543 = vrot.slane %v3542, 4
      %v3544 = vrot.slane %v3523, 5
      %v3545 = vsel %vm1558, %v3543, %v3544
      %v3546 = vrot.slane %v3524, 5
      %v3547 = vrot.slane %v3546, 4
      %v3548 = vrot.slane %v3525, 5
      %v3549 = vsel %vm1558, %v3547, %v3548
      %v3550 = vunpack.c.l.b16 %v3537
      %v3551 = vunpack.c.l.b16 %v3541
      %v3552 = vunpack.c.l.b16 %v3545
      %v3553 = vunpack.c.l.b16 %v3549
      %v3554 = vpack.c.b16 %v3551, %v3550
      %v3555 = vpack.c.b16 %v3553, %v3552
      %3556 = vrot.lane.b32.xlu0 %v3554, 16
      %v3557 = vpop.permute.xlu0 %3556
      %3558 = vrot.lane.b32.xlu0 %v3555, 16
      %v3559 = vpop.permute.xlu0 %3558
      %3562 = vst.msk [vmem:[%s1459] sm:$0xff] %vm605, %v3557
      %3563 = vst.msk [vmem:[%s1459 + $0x8] sm:$0xff] %vm605, %v3559
      %v3564 = vld [vmem:[%s608] sm:$0xf]
      %v3565 = vld [vmem:[%s608 + $0x4] sm:$0x1]
      %v3566 = vld [vmem:[%s608 + $0x8] sm:$0xf]
      %v3567 = vld [vmem:[%s608 + $0xc] sm:$0x1]
      %v3568 = vld [vmem:[%s608 + $0x10] sm:$0xf]
      %v3569 = vld [vmem:[%s608 + $0x14] sm:$0x1]
      %v3570 = vld [vmem:[%s608 + $0x18] sm:$0xf]
      %v3571 = vld [vmem:[%s608 + $0x1c] sm:$0x1]
      %v3573 = vshrl.u32 %v3564, 16
      %v3575 = vrot.slane %v3573, 4
      %v3576 = vshll.u32 %v3564, 16
      %v3578 = vrot.slane %v3576, 5
      %v3579 = vor.u32 %v3575, %v3578
      %v3580 = vrot.slane %v3579, 4
      %v3582 = vshll.u32 %v3565, 16
      %v3584 = vrot.slane %v3582, 5
      %v3585 = vsel %vm457, %v3580, %v3584
      %v3587 = vshrl.u32 %v3566, 16
      %v3589 = vrot.slane %v3587, 4
      %v3590 = vshll.u32 %v3566, 16
      %v3592 = vrot.slane %v3590, 5
      %v3593 = vor.u32 %v3589, %v3592
      %v3594 = vrot.slane %v3593, 4
      %v3596 = vshll.u32 %v3567, 16
      %v3598 = vrot.slane %v3596, 5
      %v3599 = vsel %vm457, %v3594, %v3598
      %v3601 = vshrl.u32 %v3568, 16
      %v3603 = vrot.slane %v3601, 4
      %v3604 = vshll.u32 %v3568, 16
      %v3606 = vrot.slane %v3604, 5
      %v3607 = vor.u32 %v3603, %v3606
      %v3608 = vrot.slane %v3607, 4
      %v3610 = vshll.u32 %v3569, 16
      %v3612 = vrot.slane %v3610, 5
      %v3613 = vsel %vm457, %v3608, %v3612
      %v3615 = vshrl.u32 %v3570, 16
      %v3617 = vrot.slane %v3615, 4
      %v3618 = vshll.u32 %v3570, 16
      %v3620 = vrot.slane %v3618, 5
      %v3621 = vor.u32 %v3617, %v3620
      %v3622 = vrot.slane %v3621, 4
      %v3624 = vshll.u32 %v3571, 16
      %v3626 = vrot.slane %v3624, 5
      %v3627 = vsel %vm457, %v3622, %v3626
      %v3628 = vunpack.c.l.b16 %v3585
      %v3629 = vunpack.c.l.b16 %v3599
      %v3630 = vunpack.c.l.b16 %v3613
      %v3631 = vunpack.c.l.b16 %v3627
      %v3632 = vpack.c.b16 %v3629, %v3628
      %v3633 = vpack.c.b16 %v3631, %v3630
      %3634 = vrot.lane.b32.xlu0 %v3632, 8
      %v3635 = vpop.permute.xlu0 %3634
      %3636 = vrot.lane.b32.xlu0 %v3633, 8
      %v3637 = vpop.permute.xlu0 %3636
      %3640 = vst.msk [vmem:[%s1459] sm:$0xff] %vm629, %v3635
      %3641 = vst.msk [vmem:[%s1459 + $0x8] sm:$0xff] %vm629, %v3637
      %v3642 = vld [vmem:[%s608] sm:$0xf]
      %v3643 = vld [vmem:[%s608 + $0x4] sm:$0x1]
      %v3644 = vld [vmem:[%s608 + $0x8] sm:$0xf]
      %v3645 = vld [vmem:[%s608 + $0xc] sm:$0x1]
      %v3646 = vld [vmem:[%s608 + $0x10] sm:$0xf]
      %v3647 = vld [vmem:[%s608 + $0x14] sm:$0x1]
      %v3648 = vld [vmem:[%s608 + $0x18] sm:$0xf]
      %v3649 = vld [vmem:[%s608 + $0x1c] sm:$0x1]
      %v3651 = vshrl.u32 %v3642, 16
      %v3653 = vrot.slane %v3651, 4
      %v3654 = vshll.u32 %v3642, 16
      %v3656 = vrot.slane %v3654, 5
      %v3657 = vor.u32 %v3653, %v3656
      %v3658 = vrot.slane %v3657, 4
      %v3660 = vshll.u32 %v3643, 16
      %v3662 = vrot.slane %v3660, 5
      %v3663 = vsel %vm457, %v3658, %v3662
      %v3665 = vshrl.u32 %v3644, 16
      %v3667 = vrot.slane %v3665, 4
      %v3668 = vshll.u32 %v3644, 16
      %v3670 = vrot.slane %v3668, 5
      %v3671 = vor.u32 %v3667, %v3670
      %v3672 = vrot.slane %v3671, 4
      %v3674 = vshll.u32 %v3645, 16
      %v3676 = vrot.slane %v3674, 5
      %v3677 = vsel %vm457, %v3672, %v3676
      %v3679 = vshrl.u32 %v3646, 16
      %v3681 = vrot.slane %v3679, 4
      %v3682 = vshll.u32 %v3646, 16
      %v3684 = vrot.slane %v3682, 5
      %v3685 = vor.u32 %v3681, %v3684
      %v3686 = vrot.slane %v3685, 4
      %v3688 = vshll.u32 %v3647, 16
      %v3690 = vrot.slane %v3688, 5
      %v3691 = vsel %vm457, %v3686, %v3690
      %v3693 = vshrl.u32 %v3648, 16
      %v3695 = vrot.slane %v3693, 4
      %v3696 = vshll.u32 %v3648, 16
      %v3698 = vrot.slane %v3696, 5
      %v3699 = vor.u32 %v3695, %v3698
      %v3700 = vrot.slane %v3699, 4
      %v3702 = vshll.u32 %v3649, 16
      %v3704 = vrot.slane %v3702, 5
      %v3705 = vsel %vm457, %v3700, %v3704
      %v3706 = vunpack.c.l.b16 %v3663
      %v3707 = vunpack.c.l.b16 %v3677
      %v3708 = vunpack.c.l.b16 %v3691
      %v3709 = vunpack.c.l.b16 %v3705
      %v3710 = vpack.c.b16 %v3707, %v3706
      %v3711 = vpack.c.b16 %v3709, %v3708
      %3712 = vrot.lane.b32.xlu0 %v3710, 8
      %v3713 = vpop.permute.xlu0 %3712
      %3714 = vrot.lane.b32.xlu0 %v3711, 8
      %v3715 = vpop.permute.xlu0 %3714
      %3718 = vst.msk [vmem:[%s1459] sm:$0xff] %vm708, %v3713
      %3719 = vst.msk [vmem:[%s1459 + $0x8] sm:$0xff] %vm708, %v3715
      %v3720 = vld [vmem:[%s608] sm:$0xe]
      %v3721 = vld [vmem:[%s608 + $0x4] sm:$0x1]
      %v3722 = vld [vmem:[%s608 + $0x8] sm:$0xe]
      %v3723 = vld [vmem:[%s608 + $0xc] sm:$0x1]
      %v3724 = vld [vmem:[%s608 + $0x10] sm:$0xe]
      %v3725 = vld [vmem:[%s608 + $0x14] sm:$0x1]
      %v3726 = vld [vmem:[%s608 + $0x18] sm:$0xe]
      %v3727 = vld [vmem:[%s608 + $0x1c] sm:$0x1]
      %v3736 = vrot.slane %v3720, 5
      %v3737 = vrot.slane %v3736, 4
      %v3738 = vrot.slane %v3721, 5
      %v3739 = vsel %vm1558, %v3737, %v3738
      %v3740 = vrot.slane %v3722, 5
      %v3741 = vrot.slane %v3740, 4
      %v3742 = vrot.slane %v3723, 5
      %v3743 = vsel %vm1558, %v3741, %v3742
      %v3744 = vrot.slane %v3724, 5
      %v3745 = vrot.slane %v3744, 4
      %v3746 = vrot.slane %v3725, 5
      %v3747 = vsel %vm1558, %v3745, %v3746
      %v3748 = vrot.slane %v3726, 5
      %v3749 = vrot.slane %v3748, 4
      %v3750 = vrot.slane %v3727, 5
      %v3751 = vsel %vm1558, %v3749, %v3750
      %v3752 = vunpack.c.l.b16 %v3739
      %v3753 = vunpack.c.l.b16 %v3743
      %v3754 = vunpack.c.l.b16 %v3747
      %v3755 = vunpack.c.l.b16 %v3751
      %v3756 = vpack.c.b16 %v3753, %v3752
      %v3757 = vpack.c.b16 %v3755, %v3754
      %3758 = vrot.lane.b32.xlu0 %v3756, 24
      %v3759 = vpop.permute.xlu0 %3758
      %3760 = vrot.lane.b32.xlu0 %v3757, 24
      %v3761 = vpop.permute.xlu0 %3760
      %3764 = vst.msk [vmem:[%s1459] sm:$0xff] %vm787, %v3759
      %3765 = vst.msk [vmem:[%s1459 + $0x8] sm:$0xff] %vm787, %v3761
      %v3766 = vld [vmem:[%s2790] sm:$0xf]
      %v3767 = vld [vmem:[%s2790 + $0x4] sm:$0x1]
      %v3768 = vld [vmem:[%s2790 + $0x8] sm:$0xf]
      %v3769 = vld [vmem:[%s2790 + $0xc] sm:$0x1]
      %v3770 = vld [vmem:[%s2790 + $0x10] sm:$0xf]
      %v3771 = vld [vmem:[%s2790 + $0x14] sm:$0x1]
      %v3772 = vld [vmem:[%s2790 + $0x18] sm:$0xf]
      %v3773 = vld [vmem:[%s2790 + $0x1c] sm:$0x1]
      %v3775 = vshrl.u32 %v3766, 16
      %v3777 = vrot.slane %v3775, 4
      %v3778 = vshll.u32 %v3766, 16
      %v3780 = vrot.slane %v3778, 5
      %v3781 = vor.u32 %v3777, %v3780
      %v3782 = vrot.slane %v3781, 4
      %v3784 = vshll.u32 %v3767, 16
      %v3786 = vrot.slane %v3784, 5
      %v3787 = vsel %vm457, %v3782, %v3786
      %v3789 = vshrl.u32 %v3768, 16
      %v3791 = vrot.slane %v3789, 4
      %v3792 = vshll.u32 %v3768, 16
      %v3794 = vrot.slane %v3792, 5
      %v3795 = vor.u32 %v3791, %v3794
      %v3796 = vrot.slane %v3795, 4
      %v3798 = vshll.u32 %v3769, 16
      %v3800 = vrot.slane %v3798, 5
      %v3801 = vsel %vm457, %v3796, %v3800
      %v3803 = vshrl.u32 %v3770, 16
      %v3805 = vrot.slane %v3803, 4
      %v3806 = vshll.u32 %v3770, 16
      %v3808 = vrot.slane %v3806, 5
      %v3809 = vor.u32 %v3805, %v3808
      %v3810 = vrot.slane %v3809, 4
      %v3812 = vshll.u32 %v3771, 16
      %v3814 = vrot.slane %v3812, 5
      %v3815 = vsel %vm457, %v3810, %v3814
      %v3817 = vshrl.u32 %v3772, 16
      %v3819 = vrot.slane %v3817, 4
      %v3820 = vshll.u32 %v3772, 16
      %v3822 = vrot.slane %v3820, 5
      %v3823 = vor.u32 %v3819, %v3822
      %v3824 = vrot.slane %v3823, 4
      %v3826 = vshll.u32 %v3773, 16
      %v3828 = vrot.slane %v3826, 5
      %v3829 = vsel %vm457, %v3824, %v3828
      %v3830 = vunpack.c.l.b16 %v3787
      %v3831 = vunpack.c.l.b16 %v3801
      %v3832 = vunpack.c.l.b16 %v3815
      %v3833 = vunpack.c.l.b16 %v3829
      %v3834 = vpack.c.b16 %v3831, %v3830
      %v3835 = vpack.c.b16 %v3833, %v3832
      %3836 = vrot.lane.b32.xlu0 %v3834, 48
      %v3837 = vpop.permute.xlu0 %3836
      %3838 = vrot.lane.b32.xlu0 %v3835, 48
      %v3839 = vpop.permute.xlu0 %3838
      %3842 = vst.msk [vmem:[%s1459] sm:$0xff] %vm810, %v3837
      %3843 = vst.msk [vmem:[%s1459 + $0x8] sm:$0xff] %vm810, %v3839
      %v3844 = vld [vmem:[%s2790] sm:$0xf]
      %v3845 = vld [vmem:[%s2790 + $0x4] sm:$0x1]
      %v3846 = vld [vmem:[%s2790 + $0x8] sm:$0xf]
      %v3847 = vld [vmem:[%s2790 + $0xc] sm:$0x1]
      %v3848 = vld [vmem:[%s2790 + $0x10] sm:$0xf]
      %v3849 = vld [vmem:[%s2790 + $0x14] sm:$0x1]
      %v3850 = vld [vmem:[%s2790 + $0x18] sm:$0xf]
      %v3851 = vld [vmem:[%s2790 + $0x1c] sm:$0x1]
      %v3853 = vshrl.u32 %v3844, 16
      %v3855 = vrot.slane %v3853, 4
      %v3856 = vshll.u32 %v3844, 16
      %v3858 = vrot.slane %v3856, 5
      %v3859 = vor.u32 %v3855, %v3858
      %v3860 = vrot.slane %v3859, 4
      %v3862 = vshll.u32 %v3845, 16
      %v3864 = vrot.slane %v3862, 5
      %v3865 = vsel %vm457, %v3860, %v3864
      %v3867 = vshrl.u32 %v3846, 16
      %v3869 = vrot.slane %v3867, 4
      %v3870 = vshll.u32 %v3846, 16
      %v3872 = vrot.slane %v3870, 5
      %v3873 = vor.u32 %v3869, %v3872
      %v3874 = vrot.slane %v3873, 4
      %v3876 = vshll.u32 %v3847, 16
      %v3878 = vrot.slane %v3876, 5
      %v3879 = vsel %vm457, %v3874, %v3878
      %v3881 = vshrl.u32 %v3848, 16
      %v3883 = vrot.slane %v3881, 4
      %v3884 = vshll.u32 %v3848, 16
      %v3886 = vrot.slane %v3884, 5
      %v3887 = vor.u32 %v3883, %v3886
      %v3888 = vrot.slane %v3887, 4
      %v3890 = vshll.u32 %v3849, 16
      %v3892 = vrot.slane %v3890, 5
      %v3893 = vsel %vm457, %v3888, %v3892
      %v3895 = vshrl.u32 %v3850, 16
      %v3897 = vrot.slane %v3895, 4
      %v3898 = vshll.u32 %v3850, 16
      %v3900 = vrot.slane %v3898, 5
      %v3901 = vor.u32 %v3897, %v3900
      %v3902 = vrot.slane %v3901, 4
      %v3904 = vshll.u32 %v3851, 16
      %v3906 = vrot.slane %v3904, 5
      %v3907 = vsel %vm457, %v3902, %v3906
      %v3908 = vunpack.c.l.b16 %v3865
      %v3909 = vunpack.c.l.b16 %v3879
      %v3910 = vunpack.c.l.b16 %v3893
      %v3911 = vunpack.c.l.b16 %v3907
      %v3912 = vpack.c.b16 %v3909, %v3908
      %v3913 = vpack.c.b16 %v3911, %v3910
      %3914 = vrot.lane.b32.xlu0 %v3912, 48
      %v3915 = vpop.permute.xlu0 %3914
      %3916 = vrot.lane.b32.xlu0 %v3913, 48
      %v3917 = vpop.permute.xlu0 %3916
      %3920 = vst.msk [vmem:[%s1459] sm:$0xff] %vm889, %v3915
      %3921 = vst.msk [vmem:[%s1459 + $0x8] sm:$0xff] %vm889, %v3917
      %v3922 = vld [vmem:[%s2790] sm:$0xe]
      %v3923 = vld [vmem:[%s2790 + $0x4] sm:$0x1]
      %v3924 = vld [vmem:[%s2790 + $0x8] sm:$0xe]
      %v3925 = vld [vmem:[%s2790 + $0xc] sm:$0x1]
      %v3926 = vld [vmem:[%s2790 + $0x10] sm:$0xe]
      %v3927 = vld [vmem:[%s2790 + $0x14] sm:$0x1]
      %v3928 = vld [vmem:[%s2790 + $0x18] sm:$0xe]
      %v3929 = vld [vmem:[%s2790 + $0x1c] sm:$0x1]
      %v3938 = vrot.slane %v3922, 5
      %v3939 = vrot.slane %v3938, 4
      %v3940 = vrot.slane %v3923, 5
      %v3941 = vsel %vm1558, %v3939, %v3940
      %v3942 = vrot.slane %v3924, 5
      %v3943 = vrot.slane %v3942, 4
      %v3944 = vrot.slane %v3925, 5
      %v3945 = vsel %vm1558, %v3943, %v3944
      %v3946 = vrot.slane %v3926, 5
      %v3947 = vrot.slane %v3946, 4
      %v3948 = vrot.slane %v3927, 5
      %v3949 = vsel %vm1558, %v3947, %v3948
      %v3950 = vrot.slane %v3928, 5
      %v3951 = vrot.slane %v3950, 4
      %v3952 = vrot.slane %v3929, 5
      %v3953 = vsel %vm1558, %v3951, %v3952
      %v3954 = vunpack.c.l.b16 %v3941
      %v3955 = vunpack.c.l.b16 %v3945
      %v3956 = vunpack.c.l.b16 %v3949
      %v3957 = vunpack.c.l.b16 %v3953
      %v3958 = vpack.c.b16 %v3955, %v3954
      %v3959 = vpack.c.b16 %v3957, %v3956
      %3960 = vrot.lane.b32.xlu0 %v3958, 64
      %v3961 = vpop.permute.xlu0 %3960
      %3962 = vrot.lane.b32.xlu0 %v3959, 64
      %v3963 = vpop.permute.xlu0 %3962
      %3966 = vst.msk [vmem:[%s1459] sm:$0xff] %vm968, %v3961
      %3967 = vst.msk [vmem:[%s1459 + $0x8] sm:$0xff] %vm968, %v3963
      %v3968 = vld [vmem:[%s1068] sm:$0xf]
      %v3969 = vld [vmem:[%s1068 + $0x4] sm:$0x1]
      %v3970 = vld [vmem:[%s1068 + $0x8] sm:$0xf]
      %v3971 = vld [vmem:[%s1068 + $0xc] sm:$0x1]
      %v3972 = vld [vmem:[%s1068 + $0x10] sm:$0xf]
      %v3973 = vld [vmem:[%s1068 + $0x14] sm:$0x1]
      %v3974 = vld [vmem:[%s1068 + $0x18] sm:$0xf]
      %v3975 = vld [vmem:[%s1068 + $0x1c] sm:$0x1]
      %v3977 = vshrl.u32 %v3968, 16
      %v3979 = vrot.slane %v3977, 4
      %v3980 = vshll.u32 %v3968, 16
      %v3982 = vrot.slane %v3980, 5
      %v3983 = vor.u32 %v3979, %v3982
      %v3984 = vrot.slane %v3983, 4
      %v3986 = vshll.u32 %v3969, 16
      %v3988 = vrot.slane %v3986, 5
      %v3989 = vsel %vm457, %v3984, %v3988
      %v3991 = vshrl.u32 %v3970, 16
      %v3993 = vrot.slane %v3991, 4
      %v3994 = vshll.u32 %v3970, 16
      %v3996 = vrot.slane %v3994, 5
      %v3997 = vor.u32 %v3993, %v3996
      %v3998 = vrot.slane %v3997, 4
      %v4000 = vshll.u32 %v3971, 16
      %v4002 = vrot.slane %v4000, 5
      %v4003 = vsel %vm457, %v3998, %v4002
      %v4005 = vshrl.u32 %v3972, 16
      %v4007 = vrot.slane %v4005, 4
      %v4008 = vshll.u32 %v3972, 16
      %v4010 = vrot.slane %v4008, 5
      %v4011 = vor.u32 %v4007, %v4010
      %v4012 = vrot.slane %v4011, 4
      %v4014 = vshll.u32 %v3973, 16
      %v4016 = vrot.slane %v4014, 5
      %v4017 = vsel %vm457, %v4012, %v4016
      %v4019 = vshrl.u32 %v3974, 16
      %v4021 = vrot.slane %v4019, 4
      %v4022 = vshll.u32 %v3974, 16
      %v4024 = vrot.slane %v4022, 5
      %v4025 = vor.u32 %v4021, %v4024
      %v4026 = vrot.slane %v4025, 4
      %v4028 = vshll.u32 %v3975, 16
      %v4030 = vrot.slane %v4028, 5
      %v4031 = vsel %vm457, %v4026, %v4030
      %v4032 = vunpack.c.l.b16 %v3989
      %v4033 = vunpack.c.l.b16 %v4003
      %v4034 = vunpack.c.l.b16 %v4017
      %v4035 = vunpack.c.l.b16 %v4031
      %v4036 = vpack.c.b16 %v4033, %v4032
      %v4037 = vpack.c.b16 %v4035, %v4034
      %4040 = vst.msk [vmem:[%s2061] sm:$0xff] %vm375, %v4036
      %4041 = vst.msk [vmem:[%s2061 + $0x8] sm:$0xff] %vm375, %v4037
      %v4042 = vld [vmem:[%s1068] sm:$0xe]
      %v4043 = vld [vmem:[%s1068 + $0x4] sm:$0x1]
      %v4044 = vld [vmem:[%s1068 + $0x8] sm:$0xe]
      %v4045 = vld [vmem:[%s1068 + $0xc] sm:$0x1]
      %v4046 = vld [vmem:[%s1068 + $0x10] sm:$0xe]
      %v4047 = vld [vmem:[%s1068 + $0x14] sm:$0x1]
      %v4048 = vld [vmem:[%s1068 + $0x18] sm:$0xe]
      %v4049 = vld [vmem:[%s1068 + $0x1c] sm:$0x1]
      %v4058 = vrot.slane %v4042, 5
      %v4059 = vrot.slane %v4058, 4
      %v4060 = vrot.slane %v4043, 5
      %v4061 = vsel %vm1558, %v4059, %v4060
      %v4062 = vrot.slane %v4044, 5
      %v4063 = vrot.slane %v4062, 4
      %v4064 = vrot.slane %v4045, 5
      %v4065 = vsel %vm1558, %v4063, %v4064
      %v4066 = vrot.slane %v4046, 5
      %v4067 = vrot.slane %v4066, 4
      %v4068 = vrot.slane %v4047, 5
      %v4069 = vsel %vm1558, %v4067, %v4068
      %v4070 = vrot.slane %v4048, 5
      %v4071 = vrot.slane %v4070, 4
      %v4072 = vrot.slane %v4049, 5
      %v4073 = vsel %vm1558, %v4071, %v4072
      %v4074 = vunpack.c.l.b16 %v4061
      %v4075 = vunpack.c.l.b16 %v4065
      %v4076 = vunpack.c.l.b16 %v4069
      %v4077 = vunpack.c.l.b16 %v4073
      %v4078 = vpack.c.b16 %v4075, %v4074
      %v4079 = vpack.c.b16 %v4077, %v4076
      %4080 = vrot.lane.b32.xlu0 %v4078, 16
      %v4081 = vpop.permute.xlu0 %4080
      %4082 = vrot.lane.b32.xlu0 %v4079, 16
      %v4083 = vpop.permute.xlu0 %4082
      %4086 = vst.msk [vmem:[%s2061] sm:$0xff] %vm1065, %v4081
      %4087 = vst.msk [vmem:[%s2061 + $0x8] sm:$0xff] %vm1065, %v4083
      %v4088 = vld [vmem:[%s3065] sm:$0xf]
      %v4089 = vld [vmem:[%s3065 + $0x4] sm:$0x1]
      %v4090 = vld [vmem:[%s3065 + $0x8] sm:$0xf]
      %v4091 = vld [vmem:[%s3065 + $0xc] sm:$0x1]
      %v4092 = vld [vmem:[%s3065 + $0x10] sm:$0xf]
      %v4093 = vld [vmem:[%s3065 + $0x14] sm:$0x1]
      %v4094 = vld [vmem:[%s3065 + $0x18] sm:$0xf]
      %v4095 = vld [vmem:[%s3065 + $0x1c] sm:$0x1]
      %v4097 = vshrl.u32 %v4088, 16
      %v4099 = vrot.slane %v4097, 4
      %v4100 = vshll.u32 %v4088, 16
      %v4102 = vrot.slane %v4100, 5
      %v4103 = vor.u32 %v4099, %v4102
      %v4104 = vrot.slane %v4103, 4
      %v4106 = vshll.u32 %v4089, 16
      %v4108 = vrot.slane %v4106, 5
      %v4109 = vsel %vm457, %v4104, %v4108
      %v4111 = vshrl.u32 %v4090, 16
      %v4113 = vrot.slane %v4111, 4
      %v4114 = vshll.u32 %v4090, 16
      %v4116 = vrot.slane %v4114, 5
      %v4117 = vor.u32 %v4113, %v4116
      %v4118 = vrot.slane %v4117, 4
      %v4120 = vshll.u32 %v4091, 16
      %v4122 = vrot.slane %v4120, 5
      %v4123 = vsel %vm457, %v4118, %v4122
      %v4125 = vshrl.u32 %v4092, 16
      %v4127 = vrot.slane %v4125, 4
      %v4128 = vshll.u32 %v4092, 16
      %v4130 = vrot.slane %v4128, 5
      %v4131 = vor.u32 %v4127, %v4130
      %v4132 = vrot.slane %v4131, 4
      %v4134 = vshll.u32 %v4093, 16
      %v4136 = vrot.slane %v4134, 5
      %v4137 = vsel %vm457, %v4132, %v4136
      %v4139 = vshrl.u32 %v4094, 16
      %v4141 = vrot.slane %v4139, 4
      %v4142 = vshll.u32 %v4094, 16
      %v4144 = vrot.slane %v4142, 5
      %v4145 = vor.u32 %v4141, %v4144
      %v4146 = vrot.slane %v4145, 4
      %v4148 = vshll.u32 %v4095, 16
      %v4150 = vrot.slane %v4148, 5
      %v4151 = vsel %vm457, %v4146, %v4150
      %v4152 = vunpack.c.l.b16 %v4109
      %v4153 = vunpack.c.l.b16 %v4123
      %v4154 = vunpack.c.l.b16 %v4137
      %v4155 = vunpack.c.l.b16 %v4151
      %v4156 = vpack.c.b16 %v4153, %v4152
      %v4157 = vpack.c.b16 %v4155, %v4154
      %4158 = vrot.lane.b32.xlu0 %v4156, 32
      %v4159 = vpop.permute.xlu0 %4158
      %4160 = vrot.lane.b32.xlu0 %v4157, 32
      %v4161 = vpop.permute.xlu0 %4160
      %4164 = vst.msk [vmem:[%s2061] sm:$0xff] %vm1089, %v4159
      %4165 = vst.msk [vmem:[%s2061 + $0x8] sm:$0xff] %vm1089, %v4161
      %v4166 = vld [vmem:[%s3065] sm:$0xe]
      %v4167 = vld [vmem:[%s3065 + $0x4] sm:$0x1]
      %v4168 = vld [vmem:[%s3065 + $0x8] sm:$0xe]
      %v4169 = vld [vmem:[%s3065 + $0xc] sm:$0x1]
      %v4170 = vld [vmem:[%s3065 + $0x10] sm:$0xe]
      %v4171 = vld [vmem:[%s3065 + $0x14] sm:$0x1]
      %v4172 = vld [vmem:[%s3065 + $0x18] sm:$0xe]
      %v4173 = vld [vmem:[%s3065 + $0x1c] sm:$0x1]
      %v4182 = vrot.slane %v4166, 5
      %v4183 = vrot.slane %v4182, 4
      %v4184 = vrot.slane %v4167, 5
      %v4185 = vsel %vm1558, %v4183, %v4184
      %v4186 = vrot.slane %v4168, 5
      %v4187 = vrot.slane %v4186, 4
      %v4188 = vrot.slane %v4169, 5
      %v4189 = vsel %vm1558, %v4187, %v4188
      %v4190 = vrot.slane %v4170, 5
      %v4191 = vrot.slane %v4190, 4
      %v4192 = vrot.slane %v4171, 5
      %v4193 = vsel %vm1558, %v4191, %v4192
      %v4194 = vrot.slane %v4172, 5
      %v4195 = vrot.slane %v4194, 4
      %v4196 = vrot.slane %v4173, 5
      %v4197 = vsel %vm1558, %v4195, %v4196
      %v4198 = vunpack.c.l.b16 %v4185
      %v4199 = vunpack.c.l.b16 %v4189
      %v4200 = vunpack.c.l.b16 %v4193
      %v4201 = vunpack.c.l.b16 %v4197
      %v4202 = vpack.c.b16 %v4199, %v4198
      %v4203 = vpack.c.b16 %v4201, %v4200
      %4204 = vrot.lane.b32.xlu0 %v4202, 48
      %v4205 = vpop.permute.xlu0 %4204
      %4206 = vrot.lane.b32.xlu0 %v4203, 48
      %v4207 = vpop.permute.xlu0 %4206
      %4210 = vst.msk [vmem:[%s2061] sm:$0xff] %vm1168, %v4205
      %4211 = vst.msk [vmem:[%s2061 + $0x8] sm:$0xff] %vm1168, %v4207
      %v4212 = vld [vmem:[%s1459] sm:$0xff]
      %v4213 = vld [vmem:[%s1459 + $0x8] sm:$0xff]
      %s4214 = scalar_lea.vmem %s4, 108
      %v4215 = vld [vmem:[%s4214] sm:$0xf]
      %v4216 = vld [vmem:[%s4214 + $0x4] sm:$0xf]
      %v4217 = vld [vmem:[%s4214 + $0x8] sm:$0xf]
      %v4218 = vld [vmem:[%s4214 + $0xc] sm:$0xf]
      %v4219 = vld [vmem:[%s4214 + $0x10] sm:$0xf]
      %v4220 = vld [vmem:[%s4214 + $0x14] sm:$0xf]
      %v4221 = vld [vmem:[%s4214 + $0x18] sm:$0xf]
      %v4222 = vld [vmem:[%s4214 + $0x1c] sm:$0xf]
      %v4223 = vld [vmem:[%s4214 + $0x20] sm:$0xf]
      %v4233 = vunpack.c.l.b16 %v4215
      %v4234 = vunpack.c.l.b16 %v4216
      %v4235 = vunpack.c.l.b16 %v4217
      %v4236 = vunpack.c.l.b16 %v4218
      %v4237 = vunpack.c.l.b16 %v4219
      %v4238 = vunpack.c.l.b16 %v4220
      %v4239 = vunpack.c.l.b16 %v4221
      %v4240 = vunpack.c.l.b16 %v4222
      %v4241 = vunpack.c.l.b16 %v4223
      %v4242 = vpack.c.b16 %v4234, %v4233
      %v4243 = vpack.c.b16 %v4236, %v4235
      %v4244 = vpack.c.b16 %v4238, %v4237
      %v4245 = vpack.c.b16 %v4240, %v4239
      %v4246 = vpack.c.b16 %v4241, %v4241
      %v4252 = vsel %vm1209, %v4212, 0
      %v4255 = vsel %vm1209, %v4213, 0
      %v4258 = vsel %vm1216, %v4246, 0
      %4260 = vmatprep.subr.bf16.mxu0 0
      %4261 = vmatpush1.bf16.msra.mxu0 %v4242
      %4262 = vmatprep.subr.bf16.mxu0 0
      %4263 = vmatpush1.bf16.msra.mxu0 %v4243
      %4264 = vmatprep.subr.bf16.mxu0 0
      %4265 = vmatpush1.bf16.msra.mxu0 %v4244
      %4266 = vmatprep.subr.bf16.mxu0 0
      %4267 = vmatpush1.bf16.msra.mxu0 %v4245
      %4268 = vmatprep.subr.bf16.mxu0 0
      %4269 = vmatpush1.bf16.msra.mxu0 %v4258
      %4270 = vmatprep.subr.bf16.mxu0 0
      %4271 = vmatpush1.bf16.msra.mxu0 0
      %4272 = vmatprep.subr.bf16.mxu0 0
      %4273 = vmatpush1.bf16.msra.mxu0 0
      %4274 = vmatprep.subr.bf16.mxu0 0
      %4275 = vmatpush1.bf16.msra.mxu0 0
      %4276 = vmatprep.subr.bf16.mxu0 0
      %4277 = vmatpush1.bf16.msra.mxu0 0
      %4278 = vmatprep.subr.bf16.mxu0 0
      %4279 = vmatpush1.bf16.msra.mxu0 0
      %4280 = vmatprep.subr.bf16.mxu0 0
      %4281 = vmatpush1.bf16.msra.mxu0 0
      %4282 = vmatprep.subr.bf16.mxu0 0
      %4283 = vmatpush1.bf16.msra.mxu0 0
      %4284 = vmatprep.subr.bf16.mxu0 0
      %4285 = vmatpush1.bf16.msra.mxu0 0
      %4286 = vmatprep.subr.bf16.mxu0 0
      %4287 = vmatpush1.bf16.msra.mxu0 0
      %4288 = vmatprep.subr.bf16.mxu0 0
      %4289 = vmatpush1.bf16.msra.mxu0 0
      %4290 = vmatprep.subr.bf16.mxu0 0
      %4291 = vmatpush1.bf16.msra.mxu0 0
      %4292 = vmatprep.mubr.bf16.mxu0 0
      %4293 = vmatmul.mubr.bf16.gmra.mrb[0].mxu0 %v4252
      %v4294 = vpop.f32.mrb[0].mxu0
      %v4295 = vadd.f32 0.0, %v4294
      %v4296 = vpop.f32.mrb[0].mxu0
      %v4297 = vpop.f32.mrb[0].mxu0
      %v4298 = vadd.f32 0.0, %v4297
      %v4299 = vpop.f32.mrb[0].mxu0
      %4300 = vmatprep.mubr.bf16.mxu0 0
      %4301 = vmatmul.mubr.bf16.gmra.mrb[0].mxu0 %v4255
      %v4302 = vpop.f32.mrb[0].mxu0
      %v4303 = vadd.f32 0.0, %v4302
      %v4304 = vpop.f32.mrb[0].mxu0
      %v4305 = vpop.f32.mrb[0].mxu0
      %v4306 = vadd.f32 0.0, %v4305
      %v4307 = vpop.f32.mrb[0].mxu0
      %4308 = vdwg.mxu0
      %v4309 = vld [vmem:[%s2061] sm:$0xff]
      %v4310 = vld [vmem:[%s2061 + $0x8] sm:$0xff]
      %s4311 = scalar_lea.vmem %s5, 96
      %v4312 = vld [vmem:[%s4311] sm:$0xf]
      %v4313 = vld [vmem:[%s4311 + $0x4] sm:$0xf]
      %v4314 = vld [vmem:[%s4311 + $0x8] sm:$0xf]
      %v4315 = vld [vmem:[%s4311 + $0xc] sm:$0xf]
      %v4316 = vld [vmem:[%s4311 + $0x10] sm:$0xf]
      %v4317 = vld [vmem:[%s4311 + $0x14] sm:$0xf]
      %v4318 = vld [vmem:[%s4311 + $0x18] sm:$0xf]
      %v4319 = vld [vmem:[%s4311 + $0x1c] sm:$0xf]
      %v4320 = vmul.f32 %v4295, %v1282
      %v4321 = vmul.f32 %v4298, %v1282
      %v4322 = vmul.f32 %v4303, %v1282
      %v4323 = vmul.f32 %v4306, %v1282
      %v4332 = vunpack.c.l.b16 %v4312
      %v4333 = vunpack.c.l.b16 %v4313
      %v4334 = vunpack.c.l.b16 %v4314
      %v4335 = vunpack.c.l.b16 %v4315
      %v4336 = vunpack.c.l.b16 %v4316
      %v4337 = vunpack.c.l.b16 %v4317
      %v4338 = vunpack.c.l.b16 %v4318
      %v4339 = vunpack.c.l.b16 %v4319
      %v4340 = vpack.c.b16 %v4333, %v4332
      %v4341 = vpack.c.b16 %v4335, %v4334
      %v4342 = vpack.c.b16 %v4337, %v4336
      %v4343 = vpack.c.b16 %v4339, %v4338
      %v4349 = vsel %vm1311, %v4309, 0
      %v4352 = vsel %vm1311, %v4310, 0
      %4354 = vmatprep.subr.bf16.mxu0 0
      %4355 = vmatpush1.bf16.msra.mxu0 %v4340
      %4356 = vmatprep.subr.bf16.mxu0 0
      %4357 = vmatpush1.bf16.msra.mxu0 %v4341
      %4358 = vmatprep.subr.bf16.mxu0 0
      %4359 = vmatpush1.bf16.msra.mxu0 %v4342
      %4360 = vmatprep.subr.bf16.mxu0 0
      %4361 = vmatpush1.bf16.msra.mxu0 %v4343
      %4362 = vmatprep.subr.bf16.mxu0 0
      %4363 = vmatpush1.bf16.msra.mxu0 0
      %4364 = vmatprep.subr.bf16.mxu0 0
      %4365 = vmatpush1.bf16.msra.mxu0 0
      %4366 = vmatprep.subr.bf16.mxu0 0
      %4367 = vmatpush1.bf16.msra.mxu0 0
      %4368 = vmatprep.subr.bf16.mxu0 0
      %4369 = vmatpush1.bf16.msra.mxu0 0
      %4370 = vmatprep.subr.bf16.mxu0 0
      %4371 = vmatpush1.bf16.msra.mxu0 0
      %4372 = vmatprep.subr.bf16.mxu0 0
      %4373 = vmatpush1.bf16.msra.mxu0 0
      %4374 = vmatprep.subr.bf16.mxu0 0
      %4375 = vmatpush1.bf16.msra.mxu0 0
      %4376 = vmatprep.subr.bf16.mxu0 0
      %4377 = vmatpush1.bf16.msra.mxu0 0
      %4378 = vmatprep.subr.bf16.mxu0 0
      %4379 = vmatpush1.bf16.msra.mxu0 0
      %4380 = vmatprep.subr.bf16.mxu0 0
      %4381 = vmatpush1.bf16.msra.mxu0 0
      %4382 = vmatprep.subr.bf16.mxu0 0
      %4383 = vmatpush1.bf16.msra.mxu0 0
      %4384 = vmatprep.subr.bf16.mxu0 0
      %4385 = vmatpush1.bf16.msra.mxu0 0
      %4386 = vmatprep.mubr.bf16.mxu0 0
      %4387 = vmatmul.mubr.bf16.gmra.mrb[0].mxu0 %v4349
      %v4388 = vpop.f32.mrb[0].mxu0
      %v4389 = vadd.f32 %v4320, %v4388
      %v4390 = vpop.f32.mrb[0].mxu0
      %v4391 = vpop.f32.mrb[0].mxu0
      %v4392 = vadd.f32 %v4321, %v4391
      %v4393 = vpop.f32.mrb[0].mxu0
      %4394 = vmatprep.mubr.bf16.mxu0 0
      %4395 = vmatmul.mubr.bf16.gmra.mrb[0].mxu0 %v4352
      %v4396 = vpop.f32.mrb[0].mxu0
      %v4397 = vadd.f32 %v4322, %v4396
      %v4398 = vpop.f32.mrb[0].mxu0
      %v4399 = vpop.f32.mrb[0].mxu0
      %v4400 = vadd.f32 %v4323, %v4399
      %v4401 = vpop.f32.mrb[0].mxu0
      %4402 = vdwg.mxu0
      %v4403 = vadd.f32 %v4389, %v1370
      %v4404 = vadd.f32 %v4392, %v1370
      %v4405 = vadd.f32 %v4397, %v1370
      %v4406 = vadd.f32 %v4400, %v1370
      %v4407 = vmax.f32 %v4403, 0.0
      %v4408 = vmax.f32 %v4404, 0.0
      %v4409 = vmax.f32 %v4405, 0.0
      %v4410 = vmax.f32 %v4406, 0.0
      %s4411 = scalar_lea.vmem %s362, 96
      %4412 = vst.msk [vmem:[%s4411] sm:$0xff] %vm444, %v4407
      %4413 = vst.msk [vmem:[%s4411 + $0x8] sm:$0xff] %vm444, %v4408
      %4414 = vst.msk [vmem:[%s4411 + $0x10] sm:$0xff] %vm444, %v4409
      %4415 = vst.msk [vmem:[%s4411 + $0x18] sm:$0xff] %vm444, %v4410
      %p4416 = scmp.lt.s32.totalorder %s22, 1
      %s4417 = scalar_select %p4416, %s22, 1
      %p4418 = scmp.lt.s32.totalorder %s23, 1
      %s4419 = scalar_select %p4418, %s23, 1
      %s4420 = smul.addr %s4419, 16
      %s4421 = smul.addr %s4417, 32
      %s4422 = sadd.s32 %s4420, %s4421
      %s4423 = smul.addr %s4422, 8
      %s4424 = scalar_lea.vmem %s7, %s4423
      // Predicated region
      $region49: #{gau_forward.1} parent=47 // pred_check
        %p4425 = pneg %p216
      $region50: #{gau_forward.1} parent=47 // pred_check_branch
        %4427 = sbr.rel (%p4425) target = $region52
      $region51: #{gau_forward.1} parent=47 // pred_region
        _
      $region52: #{gau_forward.1} parent=47 // pred_fallthru
        _
    $region48: #{gau_forward.1} parent=5 // pred_fallthru
      _
    %p4428 = scmp.le.s32.totalorder 2, %s13
    // Predicated region
    $region53: #{gau_forward.1} parent=5 // pred_check
      %p4429 = pneg %p4428
    $region54: #{gau_forward.1} parent=5 // pred_check_branch
      %4431 = sbr.rel (%p4429) target = $region56
    $region55: #{gau_forward.1} parent=5 // pred_region
      %s4432 = ssub.s32 %s13, 2
      // Predicated region
      $region57: #{gau_forward.1} parent=55 // pred_check
        %p4433 = pneg %p222
      $region58: #{gau_forward.1} parent=55 // pred_check_branch
        %4435 = sbr.rel (%p4433) target = $region60
      $region59: #{gau_forward.1} parent=55 // pred_region
        %p4436 = scmp.lt.s32.totalorder %s24, 1
        %s4437 = scalar_select %p4436, %s24, 1
        %p4438 = scmp.lt.s32.totalorder %s25, 1
        %s4439 = scalar_select %p4438, %s25, 1
        %s4440 = smul.addr %s4439, 16
        %s4441 = smul.addr %s4437, 32
        %s4442 = sadd.s32 %s4440, %s4441
        %s4443 = smul.addr %s4442, 8
        %s4444 = scalar_lea.vmem %s7, %s4443
      $region60: #{gau_forward.1} parent=55 // pred_fallthru
        _
    $region56: #{gau_forward.1} parent=5 // pred_fallthru
      _
  $region6: #{gau_forward.1} parent=0 // loop_footer
    %s17 = sadd.s32 1, %s13
  $region7: #{gau_forward.1} parent=0 // loop_footer_branch
    %12 = sbr.rel target = $region3
  $region8: #{gau_forward.1} parent=0 // loop_exit
    _

</llo_original>
